<compile_context>
chip_gen: v5e
topology: v5e:2x2
jax: 0.10.0
libtpu: 0.0.40
codegen_flags: <defaults>
</compile_context>

<pallas_src>
import functools
import math

import numpy as np
import jax
import jax.numpy as jnp
from jax import lax
from jax.experimental import pallas as pl
from jax.experimental.pallas import tpu as pltpu

EPS = 1e-5


@functools.lru_cache(maxsize=1)
def _vmem_limit_bytes():
    """~75% of physical VMEM, capped at 100 MiB (v5e/v6e -> 96 MiB, v7x -> 48 MiB)."""
    cap = 64 * 1024 * 1024
    try:
        info = pltpu.get_tpu_info()
        cap = int(getattr(info, "vmem_capacity_bytes", cap) or cap)
    except Exception:
        pass
    return int(min(cap * 3 // 4, 100 * 1024 * 1024))


def _cparams(*sems):
    return pltpu.CompilerParams(dimension_semantics=sems,
                                vmem_limit_bytes=_vmem_limit_bytes())


def _pick_spatial_tile(rows, target=1024):
    """Largest divisor of `rows` <= target that is a multiple of 8 (per the
    measured tile-size sweep larger tiles amortize per-step overhead)."""
    if rows <= target:
        return rows
    for cand in range(target, 7, -1):
        if rows % cand == 0 and cand % 8 == 0:
            return cand
    return rows


# --------------------------------------------------------------------------
# Kernel A: conv1 (1x1, bf16 MXU) + per-(sample, channel) sum / sum-of-squares
# --------------------------------------------------------------------------
def _conv1_stats_kernel(x_ref, w_ref, y_ref, st_ref, acc_ref):
    t = pl.program_id(1)
    nt = pl.num_programs(1)

    x = x_ref[0]                                                        # (ts, Cin) bf16
    y = jnp.dot(x, w_ref[...], preferred_element_type=jnp.float32)     # (ts, DC) f32
    y_ref[0] = y.astype(jnp.bfloat16)                                  # bf16 HBM store

    @pl.when(t == 0)
    def _():
        acc_ref[...] = jnp.zeros_like(acc_ref)

    acc_ref[0:1, :] = acc_ref[0:1, :] + jnp.sum(y, axis=0, keepdims=True)
    acc_ref[1:2, :] = acc_ref[1:2, :] + jnp.sum(y * y, axis=0, keepdims=True)

    @pl.when(t == nt - 1)
    def _():
        st_ref[0] = acc_ref[...]


def _call_conv1(x_flat, w1_bf16, ts):
    n, hw, cin = x_flat.shape
    dc = w1_bf16.shape[1]
    nt = hw // ts
    return pl.pallas_call(
        _conv1_stats_kernel,
        grid=(n, nt),
        in_specs=[
            pl.BlockSpec((1, ts, cin), lambda i, t: (i, t, 0)),
            pl.BlockSpec((cin, dc), lambda i, t: (0, 0)),
        ],
        out_specs=[
            pl.BlockSpec((1, ts, dc), lambda i, t: (i, t, 0)),
            pl.BlockSpec((1, 2, dc), lambda i, t: (i, 0, 0)),
        ],
        out_shape=[
            jax.ShapeDtypeStruct((n, hw, dc), jnp.bfloat16),
            jax.ShapeDtypeStruct((n, 2, dc), jnp.float32),
        ],
        scratch_shapes=[pltpu.VMEM((2, dc), jnp.float32)],
        compiler_params=_cparams("parallel", "arbitrary"),
    )(x_flat, w1_bf16)


# --------------------------------------------------------------------------
# Kernel B: fused IBN affine + ReLU  +  3x3 grouped conv as ONE K=9*DC im2col
#           matmul (bf16 padded scratch, halo-only re-zero) + BN2 partial stats
# --------------------------------------------------------------------------
def _norm1_conv2_stats_kernel(y1_ref, sc_ref, sh_ref, w_ref, y2_ref, st_ref,
                              xp_ref, *, H, W, stride):
    dc = y1_ref.shape[-1]
    wp = xp_ref.shape[1]                       # padded width, multiple of 8
    ho = (H + 2 - 3) // stride + 1
    wo = (W + 2 - 3) // stride + 1

    # Re-zero only the 1-px halo the taps read (row 0, row H+1, col 0, col W+1).
    # (Zero-once at i==0 is unsafe: the parallel batch axis may be split across
    #  TensorCores, each with its own scratch.)
    zero_row = jnp.zeros((1, wp, dc), jnp.bfloat16)
    zero_col = jnp.zeros((H, 1, dc), jnp.bfloat16)
    xp_ref[0:1, :, :] = zero_row
    xp_ref[H + 1:H + 2, :, :] = zero_row
    xp_ref[pl.ds(1, H), 0:1, :] = zero_col
    xp_ref[pl.ds(1, H), pl.ds(W + 1, 1), :] = zero_col

    # Full-width per-(sample, channel) affine: IBN without any lane-misaligned
    # split/concat (scale/shift already blend IN and BN channels), ReLU, and a
    # bf16 store into the padded scratch interior.
    yn = jnp.maximum(y1_ref[0].astype(jnp.float32) * sc_ref[0] + sh_ref[0], 0.0)
    xp_ref[pl.ds(1, H), pl.ds(1, W), :] = yn.astype(jnp.bfloat16)

    # im2col: 9 shifted views concatenated along lanes -> single long-K matmul.
    xp = xp_ref[...]                                                    # (H+2, wp, DC) bf16
    patches = []
    for kh in range(3):
        for kw in range(3):
            p = lax.slice(xp, (kh, kw, 0),
                          (kh + (ho - 1) * stride + 1,
                           kw + (wo - 1) * stride + 1, dc),
                          (stride, stride, 1))
            patches.append(p.reshape(ho * wo, dc))
    pat = jnp.concatenate(patches, axis=-1)                             # (ho*wo, 9*DC) bf16

    y2 = jnp.dot(pat, w_ref[...], preferred_element_type=jnp.float32)  # (ho*wo, DC) f32
    y2_ref[0] = y2.astype(jnp.bfloat16)
    st_ref[0, 0:1, :] = jnp.sum(y2, axis=0, keepdims=True)
    st_ref[0, 1:2, :] = jnp.sum(y2 * y2, axis=0, keepdims=True)


def _call_conv2(y1_4d, scale1_3d, shift1_3d, w2_bf16, h, w, stride):
    n, _, _, dc = y1_4d.shape
    ho = (h + 2 - 3) // stride + 1
    wo = (w + 2 - 3) // stride + 1
    wp = ((w + 2 + 7) // 8) * 8                # sublane-aligned padded width
    kernel = functools.partial(_norm1_conv2_stats_kernel, H=h, W=w, stride=stride)
    return pl.pallas_call(
        kernel,
        grid=(n,),
        in_specs=[
            pl.BlockSpec((1, h, w, dc), lambda i: (i, 0, 0, 0)),
            pl.BlockSpec((1, 1, dc), lambda i: (i, 0, 0)),
            pl.BlockSpec((1, 1, dc), lambda i: (i, 0, 0)),
            pl.BlockSpec((9 * dc, dc), lambda i: (0, 0)),
        ],
        out_specs=[
            pl.BlockSpec((1, ho * wo, dc), lambda i: (i, 0, 0)),
            pl.BlockSpec((1, 2, dc), lambda i: (i, 0, 0)),
        ],
        out_shape=[
            jax.ShapeDtypeStruct((n, ho * wo, dc), jnp.bfloat16),
            jax.ShapeDtypeStruct((n, 2, dc), jnp.float32),
        ],
        scratch_shapes=[pltpu.VMEM((h + 2, wp, dc), jnp.bfloat16)],
        compiler_params=_cparams("parallel"),
    )(y1_4d, scale1_3d, shift1_3d, w2_bf16)


# --------------------------------------------------------------------------
# Kernel C: BN2 affine + ReLU + conv3 (1x1, bf16 MXU) + BN3 partial stats
# --------------------------------------------------------------------------
def _norm2_conv3_stats_kernel(y2_ref, sc_ref, sh_ref, w_ref, y3_ref, st_ref,
                              acc_ref):
    t = pl.program_id(1)
    nt = pl.num_programs(1)

    y = jnp.maximum(y2_ref[0].astype(jnp.float32) * sc_ref[0] + sh_ref[0], 0.0)
    z = jnp.dot(y.astype(jnp.bfloat16), w_ref[...],
                preferred_element_type=jnp.float32)                    # (ts, cout) f32
    y3_ref[0] = z.astype(jnp.bfloat16)

    @pl.when(t == 0)
    def _():
        acc_ref[...] = jnp.zeros_like(acc_ref)

    acc_ref[0:1, :] = acc_ref[0:1, :] + jnp.sum(z, axis=0, keepdims=True)
    acc_ref[1:2, :] = acc_ref[1:2, :] + jnp.sum(z * z, axis=0, keepdims=True)

    @pl.when(t == nt - 1)
    def _():
        st_ref[0] = acc_ref[...]


def _call_conv3(y2, scale2_3d, shift2_3d, w3_bf16, ts):
    n, hw, dc = y2.shape
    cout = w3_bf16.shape[1]
    nt = hw // ts
    return pl.pallas_call(
        _norm2_conv3_stats_kernel,
        grid=(n, nt),
        in_specs=[
            pl.BlockSpec((1, ts, dc), lambda i, t: (i, t, 0)),
            pl.BlockSpec((1, 1, dc), lambda i, t: (0, 0, 0)),
            pl.BlockSpec((1, 1, dc), lambda i, t: (0, 0, 0)),
            pl.BlockSpec((dc, cout), lambda i, t: (0, 0)),
        ],
        out_specs=[
            pl.BlockSpec((1, ts, cout), lambda i, t: (i, t, 0)),
            pl.BlockSpec((1, 2, cout), lambda i, t: (i, 0, 0)),
        ],
        out_shape=[
            jax.ShapeDtypeStruct((n, hw, cout), jnp.bfloat16),
            jax.ShapeDtypeStruct((n, 2, cout), jnp.float32),
        ],
        scratch_shapes=[pltpu.VMEM((2, cout), jnp.float32)],
        compiler_params=_cparams("parallel", "arbitrary"),
    )(y2, scale2_3d, shift2_3d, w3_bf16)


# --------------------------------------------------------------------------
# Kernel D: BN3 affine + residual add + ReLU (bf16 output aliased onto residual)
# --------------------------------------------------------------------------
def _norm3_add_relu_kernel(y3_ref, res_ref, sc_ref, sh_ref, o_ref):
    z = y3_ref[0].astype(jnp.float32) * sc_ref[0] + sh_ref[0]
    o_ref[0] = jnp.maximum(z + res_ref[0].astype(jnp.float32), 0.0
                           ).astype(jnp.bfloat16)


def _call_finalize(y3, residual, scale3_3d, shift3_3d, ts):
    n, hw, cout = y3.shape
    nt = hw // ts
    return pl.pallas_call(
        _norm3_add_relu_kernel,
        grid=(n, nt),
        in_specs=[
            pl.BlockSpec((1, ts, cout), lambda i, t: (i, t, 0)),
            pl.BlockSpec((1, ts, cout), lambda i, t: (i, t, 0)),
            pl.BlockSpec((1, 1, cout), lambda i, t: (0, 0, 0)),
            pl.BlockSpec((1, 1, cout), lambda i, t: (0, 0, 0)),
        ],
        out_specs=pl.BlockSpec((1, ts, cout), lambda i, t: (i, t, 0)),
        out_shape=jax.ShapeDtypeStruct((n, hw, cout), jnp.bfloat16),
        input_output_aliases={1: 0},   # overwrite the bf16 residual buffer in place
        compiler_params=_cparams("parallel", "parallel"),
    )(y3, residual, scale3_3d, shift3_3d)


# --------------------------------------------------------------------------
# Tiny plain-JAX glue: fold sum / sum-of-squares into per-channel scale/shift
# --------------------------------------------------------------------------
def _affine_from_stats(s, ss, count, gamma, beta):
    mean = s / count
    var = ss / count - mean * mean
    scale = gamma * lax.rsqrt(var + EPS)
    return scale, beta - mean * scale


def _ibn_affine(st, hw_count, half, in_g, in_b, bn_g, bn_b):
    """IBN-a: InstanceNorm (per-sample stats) on channels < half, training-mode
    BatchNorm (batch stats) on the rest; returns full-width (N, DC) affine."""
    n, _, dc = st.shape
    g_in = jnp.concatenate([in_g, jnp.ones((dc - half,), jnp.float32)])
    b_in = jnp.concatenate([in_b, jnp.zeros((dc - half,), jnp.float32)])
    g_bn = jnp.concatenate([jnp.ones((half,), jnp.float32), bn_g])
    b_bn = jnp.concatenate([jnp.zeros((half,), jnp.float32), bn_b])
    sc_in, sh_in = _affine_from_stats(st[:, 0], st[:, 1], hw_count, g_in, b_in)
    sc_bn, sh_bn = _affine_from_stats(st[:, 0].sum(0), st[:, 1].sum(0),
                                      n * hw_count, g_bn, b_bn)
    is_in = (jnp.arange(dc) < half)[None, :]
    scale = jnp.where(is_in, sc_in, sc_bn[None, :])
    shift = jnp.where(is_in, sh_in, sh_bn[None, :])
    return scale, shift                                   # (N, DC) each


def _bn_affine(st, count, gamma, beta):
    return _affine_from_stats(st[:, 0].sum(0), st[:, 1].sum(0), count, gamma, beta)


# --------------------------------------------------------------------------
# Public wrapper
# --------------------------------------------------------------------------
def bottleneck_ibn_forward(x_nchw, p, *, half, stride=1, spatial_tile=None):
    n, cin, h, w = x_nchw.shape
    assert stride == 1, "identity-residual path only (downsample not implemented)"
    # NCHW -> [N, H*W, C] in bf16 (halves kernel A input and kernel D residual
    # HBM reads; mirrors the reference's bf16 conv-operand cast).
    x_flat = jnp.transpose(x_nchw, (0, 2, 3, 1)).reshape(n, h * w, cin)
    x_flat = x_flat.astype(jnp.bfloat16)

    w1 = p['w1_io'].astype(jnp.bfloat16)       # (Cin, DC)
    w2 = p['w2_big'].astype(jnp.bfloat16)      # (9*DC, DC) block-diag per tap
    w3 = p['w3_io'].astype(jnp.bfloat16)       # (DC, Cout)
    dc = w1.shape[1]
    cout = w3.shape[1]
    assert cin == cout, "identity residual requires inplanes == planes*4"

    hw = h * w
    ts = spatial_tile if spatial_tile is not None else _pick_spatial_tile(hw)
    assert hw % ts == 0
    ho = (h + 2 - 3) // stride + 1
    wo = (w + 2 - 3) // stride + 1
    hwo = ho * wo
    ts_fin = _pick_spatial_tile(hwo, target=2048)   # elementwise kernel: bigger tiles

    # Stage 1: conv1 + per-(n, c) stats.
    y1, st1 = _call_conv1(x_flat, w1, ts)
    scale1, shift1 = _ibn_affine(st1, hw, half,
                                 p['in_g'], p['in_b'], p['bn1_g'], p['bn1_b'])

    # Stage 2: IBN affine + ReLU + grouped 3x3 conv (im2col) + BN2 partial stats.
    y2, st2 = _call_conv2(y1.reshape(n, h, w, dc),
                          scale1.reshape(n, 1, dc), shift1.reshape(n, 1, dc),
                          w2, h, w, stride)
    scale2, shift2 = _bn_affine(st2, n * hwo, p['bn2_g'], p['bn2_b'])

    # Stage 3: BN2 affine + ReLU + conv3 + BN3 partial stats.
    y3, st3 = _call_conv3(y2, scale2.reshape(1, 1, dc), shift2.reshape(1, 1, dc),
                          w3, ts)
    scale3, shift3 = _bn_affine(st3, n * hwo, p['bn3_g'], p['bn3_b'])

    # Stage 4: BN3 affine + residual add + ReLU.
    out = _call_finalize(y3, x_flat, scale3.reshape(1, 1, cout),
                         shift3.reshape(1, 1, cout), ts_fin)
    return jnp.transpose(out.reshape(n, ho, wo, cout),
                         (0, 3, 1, 2)).astype(jnp.float32)              # -> NCHW f32


# --------------------------------------------------------------------------
# Parameter construction (PyTorch-layout weights + matmul-form derivatives)
# --------------------------------------------------------------------------
def init_params(key, inplanes, planes, base_width, cardinality):
    D = int(math.floor(planes * (base_width / 64)))
    C = cardinality
    DC = D * C
    half = int(DC * 0.5)
    cout = planes * 4
    ks = jax.random.split(key, 11)

    w1 = jax.random.normal(ks[0], (DC, inplanes), jnp.float32) * 0.05     # [out, in]
    w2 = jax.random.normal(ks[1], (DC, D, 3, 3), jnp.float32) * 0.05      # [out, in/g, kh, kw]
    w3 = jax.random.normal(ks[2], (cout, DC), jnp.float32) * 0.05         # [out, in]

    in_g = 1.0 + 0.1 * jax.random.normal(ks[3], (half,), jnp.float32)
    in_b = 0.1 * jax.random.normal(ks[4], (half,), jnp.float32)
    bn1_g = 1.0 + 0.1 * jax.random.normal(ks[5], (DC - half,), jnp.float32)
    bn1_b = 0.1 * jax.random.normal(ks[6], (DC - half,), jnp.float32)
    bn2_g = 1.0 + 0.1 * jax.random.normal(ks[7], (DC,), jnp.float32)
    bn2_b = 0.1 * jax.random.normal(ks[8], (DC,), jnp.float32)
    bn3_g = 1.0 + 0.1 * jax.random.normal(ks[9], (cout,), jnp.float32)
    bn3_b = 0.1 * jax.random.normal(ks[10], (cout,), jnp.float32)

    w1_io = w1.T                                                          # (in, out)
    w3_io = w3.T                                                          # (in, out)

    # Grouped 3x3 conv -> one (9*DC, DC) block-diagonal matrix, rows ordered
    # tap-major then input channel (matches the im2col patch concat order).
    # TODO(synk): dense per-group packing for large cardinality (see header).
    w2_np = np.asarray(w2)
    w2_big = np.zeros((9, DC, DC), np.float32)
    for kh in range(3):
        for kw in range(3):
            k = kh * 3 + kw
            for g in range(C):
                blk = w2_np[g * D:(g + 1) * D, :, kh, kw]                 # (D_out, D_in)
                w2_big[k, g * D:(g + 1) * D, g * D:(g + 1) * D] = blk.T
    w2_big = jnp.asarray(w2_big.reshape(9 * DC, DC))

    return dict(w1=w1, w2=w2, w3=w3, w1_io=w1_io, w2_big=w2_big, w3_io=w3_io,
                in_g=in_g, in_b=in_b, bn1_g=bn1_g, bn1_b=bn1_b,
                bn2_g=bn2_g, bn2_b=bn2_b, bn3_g=bn3_g, bn3_b=bn3_b,
                half=half, D=D, C=C)


# --------------------------------------------------------------------------
# Pure-JAX reference (same semantics, mirroring the kernel's precision policy:
# bf16 MXU operands, f32 accumulation, f32 norm math, norm statistics from the
# f32 conv outputs, affines applied to the bf16-stored activations, bf16
# residual).
# --------------------------------------------------------------------------
def reference_forward(x_nchw, p, *, half, stride=1):
    dn = ('NHWC', 'HWIO', 'NHWC')
    f32 = jnp.float32
    q = lambda a: a.astype(jnp.bfloat16)
    rq = lambda a: a.astype(jnp.bfloat16).astype(f32)   # bf16 activation-storage mirror
    x = jnp.transpose(x_nchw, (0, 2, 3, 1))

    w1_hwio = jnp.transpose(p['w1'][:, :, None, None], (2, 3, 1, 0))
    y = lax.conv_general_dilated(q(x), q(w1_hwio), (1, 1), 'VALID',
                                 dimension_numbers=dn, preferred_element_type=f32)
    y_in, y_bn = y[..., :half], y[..., half:]
    mu = jnp.mean(y_in, axis=(1, 2), keepdims=True)
    var = jnp.mean((y_in - mu) ** 2, axis=(1, 2), keepdims=True)
    y_in = (rq(y_in) - mu) * lax.rsqrt(var + EPS) * p['in_g'] + p['in_b']
    mu = jnp.mean(y_bn, axis=(0, 1, 2), keepdims=True)
    var = jnp.mean((y_bn - mu) ** 2, axis=(0, 1, 2), keepdims=True)
    y_bn = (rq(y_bn) - mu) * lax.rsqrt(var + EPS) * p['bn1_g'] + p['bn1_b']
    y = jnp.maximum(jnp.concatenate([y_in, y_bn], -1), 0.0)

    w2_hwio = jnp.transpose(p['w2'], (2, 3, 1, 0))
    y = lax.conv_general_dilated(q(y), q(w2_hwio), (stride, stride), ((1, 1), (1, 1)),
                                 dimension_numbers=dn, feature_group_count=p['C'],
                                 preferred_element_type=f32)
    mu = jnp.mean(y, axis=(0, 1, 2), keepdims=True)
    var = jnp.mean((y - mu) ** 2, axis=(0, 1, 2), keepdims=True)
    y = jnp.maximum((rq(y) - mu) * lax.rsqrt(var + EPS) * p['bn2_g'] + p['bn2_b'], 0.0)

    w3_hwio = jnp.transpose(p['w3'][:, :, None, None], (2, 3, 1, 0))
    y = lax.conv_general_dilated(q(y), q(w3_hwio), (1, 1), 'VALID',
                                 dimension_numbers=dn, preferred_element_type=f32)
    mu = jnp.mean(y, axis=(0, 1, 2), keepdims=True)
    var = jnp.mean((y - mu) ** 2, axis=(0, 1, 2), keepdims=True)
    y = (rq(y) - mu) * lax.rsqrt(var + EPS) * p['bn3_g'] + p['bn3_b']
    y = jnp.maximum(y + rq(x), 0.0)                      # bf16 residual (kernel policy)
    return jnp.transpose(y, (0, 3, 1, 2))


if __name__ == "__main__":
    # planes=32, base_width=64, cardinality=4 -> D=32, DC=128, half=64,
    # planes*4 = 128; inplanes=128 so identity residual (downsample=None).
    # DC / cout = 128 keeps every store lane-dense.
    N, planes, base_width, cardinality, stride = 2, 32, 64, 4, 1
    inplanes = planes * 4
    H = W = 16

    key = jax.random.PRNGKey(0)
    kx, kp = jax.random.split(key)
    x = jax.random.normal(kx, (N, inplanes, H, W), jnp.float32)
    params = init_params(kp, inplanes, planes, base_width, cardinality)
    half = params['half']

    # spatial_tile=128 -> 2 spatial tiles per sample in kernels A/C: exercises
    # the cross-tile stats accumulation path (real shapes auto-pick 512-1024).
    fwd = jax.jit(functools.partial(bottleneck_ibn_forward, half=half,
                                    stride=stride, spatial_tile=128))
    out = jax.block_until_ready(fwd(x, params))

    ref = jax.block_until_ready(reference_forward(x, params, half=half, stride=stride))
    out_np, ref_np = np.asarray(out), np.asarray(ref)
    # Remaining kernel-vs-reference differences: MXU accumulation order,
    # E[x^2]-E[x]^2 vs two-pass variance, and the final bf16 output store.
    np.testing.assert_allclose(out_np, ref_np, rtol=2e-2, atol=2e-2)
    assert float(np.mean(np.abs(out_np - ref_np))) < 1e-2

    print("KERNEL_OK")
</pallas_src>

<mosaic_0001>
module attributes {stable_mosaic.version = 11 : i64} {
  func.func @_conv1_stats_kernel(%arg0: i32, %arg1: i32, %arg2: memref<1x128x128xbf16, #tpu.memory_space<vmem>>, %arg3: memref<128x128xbf16, #tpu.memory_space<vmem>>, %arg4: memref<1x128x128xbf16, #tpu.memory_space<vmem>>, %arg5: memref<1x2x128xf32, #tpu.memory_space<vmem>>, %arg6: memref<2x128xf32, #tpu.memory_space<vmem>>) attributes {dimension_semantics = [#tpu.dimension_semantics<parallel>, #tpu.dimension_semantics<arbitrary>], iteration_bounds = array<i64: 2, 2>, scalar_prefetch = 0 : i64, scratch_operands = 1 : i64, tpu.core_type = #tpu.core_type<tc>, window_params = [{transform_indices = @transform_0, window_bounds = array<i64: 1, 128, 128>}, {pipeline_mode = #tpu.pipeline_mode<synchronous>, transform_indices = @transform_1, window_bounds = array<i64: 128, 128>}, {transform_indices = @transform_2, window_bounds = array<i64: 1, 128, 128>}, {transform_indices = @transform_3, window_bounds = array<i64: 1, 2, 128>}]} {
    %c0 = arith.constant 0 : index
    %c0_0 = arith.constant 0 : index
    %c0_1 = arith.constant 0 : index
    %0 = vector.load %arg2[%c0, %c0_0, %c0_1] : memref<1x128x128xbf16, #tpu.memory_space<vmem>>, vector<1x128x128xbf16>
    %1 = vector.shape_cast %0 : vector<1x128x128xbf16> to vector<128x128xbf16>
    %c0_2 = arith.constant 0 : index
    %c0_3 = arith.constant 0 : index
    %2 = vector.load %arg3[%c0_2, %c0_3] : memref<128x128xbf16, #tpu.memory_space<vmem>>, vector<128x128xbf16>
    %cst = arith.constant dense<0.000000e+00> : vector<128x128xf32>
    %3 = tpu.matmul %1, %2, %cst {dimension_numbers = #tpu.dot_dimension_numbers<[1], [0], [0], [1], [0, 0, 1, 1], [], []>} : vector<128x128xbf16>, vector<128x128xbf16>, vector<128x128xf32> -> vector<128x128xf32>
    %4 = arith.truncf %3 : vector<128x128xf32> to vector<128x128xbf16>
    %c0_4 = arith.constant 0 : index
    %c0_5 = arith.constant 0 : index
    %c0_6 = arith.constant 0 : index
    %5 = vector.load %arg4[%c0_4, %c0_5, %c0_6] : memref<1x128x128xbf16, #tpu.memory_space<vmem>>, vector<1x128x128xbf16>
    %6 = vector.shape_cast %5 : vector<1x128x128xbf16> to vector<128x128xbf16>
    %7 = vector.shape_cast %4 : vector<128x128xbf16> to vector<1x128x128xbf16>
    tpu.vector_store %arg4[%c0_4, %c0_5, %c0_6], %7 {strides = array<i32>} : memref<1x128x128xbf16, #tpu.memory_space<vmem>>, vector<1x128x128xbf16>,
    %c0_i32 = arith.constant 0 : i32
    %8 = arith.cmpi eq, %arg1, %c0_i32 : i32
    %9 = arith.extui %8 : i1 to i32
    %c0_i32_7 = arith.constant 0 : i32
    %10 = arith.cmpi ne, %9, %c0_i32_7 : i32
    scf.if %10 {
      %cst_18 = arith.constant 0.000000e+00 : f32
      %25 = vector.broadcast %cst_18 : f32 to vector<2x128xf32>
      %c0_19 = arith.constant 0 : index
      %c0_20 = arith.constant 0 : index
      %26 = vector.load %arg6[%c0_19, %c0_20] : memref<2x128xf32, #tpu.memory_space<vmem>>, vector<2x128xf32>
      tpu.vector_store %arg6[%c0_19, %c0_20], %25 {strides = array<i32>} : memref<2x128xf32, #tpu.memory_space<vmem>>, vector<2x128xf32>,
    } else {
    }
    %c0_8 = arith.constant 0 : index
    %c0_9 = arith.constant 0 : index
    %11 = vector.load %arg6[%c0_8, %c0_9] : memref<2x128xf32, #tpu.memory_space<vmem>>, vector<1x128xf32>
    %cst_10 = arith.constant dense<0.000000e+00> : vector<128xf32>
    %12 = vector.multi_reduction <add>, %3, %cst_10 [0] : vector<128x128xf32> to vector<128xf32>
    %13 = vector.shape_cast %12 : vector<128xf32> to vector<1x128xf32>
    %14 = arith.addf %11, %13 : vector<1x128xf32>
    %c0_11 = arith.constant 0 : index
    %c0_12 = arith.constant 0 : index
    %15 = vector.load %arg6[%c0_11, %c0_12] : memref<2x128xf32, #tpu.memory_space<vmem>>, vector<1x128xf32>
    tpu.vector_store %arg6[%c0_11, %c0_12], %14 {strides = array<i32>} : memref<2x128xf32, #tpu.memory_space<vmem>>, vector<1x128xf32>,
    %c1 = arith.constant 1 : index
    %c0_13 = arith.constant 0 : index
    %16 = vector.load %arg6[%c1, %c0_13] : memref<2x128xf32, #tpu.memory_space<vmem>>, vector<1x128xf32>
    %17 = arith.mulf %3, %3 : vector<128x128xf32>
    %cst_14 = arith.constant dense<0.000000e+00> : vector<128xf32>
    %18 = vector.multi_reduction <add>, %17, %cst_14 [0] : vector<128x128xf32> to vector<128xf32>
    %19 = vector.shape_cast %18 : vector<128xf32> to vector<1x128xf32>
    %20 = arith.addf %16, %19 : vector<1x128xf32>
    %c1_15 = arith.constant 1 : index
    %c0_16 = arith.constant 0 : index
    %21 = vector.load %arg6[%c1_15, %c0_16] : memref<2x128xf32, #tpu.memory_space<vmem>>, vector<1x128xf32>
    tpu.vector_store %arg6[%c1_15, %c0_16], %20 {strides = array<i32>} : memref<2x128xf32, #tpu.memory_space<vmem>>, vector<1x128xf32>,
    %c1_i32 = arith.constant 1 : i32
    %22 = arith.cmpi eq, %arg1, %c1_i32 : i32
    %23 = arith.extui %22 : i1 to i32
    %c0_i32_17 = arith.constant 0 : i32
    %24 = arith.cmpi ne, %23, %c0_i32_17 : i32
    scf.if %24 {
      %c0_18 = arith.constant 0 : index
      %c0_19 = arith.constant 0 : index
      %25 = vector.load %arg6[%c0_18, %c0_19] : memref<2x128xf32, #tpu.memory_space<vmem>>, vector<2x128xf32>
      %c0_20 = arith.constant 0 : index
      %c0_21 = arith.constant 0 : index
      %c0_22 = arith.constant 0 : index
      %26 = vector.load %arg5[%c0_20, %c0_21, %c0_22] : memref<1x2x128xf32, #tpu.memory_space<vmem>>, vector<1x2x128xf32>
      %27 = vector.shape_cast %26 : vector<1x2x128xf32> to vector<2x128xf32>
      %28 = vector.shape_cast %25 : vector<2x128xf32> to vector<1x2x128xf32>
      tpu.vector_store %arg5[%c0_20, %c0_21, %c0_22], %28 {strides = array<i32>} : memref<1x2x128xf32, #tpu.memory_space<vmem>>, vector<1x2x128xf32>,
    } else {
    }
    return
  }
  func.func @transform_0(%arg0: i32, %arg1: i32) -> (i32, i32, i32) {
    %c0_i32 = arith.constant 0 : i32
    %c0_i32_0 = arith.constant 0 : i32
    return %arg0, %arg1, %c0_i32 : i32, i32, i32
  }
  func.func @transform_1(%arg0: i32, %arg1: i32) -> (i32, i32) {
    %c0_i32 = arith.constant 0 : i32
    %c0_i32_0 = arith.constant 0 : i32
    %c0_i32_1 = arith.constant 0 : i32
    return %c0_i32, %c0_i32_0 : i32, i32
  }
  func.func @transform_2(%arg0: i32, %arg1: i32) -> (i32, i32, i32) {
    %c0_i32 = arith.constant 0 : i32
    %c0_i32_0 = arith.constant 0 : i32
    return %arg0, %arg1, %c0_i32 : i32, i32, i32
  }
  func.func @transform_3(%arg0: i32, %arg1: i32) -> (i32, i32, i32) {
    %c0_i32 = arith.constant 0 : i32
    %c0_i32_0 = arith.constant 0 : i32
    %c0_i32_1 = arith.constant 0 : i32
    return %arg0, %c0_i32, %c0_i32_0 : i32, i32, i32
  }
}

module attributes {stable_mosaic.version = 11 : i64} {
  func.func @_norm1_conv2_stats_kernel(%arg0: i32, %arg1: memref<1x16x16x128xbf16, #tpu.memory_space<vmem>>, %arg2: memref<1x1x128xf32, #tpu.memory_space<vmem>>, %arg3: memref<1x1x128xf32, #tpu.memory_space<vmem>>, %arg4: memref<1152x128xbf16, #tpu.memory_space<vmem>>, %arg5: memref<1x256x128xbf16, #tpu.memory_space<vmem>>, %arg6: memref<1x2x128xf32, #tpu.memory_space<vmem>>, %arg7: memref<18x24x128xbf16, #tpu.memory_space<vmem>>) attributes {dimension_semantics = [#tpu.dimension_semantics<parallel>], iteration_bounds = array<i64: 2>, scalar_prefetch = 0 : i64, scratch_operands = 1 : i64, tpu.core_type = #tpu.core_type<tc>, window_params = [{transform_indices = @transform_0, window_bounds = array<i64: 1, 16, 16, 128>}, {transform_indices = @transform_1, window_bounds = array<i64: 1, 1, 128>}, {transform_indices = @transform_2, window_bounds = array<i64: 1, 1, 128>}, {pipeline_mode = #tpu.pipeline_mode<synchronous>, transform_indices = @transform_3, window_bounds = array<i64: 1152, 128>}, {transform_indices = @transform_4, window_bounds = array<i64: 1, 256, 128>}, {transform_indices = @transform_5, window_bounds = array<i64: 1, 2, 128>}]} {
    %cst = arith.constant 0.000000e+00 : bf16
    %0 = vector.broadcast %cst : bf16 to vector<1x24x128xbf16>
    %cst_0 = arith.constant 0.000000e+00 : bf16
    %1 = vector.broadcast %cst_0 : bf16 to vector<16x1x128xbf16>
    %c0 = arith.constant 0 : index
    %c0_1 = arith.constant 0 : index
    %c0_2 = arith.constant 0 : index
    %2 = vector.load %arg7[%c0, %c0_1, %c0_2] : memref<18x24x128xbf16, #tpu.memory_space<vmem>>, vector<1x24x128xbf16>
    tpu.vector_store %arg7[%c0, %c0_1, %c0_2], %0 {strides = array<i32>} : memref<18x24x128xbf16, #tpu.memory_space<vmem>>, vector<1x24x128xbf16>,
    %c17 = arith.constant 17 : index
    %c0_3 = arith.constant 0 : index
    %c0_4 = arith.constant 0 : index
    %3 = vector.load %arg7[%c17, %c0_3, %c0_4] : memref<18x24x128xbf16, #tpu.memory_space<vmem>>, vector<1x24x128xbf16>
    tpu.vector_store %arg7[%c17, %c0_3, %c0_4], %0 {strides = array<i32>} : memref<18x24x128xbf16, #tpu.memory_space<vmem>>, vector<1x24x128xbf16>,
    %c1 = arith.constant 1 : index
    %c0_5 = arith.constant 0 : index
    %c0_6 = arith.constant 0 : index
    %4 = vector.load %arg7[%c1, %c0_5, %c0_6] : memref<18x24x128xbf16, #tpu.memory_space<vmem>>, vector<16x1x128xbf16>
    tpu.vector_store %arg7[%c1, %c0_5, %c0_6], %1 {strides = array<i32>} : memref<18x24x128xbf16, #tpu.memory_space<vmem>>, vector<16x1x128xbf16>,
    %c1_7 = arith.constant 1 : index
    %c17_8 = arith.constant 17 : index
    %c0_9 = arith.constant 0 : index
    %5 = vector.load %arg7[%c1_7, %c17_8, %c0_9] : memref<18x24x128xbf16, #tpu.memory_space<vmem>>, vector<16x1x128xbf16>
    tpu.vector_store %arg7[%c1_7, %c17_8, %c0_9], %1 {strides = array<i32>} : memref<18x24x128xbf16, #tpu.memory_space<vmem>>, vector<16x1x128xbf16>,
    %c0_10 = arith.constant 0 : index
    %c0_11 = arith.constant 0 : index
    %c0_12 = arith.constant 0 : index
    %c0_13 = arith.constant 0 : index
    %6 = vector.load %arg1[%c0_10, %c0_11, %c0_12, %c0_13] : memref<1x16x16x128xbf16, #tpu.memory_space<vmem>>, vector<1x16x16x128xbf16>
    %7 = vector.shape_cast %6 : vector<1x16x16x128xbf16> to vector<16x16x128xbf16>
    %8 = arith.extf %7 : vector<16x16x128xbf16> to vector<16x16x128xf32>
    %c0_14 = arith.constant 0 : index
    %c0_15 = arith.constant 0 : index
    %c0_16 = arith.constant 0 : index
    %9 = vector.load %arg2[%c0_14, %c0_15, %c0_16] : memref<1x1x128xf32, #tpu.memory_space<vmem>>, vector<1x1x128xf32>
    %10 = vector.shape_cast %9 : vector<1x1x128xf32> to vector<1x128xf32>
    %11 = vector.shape_cast %10 : vector<1x128xf32> to vector<1x1x128xf32>
    %12 = vector.broadcast %11 : vector<1x1x128xf32> to vector<16x16x128xf32>
    %13 = arith.mulf %8, %12 : vector<16x16x128xf32>
    %c0_17 = arith.constant 0 : index
    %c0_18 = arith.constant 0 : index
    %c0_19 = arith.constant 0 : index
    %14 = vector.load %arg3[%c0_17, %c0_18, %c0_19] : memref<1x1x128xf32, #tpu.memory_space<vmem>>, vector<1x1x128xf32>
    %15 = vector.shape_cast %14 : vector<1x1x128xf32> to vector<1x128xf32>
    %16 = vector.shape_cast %15 : vector<1x128xf32> to vector<1x1x128xf32>
    %17 = vector.broadcast %16 : vector<1x1x128xf32> to vector<16x16x128xf32>
    %18 = arith.addf %13, %17 : vector<16x16x128xf32>
    %cst_20 = arith.constant 0.000000e+00 : f32
    %19 = vector.broadcast %cst_20 : f32 to vector<16x16x128xf32>
    %20 = arith.maximumf %18, %19 : vector<16x16x128xf32>
    %21 = arith.truncf %20 : vector<16x16x128xf32> to vector<16x16x128xbf16>
    %c1_21 = arith.constant 1 : index
    %c1_22 = arith.constant 1 : index
    %c0_23 = arith.constant 0 : index
    %22 = vector.load %arg7[%c1_21, %c1_22, %c0_23] : memref<18x24x128xbf16, #tpu.memory_space<vmem>>, vector<16x16x128xbf16>
    tpu.vector_store %arg7[%c1_21, %c1_22, %c0_23], %21 {strides = array<i32>} : memref<18x24x128xbf16, #tpu.memory_space<vmem>>, vector<16x16x128xbf16>,
    %c0_24 = arith.constant 0 : index
    %c0_25 = arith.constant 0 : index
    %c0_26 = arith.constant 0 : index
    %23 = vector.load %arg7[%c0_24, %c0_25, %c0_26] : memref<18x24x128xbf16, #tpu.memory_space<vmem>>, vector<18x24x128xbf16>
    %24 = vector.extract_strided_slice %23 {offsets = [0, 0, 0], sizes = [16, 16, 128], strides = [1, 1, 1]} : vector<18x24x128xbf16> to vector<16x16x128xbf16>
    %25 = vector.shape_cast %24 : vector<16x16x128xbf16> to vector<256x128xbf16>
    %26 = vector.extract_strided_slice %23 {offsets = [0, 1, 0], sizes = [16, 16, 128], strides = [1, 1, 1]} : vector<18x24x128xbf16> to vector<16x16x128xbf16>
    %27 = vector.shape_cast %26 : vector<16x16x128xbf16> to vector<256x128xbf16>
    %28 = vector.extract_strided_slice %23 {offsets = [0, 2, 0], sizes = [16, 16, 128], strides = [1, 1, 1]} : vector<18x24x128xbf16> to vector<16x16x128xbf16>
    %29 = vector.shape_cast %28 : vector<16x16x128xbf16> to vector<256x128xbf16>
    %30 = vector.extract_strided_slice %23 {offsets = [1, 0, 0], sizes = [16, 16, 128], strides = [1, 1, 1]} : vector<18x24x128xbf16> to vector<16x16x128xbf16>
    %31 = vector.shape_cast %30 : vector<16x16x128xbf16> to vector<256x128xbf16>
    %32 = vector.extract_strided_slice %23 {offsets = [1, 1, 0], sizes = [16, 16, 128], strides = [1, 1, 1]} : vector<18x24x128xbf16> to vector<16x16x128xbf16>
    %33 = vector.shape_cast %32 : vector<16x16x128xbf16> to vector<256x128xbf16>
    %34 = vector.extract_strided_slice %23 {offsets = [1, 2, 0], sizes = [16, 16, 128], strides = [1, 1, 1]} : vector<18x24x128xbf16> to vector<16x16x128xbf16>
    %35 = vector.shape_cast %34 : vector<16x16x128xbf16> to vector<256x128xbf16>
    %36 = vector.extract_strided_slice %23 {offsets = [2, 0, 0], sizes = [16, 16, 128], strides = [1, 1, 1]} : vector<18x24x128xbf16> to vector<16x16x128xbf16>
    %37 = vector.shape_cast %36 : vector<16x16x128xbf16> to vector<256x128xbf16>
    %38 = vector.extract_strided_slice %23 {offsets = [2, 1, 0], sizes = [16, 16, 128], strides = [1, 1, 1]} : vector<18x24x128xbf16> to vector<16x16x128xbf16>
    %39 = vector.shape_cast %38 : vector<16x16x128xbf16> to vector<256x128xbf16>
    %40 = vector.extract_strided_slice %23 {offsets = [2, 2, 0], sizes = [16, 16, 128], strides = [1, 1, 1]} : vector<18x24x128xbf16> to vector<16x16x128xbf16>
    %41 = vector.shape_cast %40 : vector<16x16x128xbf16> to vector<256x128xbf16>
    %42 = tpu.concatenate %25, %27, %29, %31, %33, %35, %37, %39, %41 in 1 : vector<256x128xbf16>, vector<256x128xbf16>, vector<256x128xbf16>, vector<256x128xbf16>, vector<256x128xbf16>, vector<256x128xbf16>, vector<256x128xbf16>, vector<256x128xbf16>, vector<256x128xbf16> -> vector<256x1152xbf16>
    %c0_27 = arith.constant 0 : index
    %c0_28 = arith.constant 0 : index
    %43 = vector.load %arg4[%c0_27, %c0_28] : memref<1152x128xbf16, #tpu.memory_space<vmem>>, vector<1152x128xbf16>
    %cst_29 = arith.constant dense<0.000000e+00> : vector<256x128xf32>
    %44 = tpu.matmul %42, %43, %cst_29 {dimension_numbers = #tpu.dot_dimension_numbers<[1], [0], [0], [1], [0, 0, 1, 1], [], []>} : vector<256x1152xbf16>, vector<1152x128xbf16>, vector<256x128xf32> -> vector<256x128xf32>
    %45 = arith.truncf %44 : vector<256x128xf32> to vector<256x128xbf16>
    %c0_30 = arith.constant 0 : index
    %c0_31 = arith.constant 0 : index
    %c0_32 = arith.constant 0 : index
    %46 = vector.load %arg5[%c0_30, %c0_31, %c0_32] : memref<1x256x128xbf16, #tpu.memory_space<vmem>>, vector<1x256x128xbf16>
    %47 = vector.shape_cast %46 : vector<1x256x128xbf16> to vector<256x128xbf16>
    %48 = vector.shape_cast %45 : vector<256x128xbf16> to vector<1x256x128xbf16>
    tpu.vector_store %arg5[%c0_30, %c0_31, %c0_32], %48 {strides = array<i32>} : memref<1x256x128xbf16, #tpu.memory_space<vmem>>, vector<1x256x128xbf16>,
    %cst_33 = arith.constant dense<0.000000e+00> : vector<128xf32>
    %49 = vector.multi_reduction <add>, %44, %cst_33 [0] : vector<256x128xf32> to vector<128xf32>
    %50 = vector.shape_cast %49 : vector<128xf32> to vector<1x128xf32>
    %c0_34 = arith.constant 0 : index
    %c0_35 = arith.constant 0 : index
    %c0_36 = arith.constant 0 : index
    %51 = vector.load %arg6[%c0_34, %c0_35, %c0_36] : memref<1x2x128xf32, #tpu.memory_space<vmem>>, vector<1x1x128xf32>
    %52 = vector.shape_cast %51 : vector<1x1x128xf32> to vector<1x128xf32>
    %53 = vector.shape_cast %50 : vector<1x128xf32> to vector<1x1x128xf32>
    tpu.vector_store %arg6[%c0_34, %c0_35, %c0_36], %53 {strides = array<i32>} : memref<1x2x128xf32, #tpu.memory_space<vmem>>, vector<1x1x128xf32>,
    %54 = arith.mulf %44, %44 : vector<256x128xf32>
    %cst_37 = arith.constant dense<0.000000e+00> : vector<128xf32>
    %55 = vector.multi_reduction <add>, %54, %cst_37 [0] : vector<256x128xf32> to vector<128xf32>
    %56 = vector.shape_cast %55 : vector<128xf32> to vector<1x128xf32>
    %c0_38 = arith.constant 0 : index
    %c1_39 = arith.constant 1 : index
    %c0_40 = arith.constant 0 : index
    %57 = vector.load %arg6[%c0_38, %c1_39, %c0_40] : memref<1x2x128xf32, #tpu.memory_space<vmem>>, vector<1x1x128xf32>
    %58 = vector.shape_cast %57 : vector<1x1x128xf32> to vector<1x128xf32>
    %59 = vector.shape_cast %56 : vector<1x128xf32> to vector<1x1x128xf32>
    tpu.vector_store %arg6[%c0_38, %c1_39, %c0_40], %59 {strides = array<i32>} : memref<1x2x128xf32, #tpu.memory_space<vmem>>, vector<1x1x128xf32>,
    return
  }
  func.func @transform_0(%arg0: i32) -> (i32, i32, i32, i32) {
    %c0_i32 = arith.constant 0 : i32
    %c0_i32_0 = arith.constant 0 : i32
    %c0_i32_1 = arith.constant 0 : i32
    %c0_i32_2 = arith.constant 0 : i32
    return %arg0, %c0_i32, %c0_i32_0, %c0_i32_1 : i32, i32, i32, i32
  }
  func.func @transform_1(%arg0: i32) -> (i32, i32, i32) {
    %c0_i32 = arith.constant 0 : i32
    %c0_i32_0 = arith.constant 0 : i32
    %c0_i32_1 = arith.constant 0 : i32
    return %arg0, %c0_i32, %c0_i32_0 : i32, i32, i32
  }
  func.func @transform_2(%arg0: i32) -> (i32, i32, i32) {
    %c0_i32 = arith.constant 0 : i32
    %c0_i32_0 = arith.constant 0 : i32
    %c0_i32_1 = arith.constant 0 : i32
    return %arg0, %c0_i32, %c0_i32_0 : i32, i32, i32
  }
  func.func @transform_3(%arg0: i32) -> (i32, i32) {
    %c0_i32 = arith.constant 0 : i32
    %c0_i32_0 = arith.constant 0 : i32
    %c0_i32_1 = arith.constant 0 : i32
    return %c0_i32, %c0_i32_0 : i32, i32
  }
  func.func @transform_4(%arg0: i32) -> (i32, i32, i32) {
    %c0_i32 = arith.constant 0 : i32
    %c0_i32_0 = arith.constant 0 : i32
    %c0_i32_1 = arith.constant 0 : i32
    return %arg0, %c0_i32, %c0_i32_0 : i32, i32, i32
  }
  func.func @transform_5(%arg0: i32) -> (i32, i32, i32) {
    %c0_i32 = arith.constant 0 : i32
    %c0_i32_0 = arith.constant 0 : i32
    %c0_i32_1 = arith.constant 0 : i32
    return %arg0, %c0_i32, %c0_i32_0 : i32, i32, i32
  }
}

module attributes {stable_mosaic.version = 11 : i64} {
  func.func @_norm3_add_relu_kernel(%arg0: i32, %arg1: i32, %arg2: memref<1x256x128xbf16, #tpu.memory_space<vmem>>, %arg3: memref<1x256x128xbf16, #tpu.memory_space<vmem>>, %arg4: memref<1x1x128xf32, #tpu.memory_space<vmem>>, %arg5: memref<1x1x128xf32, #tpu.memory_space<vmem>>, %arg6: memref<1x256x128xbf16, #tpu.memory_space<vmem>>) attributes {dimension_semantics = [#tpu.dimension_semantics<parallel>, #tpu.dimension_semantics<parallel>], iteration_bounds = array<i64: 2, 1>, scalar_prefetch = 0 : i64, scratch_operands = 0 : i64, tpu.core_type = #tpu.core_type<tc>, window_params = [{transform_indices = @transform_0, window_bounds = array<i64: 1, 256, 128>}, {transform_indices = @transform_1, window_bounds = array<i64: 1, 256, 128>}, {pipeline_mode = #tpu.pipeline_mode<synchronous>, transform_indices = @transform_2, window_bounds = array<i64: 1, 1, 128>}, {pipeline_mode = #tpu.pipeline_mode<synchronous>, transform_indices = @transform_3, window_bounds = array<i64: 1, 1, 128>}, {transform_indices = @transform_4, window_bounds = array<i64: 1, 256, 128>}]} {
    %c0 = arith.constant 0 : index
    %c0_0 = arith.constant 0 : index
    %c0_1 = arith.constant 0 : index
    %0 = vector.load %arg2[%c0, %c0_0, %c0_1] : memref<1x256x128xbf16, #tpu.memory_space<vmem>>, vector<1x256x128xbf16>
    %1 = vector.shape_cast %0 : vector<1x256x128xbf16> to vector<256x128xbf16>
    %2 = arith.extf %1 : vector<256x128xbf16> to vector<256x128xf32>
    %c0_2 = arith.constant 0 : index
    %c0_3 = arith.constant 0 : index
    %c0_4 = arith.constant 0 : index
    %3 = vector.load %arg4[%c0_2, %c0_3, %c0_4] : memref<1x1x128xf32, #tpu.memory_space<vmem>>, vector<1x1x128xf32>
    %4 = vector.shape_cast %3 : vector<1x1x128xf32> to vector<1x128xf32>
    %5 = vector.broadcast %4 : vector<1x128xf32> to vector<256x128xf32>
    %6 = arith.mulf %2, %5 : vector<256x128xf32>
    %c0_5 = arith.constant 0 : index
    %c0_6 = arith.constant 0 : index
    %c0_7 = arith.constant 0 : index
    %7 = vector.load %arg5[%c0_5, %c0_6, %c0_7] : memref<1x1x128xf32, #tpu.memory_space<vmem>>, vector<1x1x128xf32>
    %8 = vector.shape_cast %7 : vector<1x1x128xf32> to vector<1x128xf32>
    %9 = vector.broadcast %8 : vector<1x128xf32> to vector<256x128xf32>
    %10 = arith.addf %6, %9 : vector<256x128xf32>
    %c0_8 = arith.constant 0 : index
    %c0_9 = arith.constant 0 : index
    %c0_10 = arith.constant 0 : index
    %11 = vector.load %arg3[%c0_8, %c0_9, %c0_10] : memref<1x256x128xbf16, #tpu.memory_space<vmem>>, vector<1x256x128xbf16>
    %12 = vector.shape_cast %11 : vector<1x256x128xbf16> to vector<256x128xbf16>
    %13 = arith.extf %12 : vector<256x128xbf16> to vector<256x128xf32>
    %14 = arith.addf %10, %13 : vector<256x128xf32>
    %cst = arith.constant 0.000000e+00 : f32
    %15 = vector.broadcast %cst : f32 to vector<256x128xf32>
    %16 = arith.maximumf %14, %15 : vector<256x128xf32>
    %17 = arith.truncf %16 : vector<256x128xf32> to vector<256x128xbf16>
    %c0_11 = arith.constant 0 : index
    %c0_12 = arith.constant 0 : index
    %c0_13 = arith.constant 0 : index
    %18 = vector.load %arg6[%c0_11, %c0_12, %c0_13] : memref<1x256x128xbf16, #tpu.memory_space<vmem>>, vector<1x256x128xbf16>
    %19 = vector.shape_cast %18 : vector<1x256x128xbf16> to vector<256x128xbf16>
    %20 = vector.shape_cast %17 : vector<256x128xbf16> to vector<1x256x128xbf16>
    tpu.vector_store %arg6[%c0_11, %c0_12, %c0_13], %20 {strides = array<i32>} : memref<1x256x128xbf16, #tpu.memory_space<vmem>>, vector<1x256x128xbf16>,
    return
  }
  func.func @transform_0(%arg0: i32, %arg1: i32) -> (i32, i32, i32) {
    %c0_i32 = arith.constant 0 : i32
    %c0_i32_0 = arith.constant 0 : i32
    return %arg0, %arg1, %c0_i32 : i32, i32, i32
  }
  func.func @transform_1(%arg0: i32, %arg1: i32) -> (i32, i32, i32) {
    %c0_i32 = arith.constant 0 : i32
    %c0_i32_0 = arith.constant 0 : i32
    return %arg0, %arg1, %c0_i32 : i32, i32, i32
  }
  func.func @transform_2(%arg0: i32, %arg1: i32) -> (i32, i32, i32) {
    %c0_i32 = arith.constant 0 : i32
    %c0_i32_0 = arith.constant 0 : i32
    %c0_i32_1 = arith.constant 0 : i32
    %c0_i32_2 = arith.constant 0 : i32
    return %c0_i32, %c0_i32_0, %c0_i32_1 : i32, i32, i32
  }
  func.func @transform_3(%arg0: i32, %arg1: i32) -> (i32, i32, i32) {
    %c0_i32 = arith.constant 0 : i32
    %c0_i32_0 = arith.constant 0 : i32
    %c0_i32_1 = arith.constant 0 : i32
    %c0_i32_2 = arith.constant 0 : i32
    return %c0_i32, %c0_i32_0, %c0_i32_1 : i32, i32, i32
  }
  func.func @transform_4(%arg0: i32, %arg1: i32) -> (i32, i32, i32) {
    %c0_i32 = arith.constant 0 : i32
    %c0_i32_0 = arith.constant 0 : i32
    return %arg0, %arg1, %c0_i32 : i32, i32, i32
  }
}

module attributes {stable_mosaic.version = 11 : i64} {
  func.func @_norm2_conv3_stats_kernel(%arg0: i32, %arg1: i32, %arg2: memref<1x128x128xbf16, #tpu.memory_space<vmem>>, %arg3: memref<1x1x128xf32, #tpu.memory_space<vmem>>, %arg4: memref<1x1x128xf32, #tpu.memory_space<vmem>>, %arg5: memref<128x128xbf16, #tpu.memory_space<vmem>>, %arg6: memref<1x128x128xbf16, #tpu.memory_space<vmem>>, %arg7: memref<1x2x128xf32, #tpu.memory_space<vmem>>, %arg8: memref<2x128xf32, #tpu.memory_space<vmem>>) attributes {dimension_semantics = [#tpu.dimension_semantics<parallel>, #tpu.dimension_semantics<arbitrary>], iteration_bounds = array<i64: 2, 2>, scalar_prefetch = 0 : i64, scratch_operands = 1 : i64, tpu.core_type = #tpu.core_type<tc>, window_params = [{transform_indices = @transform_0, window_bounds = array<i64: 1, 128, 128>}, {pipeline_mode = #tpu.pipeline_mode<synchronous>, transform_indices = @transform_1, window_bounds = array<i64: 1, 1, 128>}, {pipeline_mode = #tpu.pipeline_mode<synchronous>, transform_indices = @transform_2, window_bounds = array<i64: 1, 1, 128>}, {pipeline_mode = #tpu.pipeline_mode<synchronous>, transform_indices = @transform_3, window_bounds = array<i64: 128, 128>}, {transform_indices = @transform_4, window_bounds = array<i64: 1, 128, 128>}, {transform_indices = @transform_5, window_bounds = array<i64: 1, 2, 128>}]} {
    %c0 = arith.constant 0 : index
    %c0_0 = arith.constant 0 : index
    %c0_1 = arith.constant 0 : index
    %0 = vector.load %arg2[%c0, %c0_0, %c0_1] : memref<1x128x128xbf16, #tpu.memory_space<vmem>>, vector<1x128x128xbf16>
    %1 = vector.shape_cast %0 : vector<1x128x128xbf16> to vector<128x128xbf16>
    %2 = arith.extf %1 : vector<128x128xbf16> to vector<128x128xf32>
    %c0_2 = arith.constant 0 : index
    %c0_3 = arith.constant 0 : index
    %c0_4 = arith.constant 0 : index
    %3 = vector.load %arg3[%c0_2, %c0_3, %c0_4] : memref<1x1x128xf32, #tpu.memory_space<vmem>>, vector<1x1x128xf32>
    %4 = vector.shape_cast %3 : vector<1x1x128xf32> to vector<1x128xf32>
    %5 = vector.broadcast %4 : vector<1x128xf32> to vector<128x128xf32>
    %6 = arith.mulf %2, %5 : vector<128x128xf32>
    %c0_5 = arith.constant 0 : index
    %c0_6 = arith.constant 0 : index
    %c0_7 = arith.constant 0 : index
    %7 = vector.load %arg4[%c0_5, %c0_6, %c0_7] : memref<1x1x128xf32, #tpu.memory_space<vmem>>, vector<1x1x128xf32>
    %8 = vector.shape_cast %7 : vector<1x1x128xf32> to vector<1x128xf32>
    %9 = vector.broadcast %8 : vector<1x128xf32> to vector<128x128xf32>
    %10 = arith.addf %6, %9 : vector<128x128xf32>
    %cst = arith.constant 0.000000e+00 : f32
    %11 = vector.broadcast %cst : f32 to vector<128x128xf32>
    %12 = arith.maximumf %10, %11 : vector<128x128xf32>
    %13 = arith.truncf %12 : vector<128x128xf32> to vector<128x128xbf16>
    %c0_8 = arith.constant 0 : index
    %c0_9 = arith.constant 0 : index
    %14 = vector.load %arg5[%c0_8, %c0_9] : memref<128x128xbf16, #tpu.memory_space<vmem>>, vector<128x128xbf16>
    %cst_10 = arith.constant dense<0.000000e+00> : vector<128x128xf32>
    %15 = tpu.matmul %13, %14, %cst_10 {dimension_numbers = #tpu.dot_dimension_numbers<[1], [0], [0], [1], [0, 0, 1, 1], [], []>} : vector<128x128xbf16>, vector<128x128xbf16>, vector<128x128xf32> -> vector<128x128xf32>
    %16 = arith.truncf %15 : vector<128x128xf32> to vector<128x128xbf16>
    %c0_11 = arith.constant 0 : index
    %c0_12 = arith.constant 0 : index
    %c0_13 = arith.constant 0 : index
    %17 = vector.load %arg6[%c0_11, %c0_12, %c0_13] : memref<1x128x128xbf16, #tpu.memory_space<vmem>>, vector<1x128x128xbf16>
    %18 = vector.shape_cast %17 : vector<1x128x128xbf16> to vector<128x128xbf16>
    %19 = vector.shape_cast %16 : vector<128x128xbf16> to vector<1x128x128xbf16>
    tpu.vector_store %arg6[%c0_11, %c0_12, %c0_13], %19 {strides = array<i32>} : memref<1x128x128xbf16, #tpu.memory_space<vmem>>, vector<1x128x128xbf16>,
    %c0_i32 = arith.constant 0 : i32
    %20 = arith.cmpi eq, %arg1, %c0_i32 : i32
    %21 = arith.extui %20 : i1 to i32
    %c0_i32_14 = arith.constant 0 : i32
    %22 = arith.cmpi ne, %21, %c0_i32_14 : i32
    scf.if %22 {
      %cst_25 = arith.constant 0.000000e+00 : f32
      %37 = vector.broadcast %cst_25 : f32 to vector<2x128xf32>
      %c0_26 = arith.constant 0 : index
      %c0_27 = arith.constant 0 : index
      %38 = vector.load %arg8[%c0_26, %c0_27] : memref<2x128xf32, #tpu.memory_space<vmem>>, vector<2x128xf32>
      tpu.vector_store %arg8[%c0_26, %c0_27], %37 {strides = array<i32>} : memref<2x128xf32, #tpu.memory_space<vmem>>, vector<2x128xf32>,
    } else {
    }
    %c0_15 = arith.constant 0 : index
    %c0_16 = arith.constant 0 : index
    %23 = vector.load %arg8[%c0_15, %c0_16] : memref<2x128xf32, #tpu.memory_space<vmem>>, vector<1x128xf32>
    %cst_17 = arith.constant dense<0.000000e+00> : vector<128xf32>
    %24 = vector.multi_reduction <add>, %15, %cst_17 [0] : vector<128x128xf32> to vector<128xf32>
    %25 = vector.shape_cast %24 : vector<128xf32> to vector<1x128xf32>
    %26 = arith.addf %23, %25 : vector<1x128xf32>
    %c0_18 = arith.constant 0 : index
    %c0_19 = arith.constant 0 : index
    %27 = vector.load %arg8[%c0_18, %c0_19] : memref<2x128xf32, #tpu.memory_space<vmem>>, vector<1x128xf32>
    tpu.vector_store %arg8[%c0_18, %c0_19], %26 {strides = array<i32>} : memref<2x128xf32, #tpu.memory_space<vmem>>, vector<1x128xf32>,
    %c1 = arith.constant 1 : index
    %c0_20 = arith.constant 0 : index
    %28 = vector.load %arg8[%c1, %c0_20] : memref<2x128xf32, #tpu.memory_space<vmem>>, vector<1x128xf32>
    %29 = arith.mulf %15, %15 : vector<128x128xf32>
    %cst_21 = arith.constant dense<0.000000e+00> : vector<128xf32>
    %30 = vector.multi_reduction <add>, %29, %cst_21 [0] : vector<128x128xf32> to vector<128xf32>
    %31 = vector.shape_cast %30 : vector<128xf32> to vector<1x128xf32>
    %32 = arith.addf %28, %31 : vector<1x128xf32>
    %c1_22 = arith.constant 1 : index
    %c0_23 = arith.constant 0 : index
    %33 = vector.load %arg8[%c1_22, %c0_23] : memref<2x128xf32, #tpu.memory_space<vmem>>, vector<1x128xf32>
    tpu.vector_store %arg8[%c1_22, %c0_23], %32 {strides = array<i32>} : memref<2x128xf32, #tpu.memory_space<vmem>>, vector<1x128xf32>,
    %c1_i32 = arith.constant 1 : i32
    %34 = arith.cmpi eq, %arg1, %c1_i32 : i32
    %35 = arith.extui %34 : i1 to i32
    %c0_i32_24 = arith.constant 0 : i32
    %36 = arith.cmpi ne, %35, %c0_i32_24 : i32
    scf.if %36 {
      %c0_25 = arith.constant 0 : index
      %c0_26 = arith.constant 0 : index
      %37 = vector.load %arg8[%c0_25, %c0_26] : memref<2x128xf32, #tpu.memory_space<vmem>>, vector<2x128xf32>
      %c0_27 = arith.constant 0 : index
      %c0_28 = arith.constant 0 : index
      %c0_29 = arith.constant 0 : index
      %38 = vector.load %arg7[%c0_27, %c0_28, %c0_29] : memref<1x2x128xf32, #tpu.memory_space<vmem>>, vector<1x2x128xf32>
      %39 = vector.shape_cast %38 : vector<1x2x128xf32> to vector<2x128xf32>
      %40 = vector.shape_cast %37 : vector<2x128xf32> to vector<1x2x128xf32>
      tpu.vector_store %arg7[%c0_27, %c0_28, %c0_29], %40 {strides = array<i32>} : memref<1x2x128xf32, #tpu.memory_space<vmem>>, vector<1x2x128xf32>,
    } else {
    }
    return
  }
  func.func @transform_0(%arg0: i32, %arg1: i32) -> (i32, i32, i32) {
    %c0_i32 = arith.constant 0 : i32
    %c0_i32_0 = arith.constant 0 : i32
    return %arg0, %arg1, %c0_i32 : i32, i32, i32
  }
  func.func @transform_1(%arg0: i32, %arg1: i32) -> (i32, i32, i32) {
    %c0_i32 = arith.constant 0 : i32
    %c0_i32_0 = arith.constant 0 : i32
    %c0_i32_1 = arith.constant 0 : i32
    %c0_i32_2 = arith.constant 0 : i32
    return %c0_i32, %c0_i32_0, %c0_i32_1 : i32, i32, i32
  }
  func.func @transform_2(%arg0: i32, %arg1: i32) -> (i32, i32, i32) {
    %c0_i32 = arith.constant 0 : i32
    %c0_i32_0 = arith.constant 0 : i32
    %c0_i32_1 = arith.constant 0 : i32
    %c0_i32_2 = arith.constant 0 : i32
    return %c0_i32, %c0_i32_0, %c0_i32_1 : i32, i32, i32
  }
  func.func @transform_3(%arg0: i32, %arg1: i32) -> (i32, i32) {
    %c0_i32 = arith.constant 0 : i32
    %c0_i32_0 = arith.constant 0 : i32
    %c0_i32_1 = arith.constant 0 : i32
    return %c0_i32, %c0_i32_0 : i32, i32
  }
  func.func @transform_4(%arg0: i32, %arg1: i32) -> (i32, i32, i32) {
    %c0_i32 = arith.constant 0 : i32
    %c0_i32_0 = arith.constant 0 : i32
    return %arg0, %arg1, %c0_i32 : i32, i32, i32
  }
  func.func @transform_5(%arg0: i32, %arg1: i32) -> (i32, i32, i32) {
    %c0_i32 = arith.constant 0 : i32
    %c0_i32_0 = arith.constant 0 : i32
    %c0_i32_1 = arith.constant 0 : i32
    return %arg0, %c0_i32, %c0_i32_0 : i32, i32, i32
  }
}

</mosaic_0001>

<llo_original>
// kernel: bottleneck_ibn_forward.4
$region0: #{bottleneck_ibn_forward.4}
  #allocation0 [shape = 'u32[]', space=smem, size = 0x4, offset = 0x4, fixed_abs, tag = 'smem constant byte address 0x4 - core index']
  #allocation1 [shape = 'u32[72,128]{1,0:T(1,128)}', space=vmem, size = 0x9000, scoped, tag = 'internal scratch']
  #allocation2 [shape = 'f32[2,128]{1,0:T(2,128)}', space=vmem, size = 0x400, scoped, tag = 'scratch operand']
  %s0 = inlined_call_operand.vmem [shape: bf16[2,256,128], index: 0, kind: input, shape index: {}]
  %s1 = inlined_call_operand.vmem [shape: bf16[128,128], index: 1, kind: input, shape index: {}]
  %s2 = inlined_call_operand.vmem [shape: bf16[2,256,128], index: 2, kind: output, shape index: {0}]
  %s3 = inlined_call_operand.vmem [shape: f32[2,2,128], index: 3, kind: output, shape index: {1}]
  %4 = xla_tuple %s2, %s3
  %s5 = sld [smem:[#allocation0]]
  $region57: #{bottleneck_ibn_forward.4} parent=0
    _
  %s7 = ssub.s32 1, %s5
  %s8 = scalar_select 0, %s7, %s5
  loop: start=0, step=1, limit=6
  $region2: #{bottleneck_ibn_forward.4} parent=0 // loop_pre_header
    _
  $region3: #{bottleneck_ibn_forward.4} parent=0 // loop_header
    %s10 = sphi 0, %s14
    %p11 = scmp.ge.s32.totalorder %s10, 6
    %s17 = sphi 0, %s29
    %s18 = sphi 0, %s25
    %s19 = sphi 0, %s17
    %s20 = sphi 0, %s18
    %s21 = sphi 0, %s19
    %s22 = sphi 0, %s20
    %s34 = sphi 0, %s36
    %s37 = sphi 0, %s34
    %s38 = sphi 0, %s37
    %s54 = sphi 0, %s38
    %s58 = sphi 0, %s58
    %s60 = sphi 0, %s58
    %s61 = sphi 0, %s60
    %s75 = sphi 0, %s61
    %s83 = sphi 0, %s85
    %s86 = sphi 0, %s83
    %s87 = sphi 0, %s86
    %s103 = sphi 0, %s87
    %s109 = sphi 0, %s111
    %s112 = sphi 0, %s109
    %s113 = sphi 0, %s112
    %s129 = sphi 0, %s113
  $region4: #{bottleneck_ibn_forward.4} parent=0 // loop_header_branch
    %13 = sbr.rel (%p11) target = $region8
  $region5: #{bottleneck_ibn_forward.4} parent=0 // loop_body
    %s15 = ssub.s32 %s10, 1
    %s16 = ssub.s32 %s10, 2
    %s23 = sadd.s32 1, %s18
    %p24 = scmp.ge.s32.totalorder %s23, 2
    %s25 = scalar_select %p24, 0, %s23
    %s26 = sadd.s32 1, %s17
    %s27 = scalar_select %p24, %s26, %s17
    %p28 = scmp.ge.s32.totalorder %s27, 2
    %s29 = scalar_select %p28, 0, %s27
    %s30 = ssub.s32 %s17, %s29
    %s31 = ssub.s32 %s18, %s25
    %s32 = sor.u32 %s30, %s31
    %p33 = scmp.eq.s32.totalorder %s32, 0
    %s35 = sadd.s32 %s34, 1
    %s36 = scalar_select %p33, %s34, %s35
    %p39 = pneg %p33
    %p40 = scmp.eq.s32.totalorder %s10, 3
    %p41 = por %p39, %p40
    %p42 = scmp.ne.s32.totalorder %s34, %s37
    %p43 = scmp.eq.s32.totalorder %s10, 0
    %p44 = por %p42, %p43
    %p45 = scmp.ne.s32.totalorder %s34, %s37
    %p46 = scmp.eq.s32.totalorder %s15, 3
    %p47 = por %p45, %p46
    %p48 = scmp.ne.s32.totalorder %s37, %s38
    %p49 = scmp.eq.s32.totalorder %s15, 0
    %p50 = por %p48, %p49
    %p51 = scmp.ne.s32.totalorder %s37, %s38
    %p52 = scmp.eq.s32.totalorder %s16, 3
    %p53 = por %p51, %p52
    %p55 = scmp.ne.s32.totalorder %s38, %s54
    %p56 = scmp.eq.s32.totalorder %s16, 0
    %p57 = por %p55, %p56
    %s59 = sadd.s32 %s58, 1
    %p62 = scmp.eq.s32.totalorder %s10, 3
    %p63 = scmp.ne.s32.totalorder %s58, %s60
    %p64 = scmp.eq.s32.totalorder %s10, 0
    %p65 = por %p63, %p64
    %p66 = scmp.ne.s32.totalorder %s58, %s60
    %p67 = scmp.eq.s32.totalorder %s15, 3
    %p68 = por %p66, %p67
    %p69 = scmp.ne.s32.totalorder %s60, %s61
    %p70 = scmp.eq.s32.totalorder %s15, 0
    %p71 = por %p69, %p70
    %p72 = scmp.ne.s32.totalorder %s60, %s61
    %p73 = scmp.eq.s32.totalorder %s16, 3
    %p74 = por %p72, %p73
    %p76 = scmp.ne.s32.totalorder %s61, %s75
    %p77 = scmp.eq.s32.totalorder %s16, 0
    %p78 = por %p76, %p77
    %s79 = ssub.s32 %s17, %s29
    %s80 = ssub.s32 %s18, %s25
    %s81 = sor.u32 %s79, %s80
    %p82 = scmp.eq.s32.totalorder %s81, 0
    %s84 = sadd.s32 %s83, 1
    %s85 = scalar_select %p82, %s83, %s84
    %p88 = pneg %p82
    %p89 = scmp.eq.s32.totalorder %s10, 3
    %p90 = por %p88, %p89
    %p91 = scmp.ne.s32.totalorder %s83, %s86
    %p92 = scmp.eq.s32.totalorder %s10, 0
    %p93 = por %p91, %p92
    %p94 = scmp.ne.s32.totalorder %s83, %s86
    %p95 = scmp.eq.s32.totalorder %s15, 3
    %p96 = por %p94, %p95
    %p97 = scmp.ne.s32.totalorder %s86, %s87
    %p98 = scmp.eq.s32.totalorder %s15, 0
    %p99 = por %p97, %p98
    %p100 = scmp.ne.s32.totalorder %s86, %s87
    %p101 = scmp.eq.s32.totalorder %s16, 3
    %p102 = por %p100, %p101
    %p104 = scmp.ne.s32.totalorder %s87, %s103
    %p105 = scmp.eq.s32.totalorder %s16, 0
    %p106 = por %p104, %p105
    %s107 = ssub.s32 %s17, %s29
    %p108 = scmp.eq.s32.totalorder %s107, 0
    %s110 = sadd.s32 %s109, 1
    %s111 = scalar_select %p108, %s109, %s110
    %p114 = pneg %p108
    %p115 = scmp.eq.s32.totalorder %s10, 3
    %p116 = por %p114, %p115
    %p117 = scmp.ne.s32.totalorder %s109, %s112
    %p118 = scmp.eq.s32.totalorder %s10, 0
    %p119 = por %p117, %p118
    %p120 = scmp.ne.s32.totalorder %s109, %s112
    %p121 = scmp.eq.s32.totalorder %s15, 3
    %p122 = por %p120, %p121
    %p123 = scmp.ne.s32.totalorder %s112, %s113
    %p124 = scmp.eq.s32.totalorder %s15, 0
    %p125 = por %p123, %p124
    %p126 = scmp.ne.s32.totalorder %s112, %s113
    %p127 = scmp.eq.s32.totalorder %s16, 3
    %p128 = por %p126, %p127
    %p130 = scmp.ne.s32.totalorder %s113, %s129
    %p131 = scmp.eq.s32.totalorder %s16, 0
    %p132 = por %p130, %p131
    %p133 = scmp.le.s32.totalorder 1, %s10
    %p134 = scmp.lt.s32.totalorder %s10, 5
    %p135 = pnand %p133, %p134
    %p136 = pneg %p135
    // Predicated region
    $region9: #{bottleneck_ibn_forward.4} parent=5 // pred_check
      _
    $region10: #{bottleneck_ibn_forward.4} parent=5 // pred_check_branch
      %138 = sbr.rel (%p135) target = $region12
    $region11: #{bottleneck_ibn_forward.4} parent=5 // pred_region
      %s139 = ssub.s32 %s10, 1
      // Predicated region
      $region13: #{bottleneck_ibn_forward.4} parent=11 // pred_check
        %p140 = pneg %p71
      $region14: #{bottleneck_ibn_forward.4} parent=11 // pred_check_branch
        %142 = sbr.rel (%p140) target = $region16
      $region15: #{bottleneck_ibn_forward.4} parent=11 // pred_region
        _
      $region16: #{bottleneck_ibn_forward.4} parent=11 // pred_fallthru
        _
    $region12: #{bottleneck_ibn_forward.4} parent=5 // pred_fallthru
      _
    %p143 = scmp.lt.s32.totalorder %s10, 4
    // Predicated region
    $region17: #{bottleneck_ibn_forward.4} parent=5 // pred_check
      %p144 = pneg %p143
    $region18: #{bottleneck_ibn_forward.4} parent=5 // pred_check_branch
      %146 = sbr.rel (%p144) target = $region20
    $region19: #{bottleneck_ibn_forward.4} parent=5 // pred_region
      // Predicated region
      $region21: #{bottleneck_ibn_forward.4} parent=19 // pred_check
        %p147 = pneg %p44
      $region22: #{bottleneck_ibn_forward.4} parent=19 // pred_check_branch
        %149 = sbr.rel (%p147) target = $region24
      $region23: #{bottleneck_ibn_forward.4} parent=19 // pred_region
        %s150 = smul.u32 16, %s18
        %p151 = scmp.lt.s32.totalorder %s17, 1
        %s152 = scalar_select %p151, %s17, 1
        %p153 = scmp.lt.s32.totalorder %s150, 31
        %s154 = scalar_select %p153, %s150, 31
        %s155 = smul.addr %s152, 32
        %s156 = sadd.s32 %s154, %s155
        %s157 = smul.addr %s156, 4
        %s158 = scalar_lea.vmem %s0, %s157
        %s159 = smul.u32 16, %s18
      $region24: #{bottleneck_ibn_forward.4} parent=19 // pred_fallthru
        _
    $region20: #{bottleneck_ibn_forward.4} parent=5 // pred_fallthru
      _
    %p160 = scmp.le.s32.totalorder 1, %s10
    %p161 = scmp.lt.s32.totalorder %s10, 5
    %p162 = pnand %p160, %p161
    %p163 = pneg %p162
    // Predicated region
    $region25: #{bottleneck_ibn_forward.4} parent=5 // pred_check
      _
    $region26: #{bottleneck_ibn_forward.4} parent=5 // pred_check_branch
      %165 = sbr.rel (%p162) target = $region28
    $region27: #{bottleneck_ibn_forward.4} parent=5 // pred_region
      %s166 = ssub.s32 %s10, 1
      %s167 = smul.u32 16, %s20
      %p168 = scmp.lt.s32.totalorder %s19, 1
      %s169 = scalar_select %p168, %s19, 1
      %p170 = scmp.lt.s32.totalorder %s167, 31
      %s171 = scalar_select %p170, %s167, 31
      %s172 = smul.addr %s169, 32
      %s173 = sadd.s32 %s171, %s172
      %s174 = smul.addr %s173, 4
      %s175 = scalar_lea.vmem %s0, %s174
      %p176 = pneg %p50
      %p177 = pneg %p47
      %p178 = pneg %p71
      %p179 = pneg %p68
      %p180 = pneg %p99
      %p181 = pneg %p96
      %s182 = smul.u32 16, %s20
      %p183 = scmp.lt.s32.totalorder %s19, 1
      %s184 = scalar_select %p183, %s19, 1
      %p185 = scmp.lt.s32.totalorder %s182, 31
      %s186 = scalar_select %p185, %s182, 31
      %s187 = smul.addr %s184, 32
      %s188 = sadd.s32 %s186, %s187
      %s189 = smul.addr %s188, 4
      %s190 = scalar_lea.vmem %s2, %s189
      %p191 = pneg %p125
      %p192 = pneg %p122
      %p193 = scmp.lt.s32.totalorder %s19, 1
      %s194 = scalar_select %p193, %s19, 1
      %s195 = smul.addr %s194, 2
      %s196 = scalar_lea.vmem %s3, %s195
      %s197 = smul.u32 16, %s20
      %p198 = scmp.lt.s32.totalorder %s19, 1
      %s199 = scalar_select %p198, %s19, 1
      %p200 = scmp.lt.s32.totalorder %s197, 31
      %s201 = scalar_select %p200, %s197, 31
      %s202 = smul.addr %s199, 32
      %s203 = sadd.s32 %s201, %s202
      %s204 = smul.addr %s203, 4
      %s205 = scalar_lea.vmem %s0, %s204
      %s206 = smul.u32 16, %s20
      %s207 = smul.u32 16, %s20
      %p208 = scmp.lt.s32.totalorder %s19, 1
      %s209 = scalar_select %p208, %s19, 1
      %p210 = scmp.lt.s32.totalorder %s207, 31
      %s211 = scalar_select %p210, %s207, 31
      %s212 = smul.addr %s209, 32
      %s213 = sadd.s32 %s211, %s212
      %s214 = smul.addr %s213, 4
      %s215 = scalar_lea.vmem %s2, %s214
      %s216 = smul.u32 16, %s20
      %p217 = scmp.lt.s32.totalorder %s19, 1
      %s218 = scalar_select %p217, %s19, 1
      %s219 = smul.addr %s218, 2
      %s220 = scalar_lea.vmem %s3, %s219
      %v221 = vld [vmem:[%s205] sm:$0xf]
      %v222 = vld [vmem:[%s205 + $0x4] sm:$0xf]
      %v223 = vld [vmem:[%s205 + $0x8] sm:$0xf]
      %v224 = vld [vmem:[%s205 + $0xc] sm:$0xf]
      %v225 = vld [vmem:[%s205 + $0x10] sm:$0xf]
      %v226 = vld [vmem:[%s205 + $0x14] sm:$0xf]
      %v227 = vld [vmem:[%s205 + $0x18] sm:$0xf]
      %v228 = vld [vmem:[%s205 + $0x1c] sm:$0xf]
      %v229 = vld [vmem:[%s205 + $0x20] sm:$0xf]
      %v230 = vld [vmem:[%s205 + $0x24] sm:$0xf]
      %v231 = vld [vmem:[%s205 + $0x28] sm:$0xf]
      %v232 = vld [vmem:[%s205 + $0x2c] sm:$0xf]
      %v233 = vld [vmem:[%s205 + $0x30] sm:$0xf]
      %v234 = vld [vmem:[%s205 + $0x34] sm:$0xf]
      %v235 = vld [vmem:[%s205 + $0x38] sm:$0xf]
      %v236 = vld [vmem:[%s205 + $0x3c] sm:$0xf]
      %v237 = vld [vmem:[%s1] sm:$0xf]
      %v238 = vld [vmem:[%s1 + $0x4] sm:$0xf]
      %v239 = vld [vmem:[%s1 + $0x8] sm:$0xf]
      %v240 = vld [vmem:[%s1 + $0xc] sm:$0xf]
      %v241 = vld [vmem:[%s1 + $0x10] sm:$0xf]
      %v242 = vld [vmem:[%s1 + $0x14] sm:$0xf]
      %v243 = vld [vmem:[%s1 + $0x18] sm:$0xf]
      %v244 = vld [vmem:[%s1 + $0x1c] sm:$0xf]
      %v245 = vld [vmem:[%s1 + $0x20] sm:$0xf]
      %v246 = vld [vmem:[%s1 + $0x24] sm:$0xf]
      %v247 = vld [vmem:[%s1 + $0x28] sm:$0xf]
      %v248 = vld [vmem:[%s1 + $0x2c] sm:$0xf]
      %v249 = vld [vmem:[%s1 + $0x30] sm:$0xf]
      %v250 = vld [vmem:[%s1 + $0x34] sm:$0xf]
      %v251 = vld [vmem:[%s1 + $0x38] sm:$0xf]
      %v252 = vld [vmem:[%s1 + $0x3c] sm:$0xf]
      %v269 = vunpack.c.l.b16 %v221
      %v270 = vunpack.c.l.b16 %v222
      %v271 = vunpack.c.l.b16 %v223
      %v272 = vunpack.c.l.b16 %v224
      %v273 = vunpack.c.l.b16 %v225
      %v274 = vunpack.c.l.b16 %v226
      %v275 = vunpack.c.l.b16 %v227
      %v276 = vunpack.c.l.b16 %v228
      %v277 = vunpack.c.l.b16 %v229
      %v278 = vunpack.c.l.b16 %v230
      %v279 = vunpack.c.l.b16 %v231
      %v280 = vunpack.c.l.b16 %v232
      %v281 = vunpack.c.l.b16 %v233
      %v282 = vunpack.c.l.b16 %v234
      %v283 = vunpack.c.l.b16 %v235
      %v284 = vunpack.c.l.b16 %v236
      %v285 = vpack.c.b16 %v270, %v269
      %v286 = vpack.c.b16 %v272, %v271
      %v287 = vpack.c.b16 %v274, %v273
      %v288 = vpack.c.b16 %v276, %v275
      %v289 = vpack.c.b16 %v278, %v277
      %v290 = vpack.c.b16 %v280, %v279
      %v291 = vpack.c.b16 %v282, %v281
      %v292 = vpack.c.b16 %v284, %v283
      %v317 = vunpack.c.l.b16 %v237
      %v318 = vunpack.c.l.b16 %v238
      %v319 = vunpack.c.l.b16 %v239
      %v320 = vunpack.c.l.b16 %v240
      %v321 = vunpack.c.l.b16 %v241
      %v322 = vunpack.c.l.b16 %v242
      %v323 = vunpack.c.l.b16 %v243
      %v324 = vunpack.c.l.b16 %v244
      %v325 = vunpack.c.l.b16 %v245
      %v326 = vunpack.c.l.b16 %v246
      %v327 = vunpack.c.l.b16 %v247
      %v328 = vunpack.c.l.b16 %v248
      %v329 = vunpack.c.l.b16 %v249
      %v330 = vunpack.c.l.b16 %v250
      %v331 = vunpack.c.l.b16 %v251
      %v332 = vunpack.c.l.b16 %v252
      %v333 = vpack.c.b16 %v318, %v317
      %v334 = vpack.c.b16 %v320, %v319
      %v335 = vpack.c.b16 %v322, %v321
      %v336 = vpack.c.b16 %v324, %v323
      %v337 = vpack.c.b16 %v326, %v325
      %v338 = vpack.c.b16 %v328, %v327
      %v339 = vpack.c.b16 %v330, %v329
      %v340 = vpack.c.b16 %v332, %v331
      %349 = vmatpush.bf16.msra.mxu0 %v340
      %350 = vmatpush.bf16.msra.mxu0 %v339
      %351 = vmatpush.bf16.msra.mxu0 %v338
      %352 = vmatpush.bf16.msra.mxu0 %v337
      %353 = vmatpush.bf16.msra.mxu0 %v336
      %354 = vmatpush.bf16.msra.mxu0 %v335
      %355 = vmatpush.bf16.msra.mxu0 %v334
      %356 = vmatpush.bf16.msra.mxu0 %v333
      %357 = vmatmul.bf16.gmra.mxu0 %v285
      %v358 = vpop.f32.mrf.mxu0
      %v359 = vadd.f32 0.0, %v358
      %v360 = vpop.f32.mrf.mxu0
      %v361 = vadd.f32 0.0, %v360
      %362 = vmatmul.bf16.gmra.mxu0 %v286
      %v363 = vpop.f32.mrf.mxu0
      %v364 = vadd.f32 0.0, %v363
      %v365 = vpop.f32.mrf.mxu0
      %v366 = vadd.f32 0.0, %v365
      %367 = vmatmul.bf16.gmra.mxu0 %v287
      %v368 = vpop.f32.mrf.mxu0
      %v369 = vadd.f32 0.0, %v368
      %v370 = vpop.f32.mrf.mxu0
      %v371 = vadd.f32 0.0, %v370
      %372 = vmatmul.bf16.gmra.mxu0 %v288
      %v373 = vpop.f32.mrf.mxu0
      %v374 = vadd.f32 0.0, %v373
      %v375 = vpop.f32.mrf.mxu0
      %v376 = vadd.f32 0.0, %v375
      %377 = vmatmul.bf16.gmra.mxu0 %v289
      %v378 = vpop.f32.mrf.mxu0
      %v379 = vadd.f32 0.0, %v378
      %v380 = vpop.f32.mrf.mxu0
      %v381 = vadd.f32 0.0, %v380
      %382 = vmatmul.bf16.gmra.mxu0 %v290
      %v383 = vpop.f32.mrf.mxu0
      %v384 = vadd.f32 0.0, %v383
      %v385 = vpop.f32.mrf.mxu0
      %v386 = vadd.f32 0.0, %v385
      %387 = vmatmul.bf16.gmra.mxu0 %v291
      %v388 = vpop.f32.mrf.mxu0
      %v389 = vadd.f32 0.0, %v388
      %v390 = vpop.f32.mrf.mxu0
      %v391 = vadd.f32 0.0, %v390
      %392 = vmatmul.bf16.gmra.mxu0 %v292
      %v393 = vpop.f32.mrf.mxu0
      %v394 = vadd.f32 0.0, %v393
      %v395 = vpop.f32.mrf.mxu0
      %v396 = vadd.f32 0.0, %v395
      %397 = vdwg.mxu0
      %v398 = vpack.c.bf16 %v359, %v359
      %v399 = vpack.c.bf16 %v361, %v361
      %v400 = vpack.c.bf16 %v364, %v364
      %v401 = vpack.c.bf16 %v366, %v366
      %v402 = vpack.c.bf16 %v369, %v369
      %v403 = vpack.c.bf16 %v371, %v371
      %v404 = vpack.c.bf16 %v374, %v374
      %v405 = vpack.c.bf16 %v376, %v376
      %v406 = vpack.c.bf16 %v379, %v379
      %v407 = vpack.c.bf16 %v381, %v381
      %v408 = vpack.c.bf16 %v384, %v384
      %v409 = vpack.c.bf16 %v386, %v386
      %v410 = vpack.c.bf16 %v389, %v389
      %v411 = vpack.c.bf16 %v391, %v391
      %v412 = vpack.c.bf16 %v394, %v394
      %v413 = vpack.c.bf16 %v396, %v396
      %414 = vst [vmem:[%s215] sm:$0xf] %v398
      %415 = vst [vmem:[%s215 + $0x4] sm:$0xf] %v399
      %416 = vst [vmem:[%s215 + $0x8] sm:$0xf] %v400
      %417 = vst [vmem:[%s215 + $0xc] sm:$0xf] %v401
      %418 = vst [vmem:[%s215 + $0x10] sm:$0xf] %v402
      %419 = vst [vmem:[%s215 + $0x14] sm:$0xf] %v403
      %420 = vst [vmem:[%s215 + $0x18] sm:$0xf] %v404
      %421 = vst [vmem:[%s215 + $0x1c] sm:$0xf] %v405
      %422 = vst [vmem:[%s215 + $0x20] sm:$0xf] %v406
      %423 = vst [vmem:[%s215 + $0x24] sm:$0xf] %v407
      %424 = vst [vmem:[%s215 + $0x28] sm:$0xf] %v408
      %425 = vst [vmem:[%s215 + $0x2c] sm:$0xf] %v409
      %426 = vst [vmem:[%s215 + $0x30] sm:$0xf] %v410
      %427 = vst [vmem:[%s215 + $0x34] sm:$0xf] %v411
      %428 = vst [vmem:[%s215 + $0x38] sm:$0xf] %v412
      %429 = vst [vmem:[%s215 + $0x3c] sm:$0xf] %v413
      %p430 = scmp.eq.s32.totalorder %s20, 0
      // Predicated region
      $region29: #{bottleneck_ibn_forward.4} parent=27 // pred_check
        %p431 = pneg %p430
      $region30: #{bottleneck_ibn_forward.4} parent=27 // pred_check_branch
        %433 = sbr.rel (%p431) target = $region32
      $region31: #{bottleneck_ibn_forward.4} parent=27 // pred_region
        %434 = vst [vmem:[#allocation2] sm:$0x3] 0.0
      $region32: #{bottleneck_ibn_forward.4} parent=27 // pred_fallthru
        _
      %v435 = vld [vmem:[#allocation2] sm:$0x1]
      %v436 = vadd.f32 %v359, %v361
      %v437 = vadd.f32 %v436, %v364
      %v438 = vadd.f32 %v437, %v366
      %v439 = vadd.f32 %v438, %v369
      %v440 = vadd.f32 %v439, %v371
      %v441 = vadd.f32 %v440, %v374
      %v442 = vadd.f32 %v441, %v376
      %v443 = vadd.f32 %v442, %v379
      %v444 = vadd.f32 %v443, %v381
      %v445 = vadd.f32 %v444, %v384
      %v446 = vadd.f32 %v445, %v386
      %v447 = vadd.f32 %v446, %v389
      %v448 = vadd.f32 %v447, %v391
      %v449 = vadd.f32 %v448, %v394
      %v450 = vadd.f32 %v449, %v396
      %v451 = vrot.slane %v450, 4
      %v452 = vadd.f32 %v450, %v451
      %v453 = vrot.slane %v452, 2
      %v454 = vadd.f32 %v452, %v453
      %v455 = vrot.slane %v454, 1
      %v456 = vadd.f32 %v454, %v455
      %v457 = vadd.f32 %v435, %v456
      %458 = vst [vmem:[#allocation2] sm:$0x1] %v457
      %v459 = vld [vmem:[#allocation2 + $0x1] sm:$0x1]
      %v460 = vmul.f32 %v359, %v359
      %v461 = vmul.f32 %v361, %v361
      %v462 = vmul.f32 %v364, %v364
      %v463 = vmul.f32 %v366, %v366
      %v464 = vmul.f32 %v369, %v369
      %v465 = vmul.f32 %v371, %v371
      %v466 = vmul.f32 %v374, %v374
      %v467 = vmul.f32 %v376, %v376
      %v468 = vmul.f32 %v379, %v379
      %v469 = vmul.f32 %v381, %v381
      %v470 = vmul.f32 %v384, %v384
      %v471 = vmul.f32 %v386, %v386
      %v472 = vmul.f32 %v389, %v389
      %v473 = vmul.f32 %v391, %v391
      %v474 = vmul.f32 %v394, %v394
      %v475 = vmul.f32 %v396, %v396
      %v476 = vadd.f32 %v460, %v461
      %v477 = vadd.f32 %v476, %v462
      %v478 = vadd.f32 %v477, %v463
      %v479 = vadd.f32 %v478, %v464
      %v480 = vadd.f32 %v479, %v465
      %v481 = vadd.f32 %v480, %v466
      %v482 = vadd.f32 %v481, %v467
      %v483 = vadd.f32 %v482, %v468
      %v484 = vadd.f32 %v483, %v469
      %v485 = vadd.f32 %v484, %v470
      %v486 = vadd.f32 %v485, %v471
      %v487 = vadd.f32 %v486, %v472
      %v488 = vadd.f32 %v487, %v473
      %v489 = vadd.f32 %v488, %v474
      %v490 = vadd.f32 %v489, %v475
      %v491 = vrot.slane %v490, 4
      %v492 = vadd.f32 %v490, %v491
      %v493 = vrot.slane %v492, 2
      %v494 = vadd.f32 %v492, %v493
      %v495 = vrot.slane %v494, 1
      %v496 = vadd.f32 %v494, %v495
      %v497 = vadd.f32 %v459, %v496
      %498 = vst [vmem:[#allocation2 + $0x1] sm:$0x1] %v497
      %p499 = scmp.eq.s32.totalorder %s20, 1
      // Predicated region
      $region33: #{bottleneck_ibn_forward.4} parent=27 // pred_check
        %p500 = pneg %p499
      $region34: #{bottleneck_ibn_forward.4} parent=27 // pred_check_branch
        %502 = sbr.rel (%p500) target = $region36
      $region35: #{bottleneck_ibn_forward.4} parent=27 // pred_region
        %v503 = vld [vmem:[#allocation2] sm:$0x3]
        %504 = vst [vmem:[%s220] sm:$0x3] %v503
      $region36: #{bottleneck_ibn_forward.4} parent=27 // pred_fallthru
        _
      %s505 = smul.u32 16, %s20
      %p506 = scmp.lt.s32.totalorder %s19, 1
      %s507 = scalar_select %p506, %s19, 1
      %p508 = scmp.lt.s32.totalorder %s505, 31
      %s509 = scalar_select %p508, %s505, 31
      %s510 = smul.addr %s507, 32
      %s511 = sadd.s32 %s509, %s510
      %s512 = smul.addr %s511, 4
      %s513 = scalar_lea.vmem %s2, %s512
      %p514 = scmp.lt.s32.totalorder %s19, 1
      %s515 = scalar_select %p514, %s19, 1
      %s516 = smul.addr %s515, 2
      %s517 = scalar_lea.vmem %s3, %s516
      // Predicated region
      $region37: #{bottleneck_ibn_forward.4} parent=27 // pred_check
        %p518 = pneg %p96
      $region38: #{bottleneck_ibn_forward.4} parent=27 // pred_check_branch
        %520 = sbr.rel (%p518) target = $region40
      $region39: #{bottleneck_ibn_forward.4} parent=27 // pred_region
        %s521 = smul.u32 16, %s20
      $region40: #{bottleneck_ibn_forward.4} parent=27 // pred_fallthru
        _
      // Predicated region
      $region41: #{bottleneck_ibn_forward.4} parent=27 // pred_check
        %p522 = pneg %p122
      $region42: #{bottleneck_ibn_forward.4} parent=27 // pred_check_branch
        %524 = sbr.rel (%p522) target = $region44
      $region43: #{bottleneck_ibn_forward.4} parent=27 // pred_region
        _
      $region44: #{bottleneck_ibn_forward.4} parent=27 // pred_fallthru
        _
    $region28: #{bottleneck_ibn_forward.4} parent=5 // pred_fallthru
      _
    %p525 = scmp.le.s32.totalorder 2, %s10
    // Predicated region
    $region45: #{bottleneck_ibn_forward.4} parent=5 // pred_check
      %p526 = pneg %p525
    $region46: #{bottleneck_ibn_forward.4} parent=5 // pred_check_branch
      %528 = sbr.rel (%p526) target = $region48
    $region47: #{bottleneck_ibn_forward.4} parent=5 // pred_region
      %s529 = ssub.s32 %s10, 2
      // Predicated region
      $region49: #{bottleneck_ibn_forward.4} parent=47 // pred_check
        %p530 = pneg %p102
      $region50: #{bottleneck_ibn_forward.4} parent=47 // pred_check_branch
        %532 = sbr.rel (%p530) target = $region52
      $region51: #{bottleneck_ibn_forward.4} parent=47 // pred_region
        %s533 = smul.u32 16, %s22
        %p534 = scmp.lt.s32.totalorder %s21, 1
        %s535 = scalar_select %p534, %s21, 1
        %p536 = scmp.lt.s32.totalorder %s533, 31
        %s537 = scalar_select %p536, %s533, 31
        %s538 = smul.addr %s535, 32
        %s539 = sadd.s32 %s537, %s538
        %s540 = smul.addr %s539, 4
        %s541 = scalar_lea.vmem %s2, %s540
      $region52: #{bottleneck_ibn_forward.4} parent=47 // pred_fallthru
        _
      // Predicated region
      $region53: #{bottleneck_ibn_forward.4} parent=47 // pred_check
        %p542 = pneg %p128
      $region54: #{bottleneck_ibn_forward.4} parent=47 // pred_check_branch
        %544 = sbr.rel (%p542) target = $region56
      $region55: #{bottleneck_ibn_forward.4} parent=47 // pred_region
        %p545 = scmp.lt.s32.totalorder %s21, 1
        %s546 = scalar_select %p545, %s21, 1
        %s547 = smul.addr %s546, 2
        %s548 = scalar_lea.vmem %s3, %s547
      $region56: #{bottleneck_ibn_forward.4} parent=47 // pred_fallthru
        _
    $region48: #{bottleneck_ibn_forward.4} parent=5 // pred_fallthru
      _
  $region6: #{bottleneck_ibn_forward.4} parent=0 // loop_footer
    %s14 = sadd.s32 1, %s10
  $region7: #{bottleneck_ibn_forward.4} parent=0 // loop_footer_branch
    %9 = sbr.rel target = $region3
  $region8: #{bottleneck_ibn_forward.4} parent=0 // loop_exit
    _

// kernel: bottleneck_ibn_forward.6
$region0: #{bottleneck_ibn_forward.6}
  #allocation0 [shape = 'u32[]', space=smem, size = 0x4, offset = 0x4, fixed_abs, tag = 'smem constant byte address 0x4 - core index']
  #allocation1 [shape = 'u32[72,128]{1,0:T(1,128)}', space=vmem, size = 0x9000, scoped, tag = 'internal scratch']
  #allocation2 [shape = 'f32[2,128]{1,0:T(2,128)}', space=vmem, size = 0x400, scoped, tag = 'scratch operand']
  %s0 = inlined_call_operand.vmem [shape: bf16[2,256,128], index: 0, kind: input, shape index: {}]
  %s1 = inlined_call_operand.vmem [shape: f32[1,1,128], index: 1, kind: input, shape index: {}]
  %s2 = inlined_call_operand.vmem [shape: f32[1,1,128], index: 2, kind: input, shape index: {}]
  %s3 = inlined_call_operand.vmem [shape: bf16[128,128], index: 3, kind: input, shape index: {}]
  %s4 = inlined_call_operand.vmem [shape: bf16[2,256,128], index: 4, kind: output, shape index: {0}]
  %s5 = inlined_call_operand.vmem [shape: f32[2,2,128], index: 5, kind: output, shape index: {1}]
  %6 = xla_tuple %s4, %s5
  %s7 = sld [smem:[#allocation0]]
  $region65: #{bottleneck_ibn_forward.6} parent=0
    _
  %s9 = ssub.s32 1, %s7
  %s10 = scalar_select 0, %s9, %s7
  loop: start=0, step=1, limit=6
  $region2: #{bottleneck_ibn_forward.6} parent=0 // loop_pre_header
    _
  $region3: #{bottleneck_ibn_forward.6} parent=0 // loop_header
    %s12 = sphi 0, %s16
    %p13 = scmp.ge.s32.totalorder %s12, 6
    %s19 = sphi 0, %s31
    %s20 = sphi 0, %s27
    %s21 = sphi 0, %s19
    %s22 = sphi 0, %s20
    %s23 = sphi 0, %s21
    %s24 = sphi 0, %s22
    %s36 = sphi 0, %s38
    %s39 = sphi 0, %s36
    %s40 = sphi 0, %s39
    %s56 = sphi 0, %s40
    %s60 = sphi 0, %s60
    %s62 = sphi 0, %s60
    %s63 = sphi 0, %s62
    %s77 = sphi 0, %s63
    %s81 = sphi 0, %s81
    %s83 = sphi 0, %s81
    %s84 = sphi 0, %s83
    %s98 = sphi 0, %s84
    %s102 = sphi 0, %s102
    %s104 = sphi 0, %s102
    %s105 = sphi 0, %s104
    %s119 = sphi 0, %s105
    %s127 = sphi 0, %s129
    %s130 = sphi 0, %s127
    %s131 = sphi 0, %s130
    %s147 = sphi 0, %s131
    %s153 = sphi 0, %s155
    %s156 = sphi 0, %s153
    %s157 = sphi 0, %s156
    %s173 = sphi 0, %s157
  $region4: #{bottleneck_ibn_forward.6} parent=0 // loop_header_branch
    %15 = sbr.rel (%p13) target = $region8
  $region5: #{bottleneck_ibn_forward.6} parent=0 // loop_body
    %s17 = ssub.s32 %s12, 1
    %s18 = ssub.s32 %s12, 2
    %s25 = sadd.s32 1, %s20
    %p26 = scmp.ge.s32.totalorder %s25, 2
    %s27 = scalar_select %p26, 0, %s25
    %s28 = sadd.s32 1, %s19
    %s29 = scalar_select %p26, %s28, %s19
    %p30 = scmp.ge.s32.totalorder %s29, 2
    %s31 = scalar_select %p30, 0, %s29
    %s32 = ssub.s32 %s19, %s31
    %s33 = ssub.s32 %s20, %s27
    %s34 = sor.u32 %s32, %s33
    %p35 = scmp.eq.s32.totalorder %s34, 0
    %s37 = sadd.s32 %s36, 1
    %s38 = scalar_select %p35, %s36, %s37
    %p41 = pneg %p35
    %p42 = scmp.eq.s32.totalorder %s12, 3
    %p43 = por %p41, %p42
    %p44 = scmp.ne.s32.totalorder %s36, %s39
    %p45 = scmp.eq.s32.totalorder %s12, 0
    %p46 = por %p44, %p45
    %p47 = scmp.ne.s32.totalorder %s36, %s39
    %p48 = scmp.eq.s32.totalorder %s17, 3
    %p49 = por %p47, %p48
    %p50 = scmp.ne.s32.totalorder %s39, %s40
    %p51 = scmp.eq.s32.totalorder %s17, 0
    %p52 = por %p50, %p51
    %p53 = scmp.ne.s32.totalorder %s39, %s40
    %p54 = scmp.eq.s32.totalorder %s18, 3
    %p55 = por %p53, %p54
    %p57 = scmp.ne.s32.totalorder %s40, %s56
    %p58 = scmp.eq.s32.totalorder %s18, 0
    %p59 = por %p57, %p58
    %s61 = sadd.s32 %s60, 1
    %p64 = scmp.eq.s32.totalorder %s12, 3
    %p65 = scmp.ne.s32.totalorder %s60, %s62
    %p66 = scmp.eq.s32.totalorder %s12, 0
    %p67 = por %p65, %p66
    %p68 = scmp.ne.s32.totalorder %s60, %s62
    %p69 = scmp.eq.s32.totalorder %s17, 3
    %p70 = por %p68, %p69
    %p71 = scmp.ne.s32.totalorder %s62, %s63
    %p72 = scmp.eq.s32.totalorder %s17, 0
    %p73 = por %p71, %p72
    %p74 = scmp.ne.s32.totalorder %s62, %s63
    %p75 = scmp.eq.s32.totalorder %s18, 3
    %p76 = por %p74, %p75
    %p78 = scmp.ne.s32.totalorder %s63, %s77
    %p79 = scmp.eq.s32.totalorder %s18, 0
    %p80 = por %p78, %p79
    %s82 = sadd.s32 %s81, 1
    %p85 = scmp.eq.s32.totalorder %s12, 3
    %p86 = scmp.ne.s32.totalorder %s81, %s83
    %p87 = scmp.eq.s32.totalorder %s12, 0
    %p88 = por %p86, %p87
    %p89 = scmp.ne.s32.totalorder %s81, %s83
    %p90 = scmp.eq.s32.totalorder %s17, 3
    %p91 = por %p89, %p90
    %p92 = scmp.ne.s32.totalorder %s83, %s84
    %p93 = scmp.eq.s32.totalorder %s17, 0
    %p94 = por %p92, %p93
    %p95 = scmp.ne.s32.totalorder %s83, %s84
    %p96 = scmp.eq.s32.totalorder %s18, 3
    %p97 = por %p95, %p96
    %p99 = scmp.ne.s32.totalorder %s84, %s98
    %p100 = scmp.eq.s32.totalorder %s18, 0
    %p101 = por %p99, %p100
    %s103 = sadd.s32 %s102, 1
    %p106 = scmp.eq.s32.totalorder %s12, 3
    %p107 = scmp.ne.s32.totalorder %s102, %s104
    %p108 = scmp.eq.s32.totalorder %s12, 0
    %p109 = por %p107, %p108
    %p110 = scmp.ne.s32.totalorder %s102, %s104
    %p111 = scmp.eq.s32.totalorder %s17, 3
    %p112 = por %p110, %p111
    %p113 = scmp.ne.s32.totalorder %s104, %s105
    %p114 = scmp.eq.s32.totalorder %s17, 0
    %p115 = por %p113, %p114
    %p116 = scmp.ne.s32.totalorder %s104, %s105
    %p117 = scmp.eq.s32.totalorder %s18, 3
    %p118 = por %p116, %p117
    %p120 = scmp.ne.s32.totalorder %s105, %s119
    %p121 = scmp.eq.s32.totalorder %s18, 0
    %p122 = por %p120, %p121
    %s123 = ssub.s32 %s19, %s31
    %s124 = ssub.s32 %s20, %s27
    %s125 = sor.u32 %s123, %s124
    %p126 = scmp.eq.s32.totalorder %s125, 0
    %s128 = sadd.s32 %s127, 1
    %s129 = scalar_select %p126, %s127, %s128
    %p132 = pneg %p126
    %p133 = scmp.eq.s32.totalorder %s12, 3
    %p134 = por %p132, %p133
    %p135 = scmp.ne.s32.totalorder %s127, %s130
    %p136 = scmp.eq.s32.totalorder %s12, 0
    %p137 = por %p135, %p136
    %p138 = scmp.ne.s32.totalorder %s127, %s130
    %p139 = scmp.eq.s32.totalorder %s17, 3
    %p140 = por %p138, %p139
    %p141 = scmp.ne.s32.totalorder %s130, %s131
    %p142 = scmp.eq.s32.totalorder %s17, 0
    %p143 = por %p141, %p142
    %p144 = scmp.ne.s32.totalorder %s130, %s131
    %p145 = scmp.eq.s32.totalorder %s18, 3
    %p146 = por %p144, %p145
    %p148 = scmp.ne.s32.totalorder %s131, %s147
    %p149 = scmp.eq.s32.totalorder %s18, 0
    %p150 = por %p148, %p149
    %s151 = ssub.s32 %s19, %s31
    %p152 = scmp.eq.s32.totalorder %s151, 0
    %s154 = sadd.s32 %s153, 1
    %s155 = scalar_select %p152, %s153, %s154
    %p158 = pneg %p152
    %p159 = scmp.eq.s32.totalorder %s12, 3
    %p160 = por %p158, %p159
    %p161 = scmp.ne.s32.totalorder %s153, %s156
    %p162 = scmp.eq.s32.totalorder %s12, 0
    %p163 = por %p161, %p162
    %p164 = scmp.ne.s32.totalorder %s153, %s156
    %p165 = scmp.eq.s32.totalorder %s17, 3
    %p166 = por %p164, %p165
    %p167 = scmp.ne.s32.totalorder %s156, %s157
    %p168 = scmp.eq.s32.totalorder %s17, 0
    %p169 = por %p167, %p168
    %p170 = scmp.ne.s32.totalorder %s156, %s157
    %p171 = scmp.eq.s32.totalorder %s18, 3
    %p172 = por %p170, %p171
    %p174 = scmp.ne.s32.totalorder %s157, %s173
    %p175 = scmp.eq.s32.totalorder %s18, 0
    %p176 = por %p174, %p175
    %p177 = scmp.le.s32.totalorder 1, %s12
    %p178 = scmp.lt.s32.totalorder %s12, 5
    %p179 = pnand %p177, %p178
    %p180 = pneg %p179
    // Predicated region
    $region9: #{bottleneck_ibn_forward.6} parent=5 // pred_check
      _
    $region10: #{bottleneck_ibn_forward.6} parent=5 // pred_check_branch
      %182 = sbr.rel (%p179) target = $region12
    $region11: #{bottleneck_ibn_forward.6} parent=5 // pred_region
      %s183 = ssub.s32 %s12, 1
      // Predicated region
      $region13: #{bottleneck_ibn_forward.6} parent=11 // pred_check
        %p184 = pneg %p73
      $region14: #{bottleneck_ibn_forward.6} parent=11 // pred_check_branch
        %186 = sbr.rel (%p184) target = $region16
      $region15: #{bottleneck_ibn_forward.6} parent=11 // pred_region
        _
      $region16: #{bottleneck_ibn_forward.6} parent=11 // pred_fallthru
        _
      // Predicated region
      $region17: #{bottleneck_ibn_forward.6} parent=11 // pred_check
        %p187 = pneg %p94
      $region18: #{bottleneck_ibn_forward.6} parent=11 // pred_check_branch
        %189 = sbr.rel (%p187) target = $region20
      $region19: #{bottleneck_ibn_forward.6} parent=11 // pred_region
        _
      $region20: #{bottleneck_ibn_forward.6} parent=11 // pred_fallthru
        _
      // Predicated region
      $region21: #{bottleneck_ibn_forward.6} parent=11 // pred_check
        %p190 = pneg %p115
      $region22: #{bottleneck_ibn_forward.6} parent=11 // pred_check_branch
        %192 = sbr.rel (%p190) target = $region24
      $region23: #{bottleneck_ibn_forward.6} parent=11 // pred_region
        _
      $region24: #{bottleneck_ibn_forward.6} parent=11 // pred_fallthru
        _
    $region12: #{bottleneck_ibn_forward.6} parent=5 // pred_fallthru
      _
    %p193 = scmp.lt.s32.totalorder %s12, 4
    // Predicated region
    $region25: #{bottleneck_ibn_forward.6} parent=5 // pred_check
      %p194 = pneg %p193
    $region26: #{bottleneck_ibn_forward.6} parent=5 // pred_check_branch
      %196 = sbr.rel (%p194) target = $region28
    $region27: #{bottleneck_ibn_forward.6} parent=5 // pred_region
      // Predicated region
      $region29: #{bottleneck_ibn_forward.6} parent=27 // pred_check
        %p197 = pneg %p46
      $region30: #{bottleneck_ibn_forward.6} parent=27 // pred_check_branch
        %199 = sbr.rel (%p197) target = $region32
      $region31: #{bottleneck_ibn_forward.6} parent=27 // pred_region
        %s200 = smul.u32 16, %s20
        %p201 = scmp.lt.s32.totalorder %s19, 1
        %s202 = scalar_select %p201, %s19, 1
        %p203 = scmp.lt.s32.totalorder %s200, 31
        %s204 = scalar_select %p203, %s200, 31
        %s205 = smul.addr %s202, 32
        %s206 = sadd.s32 %s204, %s205
        %s207 = smul.addr %s206, 4
        %s208 = scalar_lea.vmem %s0, %s207
        %s209 = smul.u32 16, %s20
      $region32: #{bottleneck_ibn_forward.6} parent=27 // pred_fallthru
        _
    $region28: #{bottleneck_ibn_forward.6} parent=5 // pred_fallthru
      _
    %p210 = scmp.le.s32.totalorder 1, %s12
    %p211 = scmp.lt.s32.totalorder %s12, 5
    %p212 = pnand %p210, %p211
    %p213 = pneg %p212
    // Predicated region
    $region33: #{bottleneck_ibn_forward.6} parent=5 // pred_check
      _
    $region34: #{bottleneck_ibn_forward.6} parent=5 // pred_check_branch
      %215 = sbr.rel (%p212) target = $region36
    $region35: #{bottleneck_ibn_forward.6} parent=5 // pred_region
      %s216 = ssub.s32 %s12, 1
      %s217 = smul.u32 16, %s22
      %p218 = scmp.lt.s32.totalorder %s21, 1
      %s219 = scalar_select %p218, %s21, 1
      %p220 = scmp.lt.s32.totalorder %s217, 31
      %s221 = scalar_select %p220, %s217, 31
      %s222 = smul.addr %s219, 32
      %s223 = sadd.s32 %s221, %s222
      %s224 = smul.addr %s223, 4
      %s225 = scalar_lea.vmem %s0, %s224
      %p226 = pneg %p52
      %p227 = pneg %p49
      %p228 = pneg %p73
      %p229 = pneg %p70
      %p230 = pneg %p94
      %p231 = pneg %p91
      %p232 = pneg %p115
      %p233 = pneg %p112
      %p234 = pneg %p143
      %p235 = pneg %p140
      %s236 = smul.u32 16, %s22
      %p237 = scmp.lt.s32.totalorder %s21, 1
      %s238 = scalar_select %p237, %s21, 1
      %p239 = scmp.lt.s32.totalorder %s236, 31
      %s240 = scalar_select %p239, %s236, 31
      %s241 = smul.addr %s238, 32
      %s242 = sadd.s32 %s240, %s241
      %s243 = smul.addr %s242, 4
      %s244 = scalar_lea.vmem %s4, %s243
      %p245 = pneg %p169
      %p246 = pneg %p166
      %p247 = scmp.lt.s32.totalorder %s21, 1
      %s248 = scalar_select %p247, %s21, 1
      %s249 = smul.addr %s248, 2
      %s250 = scalar_lea.vmem %s5, %s249
      %s251 = smul.u32 16, %s22
      %p252 = scmp.lt.s32.totalorder %s21, 1
      %s253 = scalar_select %p252, %s21, 1
      %p254 = scmp.lt.s32.totalorder %s251, 31
      %s255 = scalar_select %p254, %s251, 31
      %s256 = smul.addr %s253, 32
      %s257 = sadd.s32 %s255, %s256
      %s258 = smul.addr %s257, 4
      %s259 = scalar_lea.vmem %s0, %s258
      %s260 = smul.u32 16, %s22
      %s261 = smul.u32 16, %s22
      %p262 = scmp.lt.s32.totalorder %s21, 1
      %s263 = scalar_select %p262, %s21, 1
      %p264 = scmp.lt.s32.totalorder %s261, 31
      %s265 = scalar_select %p264, %s261, 31
      %s266 = smul.addr %s263, 32
      %s267 = sadd.s32 %s265, %s266
      %s268 = smul.addr %s267, 4
      %s269 = scalar_lea.vmem %s4, %s268
      %s270 = smul.u32 16, %s22
      %p271 = scmp.lt.s32.totalorder %s21, 1
      %s272 = scalar_select %p271, %s21, 1
      %s273 = smul.addr %s272, 2
      %s274 = scalar_lea.vmem %s5, %s273
      %v275 = vld [vmem:[%s259] sm:$0xf]
      %v276 = vld [vmem:[%s259 + $0x4] sm:$0xf]
      %v277 = vld [vmem:[%s259 + $0x8] sm:$0xf]
      %v278 = vld [vmem:[%s259 + $0xc] sm:$0xf]
      %v279 = vld [vmem:[%s259 + $0x10] sm:$0xf]
      %v280 = vld [vmem:[%s259 + $0x14] sm:$0xf]
      %v281 = vld [vmem:[%s259 + $0x18] sm:$0xf]
      %v282 = vld [vmem:[%s259 + $0x1c] sm:$0xf]
      %v283 = vld [vmem:[%s259 + $0x20] sm:$0xf]
      %v284 = vld [vmem:[%s259 + $0x24] sm:$0xf]
      %v285 = vld [vmem:[%s259 + $0x28] sm:$0xf]
      %v286 = vld [vmem:[%s259 + $0x2c] sm:$0xf]
      %v287 = vld [vmem:[%s259 + $0x30] sm:$0xf]
      %v288 = vld [vmem:[%s259 + $0x34] sm:$0xf]
      %v289 = vld [vmem:[%s259 + $0x38] sm:$0xf]
      %v290 = vld [vmem:[%s259 + $0x3c] sm:$0xf]
      %v291 = vunpack.c.l.bf16 %v275
      %v292 = vunpack.c.l.bf16 %v276
      %v293 = vunpack.c.l.bf16 %v277
      %v294 = vunpack.c.l.bf16 %v278
      %v295 = vunpack.c.l.bf16 %v279
      %v296 = vunpack.c.l.bf16 %v280
      %v297 = vunpack.c.l.bf16 %v281
      %v298 = vunpack.c.l.bf16 %v282
      %v299 = vunpack.c.l.bf16 %v283
      %v300 = vunpack.c.l.bf16 %v284
      %v301 = vunpack.c.l.bf16 %v285
      %v302 = vunpack.c.l.bf16 %v286
      %v303 = vunpack.c.l.bf16 %v287
      %v304 = vunpack.c.l.bf16 %v288
      %v305 = vunpack.c.l.bf16 %v289
      %v306 = vunpack.c.l.bf16 %v290
      %v307 = vld [vmem:[%s1] sm:$0x1]
      %v309 = vperm.slane %v307, 0
      %v311 = vmul.f32 %v291, %v309
      %v312 = vmul.f32 %v292, %v309
      %v313 = vmul.f32 %v293, %v309
      %v314 = vmul.f32 %v294, %v309
      %v315 = vmul.f32 %v295, %v309
      %v316 = vmul.f32 %v296, %v309
      %v317 = vmul.f32 %v297, %v309
      %v318 = vmul.f32 %v298, %v309
      %v319 = vmul.f32 %v299, %v309
      %v320 = vmul.f32 %v300, %v309
      %v321 = vmul.f32 %v301, %v309
      %v322 = vmul.f32 %v302, %v309
      %v323 = vmul.f32 %v303, %v309
      %v324 = vmul.f32 %v304, %v309
      %v325 = vmul.f32 %v305, %v309
      %v326 = vmul.f32 %v306, %v309
      %v327 = vld [vmem:[%s2] sm:$0x1]
      %v329 = vperm.slane %v327, 0
      %v331 = vadd.f32 %v311, %v329
      %v332 = vadd.f32 %v312, %v329
      %v333 = vadd.f32 %v313, %v329
      %v334 = vadd.f32 %v314, %v329
      %v335 = vadd.f32 %v315, %v329
      %v336 = vadd.f32 %v316, %v329
      %v337 = vadd.f32 %v317, %v329
      %v338 = vadd.f32 %v318, %v329
      %v339 = vadd.f32 %v319, %v329
      %v340 = vadd.f32 %v320, %v329
      %v341 = vadd.f32 %v321, %v329
      %v342 = vadd.f32 %v322, %v329
      %v343 = vadd.f32 %v323, %v329
      %v344 = vadd.f32 %v324, %v329
      %v345 = vadd.f32 %v325, %v329
      %v346 = vadd.f32 %v326, %v329
      %v347 = vmax.f32 %v331, 0.0
      %v348 = vmax.f32 %v332, 0.0
      %v349 = vmax.f32 %v333, 0.0
      %v350 = vmax.f32 %v334, 0.0
      %v351 = vmax.f32 %v335, 0.0
      %v352 = vmax.f32 %v336, 0.0
      %v353 = vmax.f32 %v337, 0.0
      %v354 = vmax.f32 %v338, 0.0
      %v355 = vmax.f32 %v339, 0.0
      %v356 = vmax.f32 %v340, 0.0
      %v357 = vmax.f32 %v341, 0.0
      %v358 = vmax.f32 %v342, 0.0
      %v359 = vmax.f32 %v343, 0.0
      %v360 = vmax.f32 %v344, 0.0
      %v361 = vmax.f32 %v345, 0.0
      %v362 = vmax.f32 %v346, 0.0
      %v363 = vpack.c.bf16 %v348, %v347
      %v364 = vpack.c.bf16 %v350, %v349
      %v365 = vpack.c.bf16 %v352, %v351
      %v366 = vpack.c.bf16 %v354, %v353
      %v367 = vpack.c.bf16 %v356, %v355
      %v368 = vpack.c.bf16 %v358, %v357
      %v369 = vpack.c.bf16 %v360, %v359
      %v370 = vpack.c.bf16 %v362, %v361
      %v371 = vld [vmem:[%s3] sm:$0xf]
      %v372 = vld [vmem:[%s3 + $0x4] sm:$0xf]
      %v373 = vld [vmem:[%s3 + $0x8] sm:$0xf]
      %v374 = vld [vmem:[%s3 + $0xc] sm:$0xf]
      %v375 = vld [vmem:[%s3 + $0x10] sm:$0xf]
      %v376 = vld [vmem:[%s3 + $0x14] sm:$0xf]
      %v377 = vld [vmem:[%s3 + $0x18] sm:$0xf]
      %v378 = vld [vmem:[%s3 + $0x1c] sm:$0xf]
      %v379 = vld [vmem:[%s3 + $0x20] sm:$0xf]
      %v380 = vld [vmem:[%s3 + $0x24] sm:$0xf]
      %v381 = vld [vmem:[%s3 + $0x28] sm:$0xf]
      %v382 = vld [vmem:[%s3 + $0x2c] sm:$0xf]
      %v383 = vld [vmem:[%s3 + $0x30] sm:$0xf]
      %v384 = vld [vmem:[%s3 + $0x34] sm:$0xf]
      %v385 = vld [vmem:[%s3 + $0x38] sm:$0xf]
      %v386 = vld [vmem:[%s3 + $0x3c] sm:$0xf]
      %v403 = vunpack.c.l.b16 %v371
      %v404 = vunpack.c.l.b16 %v372
      %v405 = vunpack.c.l.b16 %v373
      %v406 = vunpack.c.l.b16 %v374
      %v407 = vunpack.c.l.b16 %v375
      %v408 = vunpack.c.l.b16 %v376
      %v409 = vunpack.c.l.b16 %v377
      %v410 = vunpack.c.l.b16 %v378
      %v411 = vunpack.c.l.b16 %v379
      %v412 = vunpack.c.l.b16 %v380
      %v413 = vunpack.c.l.b16 %v381
      %v414 = vunpack.c.l.b16 %v382
      %v415 = vunpack.c.l.b16 %v383
      %v416 = vunpack.c.l.b16 %v384
      %v417 = vunpack.c.l.b16 %v385
      %v418 = vunpack.c.l.b16 %v386
      %v419 = vpack.c.b16 %v404, %v403
      %v420 = vpack.c.b16 %v406, %v405
      %v421 = vpack.c.b16 %v408, %v407
      %v422 = vpack.c.b16 %v410, %v409
      %v423 = vpack.c.b16 %v412, %v411
      %v424 = vpack.c.b16 %v414, %v413
      %v425 = vpack.c.b16 %v416, %v415
      %v426 = vpack.c.b16 %v418, %v417
      %435 = vmatpush.bf16.msra.mxu0 %v426
      %436 = vmatpush.bf16.msra.mxu0 %v425
      %437 = vmatpush.bf16.msra.mxu0 %v424
      %438 = vmatpush.bf16.msra.mxu0 %v423
      %439 = vmatpush.bf16.msra.mxu0 %v422
      %440 = vmatpush.bf16.msra.mxu0 %v421
      %441 = vmatpush.bf16.msra.mxu0 %v420
      %442 = vmatpush.bf16.msra.mxu0 %v419
      %443 = vmatmul.bf16.gmra.mxu0 %v363
      %v444 = vpop.f32.mrf.mxu0
      %v445 = vadd.f32 0.0, %v444
      %v446 = vpop.f32.mrf.mxu0
      %v447 = vadd.f32 0.0, %v446
      %448 = vmatmul.bf16.gmra.mxu0 %v364
      %v449 = vpop.f32.mrf.mxu0
      %v450 = vadd.f32 0.0, %v449
      %v451 = vpop.f32.mrf.mxu0
      %v452 = vadd.f32 0.0, %v451
      %453 = vmatmul.bf16.gmra.mxu0 %v365
      %v454 = vpop.f32.mrf.mxu0
      %v455 = vadd.f32 0.0, %v454
      %v456 = vpop.f32.mrf.mxu0
      %v457 = vadd.f32 0.0, %v456
      %458 = vmatmul.bf16.gmra.mxu0 %v366
      %v459 = vpop.f32.mrf.mxu0
      %v460 = vadd.f32 0.0, %v459
      %v461 = vpop.f32.mrf.mxu0
      %v462 = vadd.f32 0.0, %v461
      %463 = vmatmul.bf16.gmra.mxu0 %v367
      %v464 = vpop.f32.mrf.mxu0
      %v465 = vadd.f32 0.0, %v464
      %v466 = vpop.f32.mrf.mxu0
      %v467 = vadd.f32 0.0, %v466
      %468 = vmatmul.bf16.gmra.mxu0 %v368
      %v469 = vpop.f32.mrf.mxu0
      %v470 = vadd.f32 0.0, %v469
      %v471 = vpop.f32.mrf.mxu0
      %v472 = vadd.f32 0.0, %v471
      %473 = vmatmul.bf16.gmra.mxu0 %v369
      %v474 = vpop.f32.mrf.mxu0
      %v475 = vadd.f32 0.0, %v474
      %v476 = vpop.f32.mrf.mxu0
      %v477 = vadd.f32 0.0, %v476
      %478 = vmatmul.bf16.gmra.mxu0 %v370
      %v479 = vpop.f32.mrf.mxu0
      %v480 = vadd.f32 0.0, %v479
      %v481 = vpop.f32.mrf.mxu0
      %v482 = vadd.f32 0.0, %v481
      %483 = vdwg.mxu0
      %v484 = vpack.c.bf16 %v445, %v445
      %v485 = vpack.c.bf16 %v447, %v447
      %v486 = vpack.c.bf16 %v450, %v450
      %v487 = vpack.c.bf16 %v452, %v452
      %v488 = vpack.c.bf16 %v455, %v455
      %v489 = vpack.c.bf16 %v457, %v457
      %v490 = vpack.c.bf16 %v460, %v460
      %v491 = vpack.c.bf16 %v462, %v462
      %v492 = vpack.c.bf16 %v465, %v465
      %v493 = vpack.c.bf16 %v467, %v467
      %v494 = vpack.c.bf16 %v470, %v470
      %v495 = vpack.c.bf16 %v472, %v472
      %v496 = vpack.c.bf16 %v475, %v475
      %v497 = vpack.c.bf16 %v477, %v477
      %v498 = vpack.c.bf16 %v480, %v480
      %v499 = vpack.c.bf16 %v482, %v482
      %500 = vst [vmem:[%s269] sm:$0xf] %v484
      %501 = vst [vmem:[%s269 + $0x4] sm:$0xf] %v485
      %502 = vst [vmem:[%s269 + $0x8] sm:$0xf] %v486
      %503 = vst [vmem:[%s269 + $0xc] sm:$0xf] %v487
      %504 = vst [vmem:[%s269 + $0x10] sm:$0xf] %v488
      %505 = vst [vmem:[%s269 + $0x14] sm:$0xf] %v489
      %506 = vst [vmem:[%s269 + $0x18] sm:$0xf] %v490
      %507 = vst [vmem:[%s269 + $0x1c] sm:$0xf] %v491
      %508 = vst [vmem:[%s269 + $0x20] sm:$0xf] %v492
      %509 = vst [vmem:[%s269 + $0x24] sm:$0xf] %v493
      %510 = vst [vmem:[%s269 + $0x28] sm:$0xf] %v494
      %511 = vst [vmem:[%s269 + $0x2c] sm:$0xf] %v495
      %512 = vst [vmem:[%s269 + $0x30] sm:$0xf] %v496
      %513 = vst [vmem:[%s269 + $0x34] sm:$0xf] %v497
      %514 = vst [vmem:[%s269 + $0x38] sm:$0xf] %v498
      %515 = vst [vmem:[%s269 + $0x3c] sm:$0xf] %v499
      %p516 = scmp.eq.s32.totalorder %s22, 0
      // Predicated region
      $region37: #{bottleneck_ibn_forward.6} parent=35 // pred_check
        %p517 = pneg %p516
      $region38: #{bottleneck_ibn_forward.6} parent=35 // pred_check_branch
        %519 = sbr.rel (%p517) target = $region40
      $region39: #{bottleneck_ibn_forward.6} parent=35 // pred_region
        %520 = vst [vmem:[#allocation2] sm:$0x3] 0.0
      $region40: #{bottleneck_ibn_forward.6} parent=35 // pred_fallthru
        _
      %v521 = vld [vmem:[#allocation2] sm:$0x1]
      %v522 = vadd.f32 %v445, %v447
      %v523 = vadd.f32 %v522, %v450
      %v524 = vadd.f32 %v523, %v452
      %v525 = vadd.f32 %v524, %v455
      %v526 = vadd.f32 %v525, %v457
      %v527 = vadd.f32 %v526, %v460
      %v528 = vadd.f32 %v527, %v462
      %v529 = vadd.f32 %v528, %v465
      %v530 = vadd.f32 %v529, %v467
      %v531 = vadd.f32 %v530, %v470
      %v532 = vadd.f32 %v531, %v472
      %v533 = vadd.f32 %v532, %v475
      %v534 = vadd.f32 %v533, %v477
      %v535 = vadd.f32 %v534, %v480
      %v536 = vadd.f32 %v535, %v482
      %v537 = vrot.slane %v536, 4
      %v538 = vadd.f32 %v536, %v537
      %v539 = vrot.slane %v538, 2
      %v540 = vadd.f32 %v538, %v539
      %v541 = vrot.slane %v540, 1
      %v542 = vadd.f32 %v540, %v541
      %v543 = vadd.f32 %v521, %v542
      %544 = vst [vmem:[#allocation2] sm:$0x1] %v543
      %v545 = vld [vmem:[#allocation2 + $0x1] sm:$0x1]
      %v546 = vmul.f32 %v445, %v445
      %v547 = vmul.f32 %v447, %v447
      %v548 = vmul.f32 %v450, %v450
      %v549 = vmul.f32 %v452, %v452
      %v550 = vmul.f32 %v455, %v455
      %v551 = vmul.f32 %v457, %v457
      %v552 = vmul.f32 %v460, %v460
      %v553 = vmul.f32 %v462, %v462
      %v554 = vmul.f32 %v465, %v465
      %v555 = vmul.f32 %v467, %v467
      %v556 = vmul.f32 %v470, %v470
      %v557 = vmul.f32 %v472, %v472
      %v558 = vmul.f32 %v475, %v475
      %v559 = vmul.f32 %v477, %v477
      %v560 = vmul.f32 %v480, %v480
      %v561 = vmul.f32 %v482, %v482
      %v562 = vadd.f32 %v546, %v547
      %v563 = vadd.f32 %v562, %v548
      %v564 = vadd.f32 %v563, %v549
      %v565 = vadd.f32 %v564, %v550
      %v566 = vadd.f32 %v565, %v551
      %v567 = vadd.f32 %v566, %v552
      %v568 = vadd.f32 %v567, %v553
      %v569 = vadd.f32 %v568, %v554
      %v570 = vadd.f32 %v569, %v555
      %v571 = vadd.f32 %v570, %v556
      %v572 = vadd.f32 %v571, %v557
      %v573 = vadd.f32 %v572, %v558
      %v574 = vadd.f32 %v573, %v559
      %v575 = vadd.f32 %v574, %v560
      %v576 = vadd.f32 %v575, %v561
      %v577 = vrot.slane %v576, 4
      %v578 = vadd.f32 %v576, %v577
      %v579 = vrot.slane %v578, 2
      %v580 = vadd.f32 %v578, %v579
      %v581 = vrot.slane %v580, 1
      %v582 = vadd.f32 %v580, %v581
      %v583 = vadd.f32 %v545, %v582
      %584 = vst [vmem:[#allocation2 + $0x1] sm:$0x1] %v583
      %p585 = scmp.eq.s32.totalorder %s22, 1
      // Predicated region
      $region41: #{bottleneck_ibn_forward.6} parent=35 // pred_check
        %p586 = pneg %p585
      $region42: #{bottleneck_ibn_forward.6} parent=35 // pred_check_branch
        %588 = sbr.rel (%p586) target = $region44
      $region43: #{bottleneck_ibn_forward.6} parent=35 // pred_region
        %v589 = vld [vmem:[#allocation2] sm:$0x3]
        %590 = vst [vmem:[%s274] sm:$0x3] %v589
      $region44: #{bottleneck_ibn_forward.6} parent=35 // pred_fallthru
        _
      %s591 = smul.u32 16, %s22
      %p592 = scmp.lt.s32.totalorder %s21, 1
      %s593 = scalar_select %p592, %s21, 1
      %p594 = scmp.lt.s32.totalorder %s591, 31
      %s595 = scalar_select %p594, %s591, 31
      %s596 = smul.addr %s593, 32
      %s597 = sadd.s32 %s595, %s596
      %s598 = smul.addr %s597, 4
      %s599 = scalar_lea.vmem %s4, %s598
      %p600 = scmp.lt.s32.totalorder %s21, 1
      %s601 = scalar_select %p600, %s21, 1
      %s602 = smul.addr %s601, 2
      %s603 = scalar_lea.vmem %s5, %s602
      // Predicated region
      $region45: #{bottleneck_ibn_forward.6} parent=35 // pred_check
        %p604 = pneg %p140
      $region46: #{bottleneck_ibn_forward.6} parent=35 // pred_check_branch
        %606 = sbr.rel (%p604) target = $region48
      $region47: #{bottleneck_ibn_forward.6} parent=35 // pred_region
        %s607 = smul.u32 16, %s22
      $region48: #{bottleneck_ibn_forward.6} parent=35 // pred_fallthru
        _
      // Predicated region
      $region49: #{bottleneck_ibn_forward.6} parent=35 // pred_check
        %p608 = pneg %p166
      $region50: #{bottleneck_ibn_forward.6} parent=35 // pred_check_branch
        %610 = sbr.rel (%p608) target = $region52
      $region51: #{bottleneck_ibn_forward.6} parent=35 // pred_region
        _
      $region52: #{bottleneck_ibn_forward.6} parent=35 // pred_fallthru
        _
    $region36: #{bottleneck_ibn_forward.6} parent=5 // pred_fallthru
      _
    %p611 = scmp.le.s32.totalorder 2, %s12
    // Predicated region
    $region53: #{bottleneck_ibn_forward.6} parent=5 // pred_check
      %p612 = pneg %p611
    $region54: #{bottleneck_ibn_forward.6} parent=5 // pred_check_branch
      %614 = sbr.rel (%p612) target = $region56
    $region55: #{bottleneck_ibn_forward.6} parent=5 // pred_region
      %s615 = ssub.s32 %s12, 2
      // Predicated region
      $region57: #{bottleneck_ibn_forward.6} parent=55 // pred_check
        %p616 = pneg %p146
      $region58: #{bottleneck_ibn_forward.6} parent=55 // pred_check_branch
        %618 = sbr.rel (%p616) target = $region60
      $region59: #{bottleneck_ibn_forward.6} parent=55 // pred_region
        %s619 = smul.u32 16, %s24
        %p620 = scmp.lt.s32.totalorder %s23, 1
        %s621 = scalar_select %p620, %s23, 1
        %p622 = scmp.lt.s32.totalorder %s619, 31
        %s623 = scalar_select %p622, %s619, 31
        %s624 = smul.addr %s621, 32
        %s625 = sadd.s32 %s623, %s624
        %s626 = smul.addr %s625, 4
        %s627 = scalar_lea.vmem %s4, %s626
      $region60: #{bottleneck_ibn_forward.6} parent=55 // pred_fallthru
        _
      // Predicated region
      $region61: #{bottleneck_ibn_forward.6} parent=55 // pred_check
        %p628 = pneg %p172
      $region62: #{bottleneck_ibn_forward.6} parent=55 // pred_check_branch
        %630 = sbr.rel (%p628) target = $region64
      $region63: #{bottleneck_ibn_forward.6} parent=55 // pred_region
        %p631 = scmp.lt.s32.totalorder %s23, 1
        %s632 = scalar_select %p631, %s23, 1
        %s633 = smul.addr %s632, 2
        %s634 = scalar_lea.vmem %s5, %s633
      $region64: #{bottleneck_ibn_forward.6} parent=55 // pred_fallthru
        _
    $region56: #{bottleneck_ibn_forward.6} parent=5 // pred_fallthru
      _
  $region6: #{bottleneck_ibn_forward.6} parent=0 // loop_footer
    %s16 = sadd.s32 1, %s12
  $region7: #{bottleneck_ibn_forward.6} parent=0 // loop_footer_branch
    %11 = sbr.rel target = $region3
  $region8: #{bottleneck_ibn_forward.6} parent=0 // loop_exit
    _

// kernel: bottleneck_ibn_forward.7
$region0: #{bottleneck_ibn_forward.7}
  #allocation0 [shape = 'u32[]', space=smem, size = 0x4, offset = 0x4, fixed_abs, tag = 'smem constant byte address 0x4 - core index']
  #allocation1 [shape = 'u32[72,128]{1,0:T(1,128)}', space=vmem, size = 0x9000, scoped, tag = 'internal scratch']
  %s0 = inlined_call_operand.vmem [shape: bf16[2,256,128], index: 0, kind: input, shape index: {}]
  %s1 = inlined_call_operand.vmem [shape: bf16[2,256,128], index: 1, kind: input, shape index: {}, may-alias: {1,4}]
  %s2 = inlined_call_operand.vmem [shape: f32[1,1,128], index: 2, kind: input, shape index: {}]
  %s3 = inlined_call_operand.vmem [shape: f32[1,1,128], index: 3, kind: input, shape index: {}]
  %s4 = inlined_call_operand.vmem [shape: bf16[2,256,128], index: 4, kind: output, shape index: {}, may-alias: {1,4}]
  %s5 = sld [smem:[#allocation0]]
  $region49: #{bottleneck_ibn_forward.7} parent=0
    _
  %s7 = ssub.s32 1, %s5
  %s8 = scalar_select 0, %s7, %s5
  loop: start=0, step=1, limit=4
  $region2: #{bottleneck_ibn_forward.7} parent=0 // loop_pre_header
    _
  $region3: #{bottleneck_ibn_forward.7} parent=0 // loop_header
    %s10 = sphi 0, %s14
    %p11 = scmp.ge.s32.totalorder %s10, 4
    %s17 = sphi 0, %s29
    %s18 = sphi 0, %s25
    %s19 = sphi 0, %s17
    %s20 = sphi 0, %s18
    %s21 = sphi 0, %s19
    %s22 = sphi 0, %s20
    %s34 = sphi 0, %s36
    %s37 = sphi 0, %s34
    %s38 = sphi 0, %s37
    %s54 = sphi 0, %s38
    %s62 = sphi 0, %s64
    %s65 = sphi 0, %s62
    %s66 = sphi 0, %s65
    %s82 = sphi 0, %s66
    %s86 = sphi 0, %s86
    %s88 = sphi 0, %s86
    %s89 = sphi 0, %s88
    %s103 = sphi 0, %s89
    %s107 = sphi 0, %s107
    %s109 = sphi 0, %s107
    %s110 = sphi 0, %s109
    %s124 = sphi 0, %s110
    %s132 = sphi 0, %s134
    %s135 = sphi 0, %s132
    %s136 = sphi 0, %s135
    %s152 = sphi 0, %s136
  $region4: #{bottleneck_ibn_forward.7} parent=0 // loop_header_branch
    %13 = sbr.rel (%p11) target = $region8
  $region5: #{bottleneck_ibn_forward.7} parent=0 // loop_body
    %s15 = ssub.s32 %s10, 1
    %s16 = ssub.s32 %s10, 2
    %s23 = sadd.s32 1, %s18
    %p24 = scmp.ge.s32.totalorder %s23, 1
    %s25 = scalar_select %p24, 0, %s23
    %s26 = sadd.s32 1, %s17
    %s27 = scalar_select %p24, %s26, %s17
    %p28 = scmp.ge.s32.totalorder %s27, 2
    %s29 = scalar_select %p28, 0, %s27
    %s30 = ssub.s32 %s17, %s29
    %s31 = ssub.s32 %s18, %s25
    %s32 = sor.u32 %s30, %s31
    %p33 = scmp.eq.s32.totalorder %s32, 0
    %s35 = sadd.s32 %s34, 1
    %s36 = scalar_select %p33, %s34, %s35
    %p39 = pneg %p33
    %p40 = scmp.eq.s32.totalorder %s10, 1
    %p41 = por %p39, %p40
    %p42 = scmp.ne.s32.totalorder %s34, %s37
    %p43 = scmp.eq.s32.totalorder %s10, 0
    %p44 = por %p42, %p43
    %p45 = scmp.ne.s32.totalorder %s34, %s37
    %p46 = scmp.eq.s32.totalorder %s15, 1
    %p47 = por %p45, %p46
    %p48 = scmp.ne.s32.totalorder %s37, %s38
    %p49 = scmp.eq.s32.totalorder %s15, 0
    %p50 = por %p48, %p49
    %p51 = scmp.ne.s32.totalorder %s37, %s38
    %p52 = scmp.eq.s32.totalorder %s16, 1
    %p53 = por %p51, %p52
    %p55 = scmp.ne.s32.totalorder %s38, %s54
    %p56 = scmp.eq.s32.totalorder %s16, 0
    %p57 = por %p55, %p56
    %s58 = ssub.s32 %s17, %s29
    %s59 = ssub.s32 %s18, %s25
    %s60 = sor.u32 %s58, %s59
    %p61 = scmp.eq.s32.totalorder %s60, 0
    %s63 = sadd.s32 %s62, 1
    %s64 = scalar_select %p61, %s62, %s63
    %p67 = pneg %p61
    %p68 = scmp.eq.s32.totalorder %s10, 1
    %p69 = por %p67, %p68
    %p70 = scmp.ne.s32.totalorder %s62, %s65
    %p71 = scmp.eq.s32.totalorder %s10, 0
    %p72 = por %p70, %p71
    %p73 = scmp.ne.s32.totalorder %s62, %s65
    %p74 = scmp.eq.s32.totalorder %s15, 1
    %p75 = por %p73, %p74
    %p76 = scmp.ne.s32.totalorder %s65, %s66
    %p77 = scmp.eq.s32.totalorder %s15, 0
    %p78 = por %p76, %p77
    %p79 = scmp.ne.s32.totalorder %s65, %s66
    %p80 = scmp.eq.s32.totalorder %s16, 1
    %p81 = por %p79, %p80
    %p83 = scmp.ne.s32.totalorder %s66, %s82
    %p84 = scmp.eq.s32.totalorder %s16, 0
    %p85 = por %p83, %p84
    %s87 = sadd.s32 %s86, 1
    %p90 = scmp.eq.s32.totalorder %s10, 1
    %p91 = scmp.ne.s32.totalorder %s86, %s88
    %p92 = scmp.eq.s32.totalorder %s10, 0
    %p93 = por %p91, %p92
    %p94 = scmp.ne.s32.totalorder %s86, %s88
    %p95 = scmp.eq.s32.totalorder %s15, 1
    %p96 = por %p94, %p95
    %p97 = scmp.ne.s32.totalorder %s88, %s89
    %p98 = scmp.eq.s32.totalorder %s15, 0
    %p99 = por %p97, %p98
    %p100 = scmp.ne.s32.totalorder %s88, %s89
    %p101 = scmp.eq.s32.totalorder %s16, 1
    %p102 = por %p100, %p101
    %p104 = scmp.ne.s32.totalorder %s89, %s103
    %p105 = scmp.eq.s32.totalorder %s16, 0
    %p106 = por %p104, %p105
    %s108 = sadd.s32 %s107, 1
    %p111 = scmp.eq.s32.totalorder %s10, 1
    %p112 = scmp.ne.s32.totalorder %s107, %s109
    %p113 = scmp.eq.s32.totalorder %s10, 0
    %p114 = por %p112, %p113
    %p115 = scmp.ne.s32.totalorder %s107, %s109
    %p116 = scmp.eq.s32.totalorder %s15, 1
    %p117 = por %p115, %p116
    %p118 = scmp.ne.s32.totalorder %s109, %s110
    %p119 = scmp.eq.s32.totalorder %s15, 0
    %p120 = por %p118, %p119
    %p121 = scmp.ne.s32.totalorder %s109, %s110
    %p122 = scmp.eq.s32.totalorder %s16, 1
    %p123 = por %p121, %p122
    %p125 = scmp.ne.s32.totalorder %s110, %s124
    %p126 = scmp.eq.s32.totalorder %s16, 0
    %p127 = por %p125, %p126
    %s128 = ssub.s32 %s17, %s29
    %s129 = ssub.s32 %s18, %s25
    %s130 = sor.u32 %s128, %s129
    %p131 = scmp.eq.s32.totalorder %s130, 0
    %s133 = sadd.s32 %s132, 1
    %s134 = scalar_select %p131, %s132, %s133
    %p137 = pneg %p131
    %p138 = scmp.eq.s32.totalorder %s10, 1
    %p139 = por %p137, %p138
    %p140 = scmp.ne.s32.totalorder %s132, %s135
    %p141 = scmp.eq.s32.totalorder %s10, 0
    %p142 = por %p140, %p141
    %p143 = scmp.ne.s32.totalorder %s132, %s135
    %p144 = scmp.eq.s32.totalorder %s15, 1
    %p145 = por %p143, %p144
    %p146 = scmp.ne.s32.totalorder %s135, %s136
    %p147 = scmp.eq.s32.totalorder %s15, 0
    %p148 = por %p146, %p147
    %p149 = scmp.ne.s32.totalorder %s135, %s136
    %p150 = scmp.eq.s32.totalorder %s16, 1
    %p151 = por %p149, %p150
    %p153 = scmp.ne.s32.totalorder %s136, %s152
    %p154 = scmp.eq.s32.totalorder %s16, 0
    %p155 = por %p153, %p154
    %p156 = scmp.le.s32.totalorder 1, %s10
    %p157 = scmp.lt.s32.totalorder %s10, 3
    %p158 = pnand %p156, %p157
    %p159 = pneg %p158
    // Predicated region
    $region9: #{bottleneck_ibn_forward.7} parent=5 // pred_check
      _
    $region10: #{bottleneck_ibn_forward.7} parent=5 // pred_check_branch
      %161 = sbr.rel (%p158) target = $region12
    $region11: #{bottleneck_ibn_forward.7} parent=5 // pred_region
      %s162 = ssub.s32 %s10, 1
      // Predicated region
      $region13: #{bottleneck_ibn_forward.7} parent=11 // pred_check
        %p163 = pneg %p99
      $region14: #{bottleneck_ibn_forward.7} parent=11 // pred_check_branch
        %165 = sbr.rel (%p163) target = $region16
      $region15: #{bottleneck_ibn_forward.7} parent=11 // pred_region
        _
      $region16: #{bottleneck_ibn_forward.7} parent=11 // pred_fallthru
        _
      // Predicated region
      $region17: #{bottleneck_ibn_forward.7} parent=11 // pred_check
        %p166 = pneg %p120
      $region18: #{bottleneck_ibn_forward.7} parent=11 // pred_check_branch
        %168 = sbr.rel (%p166) target = $region20
      $region19: #{bottleneck_ibn_forward.7} parent=11 // pred_region
        _
      $region20: #{bottleneck_ibn_forward.7} parent=11 // pred_fallthru
        _
    $region12: #{bottleneck_ibn_forward.7} parent=5 // pred_fallthru
      _
    %p169 = scmp.lt.s32.totalorder %s10, 2
    // Predicated region
    $region21: #{bottleneck_ibn_forward.7} parent=5 // pred_check
      %p170 = pneg %p169
    $region22: #{bottleneck_ibn_forward.7} parent=5 // pred_check_branch
      %172 = sbr.rel (%p170) target = $region24
    $region23: #{bottleneck_ibn_forward.7} parent=5 // pred_region
      // Predicated region
      $region25: #{bottleneck_ibn_forward.7} parent=23 // pred_check
        %p173 = pneg %p44
      $region26: #{bottleneck_ibn_forward.7} parent=23 // pred_check_branch
        %175 = sbr.rel (%p173) target = $region28
      $region27: #{bottleneck_ibn_forward.7} parent=23 // pred_region
        %s176 = smul.u32 32, %s18
        %p177 = scmp.lt.s32.totalorder %s17, 1
        %s178 = scalar_select %p177, %s17, 1
        %p179 = scmp.lt.s32.totalorder %s176, 31
        %s180 = scalar_select %p179, %s176, 31
        %s181 = smul.addr %s178, 32
        %s182 = sadd.s32 %s180, %s181
        %s183 = smul.addr %s182, 4
        %s184 = scalar_lea.vmem %s0, %s183
        %s185 = smul.u32 32, %s18
      $region28: #{bottleneck_ibn_forward.7} parent=23 // pred_fallthru
        _
      // Predicated region
      $region29: #{bottleneck_ibn_forward.7} parent=23 // pred_check
        %p186 = pneg %p72
      $region30: #{bottleneck_ibn_forward.7} parent=23 // pred_check_branch
        %188 = sbr.rel (%p186) target = $region32
      $region31: #{bottleneck_ibn_forward.7} parent=23 // pred_region
        %s189 = smul.u32 32, %s18
        %p190 = scmp.lt.s32.totalorder %s17, 1
        %s191 = scalar_select %p190, %s17, 1
        %p192 = scmp.lt.s32.totalorder %s189, 31
        %s193 = scalar_select %p192, %s189, 31
        %s194 = smul.addr %s191, 32
        %s195 = sadd.s32 %s193, %s194
        %s196 = smul.addr %s195, 4
        %s197 = scalar_lea.vmem %s1, %s196
        %s198 = smul.u32 32, %s18
      $region32: #{bottleneck_ibn_forward.7} parent=23 // pred_fallthru
        _
    $region24: #{bottleneck_ibn_forward.7} parent=5 // pred_fallthru
      _
    %p199 = scmp.le.s32.totalorder 1, %s10
    %p200 = scmp.lt.s32.totalorder %s10, 3
    %p201 = pnand %p199, %p200
    %p202 = pneg %p201
    // Predicated region
    $region33: #{bottleneck_ibn_forward.7} parent=5 // pred_check
      _
    $region34: #{bottleneck_ibn_forward.7} parent=5 // pred_check_branch
      %204 = sbr.rel (%p201) target = $region36
    $region35: #{bottleneck_ibn_forward.7} parent=5 // pred_region
      %s205 = ssub.s32 %s10, 1
      %s206 = smul.u32 32, %s20
      %p207 = scmp.lt.s32.totalorder %s19, 1
      %s208 = scalar_select %p207, %s19, 1
      %p209 = scmp.lt.s32.totalorder %s206, 31
      %s210 = scalar_select %p209, %s206, 31
      %s211 = smul.addr %s208, 32
      %s212 = sadd.s32 %s210, %s211
      %s213 = smul.addr %s212, 4
      %s214 = scalar_lea.vmem %s0, %s213
      %p215 = pneg %p50
      %p216 = pneg %p47
      %s217 = smul.u32 32, %s20
      %p218 = scmp.lt.s32.totalorder %s19, 1
      %s219 = scalar_select %p218, %s19, 1
      %p220 = scmp.lt.s32.totalorder %s217, 31
      %s221 = scalar_select %p220, %s217, 31
      %s222 = smul.addr %s219, 32
      %s223 = sadd.s32 %s221, %s222
      %s224 = smul.addr %s223, 4
      %s225 = scalar_lea.vmem %s1, %s224
      %p226 = pneg %p78
      %p227 = pneg %p75
      %p228 = pneg %p99
      %p229 = pneg %p96
      %p230 = pneg %p120
      %p231 = pneg %p117
      %p232 = pneg %p148
      %p233 = pneg %p145
      %s234 = smul.u32 32, %s20
      %p235 = scmp.lt.s32.totalorder %s19, 1
      %s236 = scalar_select %p235, %s19, 1
      %p237 = scmp.lt.s32.totalorder %s234, 31
      %s238 = scalar_select %p237, %s234, 31
      %s239 = smul.addr %s236, 32
      %s240 = sadd.s32 %s238, %s239
      %s241 = smul.addr %s240, 4
      %s242 = scalar_lea.vmem %s4, %s241
      %s243 = smul.u32 32, %s20
      %p244 = scmp.lt.s32.totalorder %s19, 1
      %s245 = scalar_select %p244, %s19, 1
      %p246 = scmp.lt.s32.totalorder %s243, 31
      %s247 = scalar_select %p246, %s243, 31
      %s248 = smul.addr %s245, 32
      %s249 = sadd.s32 %s247, %s248
      %s250 = smul.addr %s249, 4
      %s251 = scalar_lea.vmem %s0, %s250
      %s252 = smul.u32 32, %s20
      %s253 = smul.u32 32, %s20
      %p254 = scmp.lt.s32.totalorder %s19, 1
      %s255 = scalar_select %p254, %s19, 1
      %p256 = scmp.lt.s32.totalorder %s253, 31
      %s257 = scalar_select %p256, %s253, 31
      %s258 = smul.addr %s255, 32
      %s259 = sadd.s32 %s257, %s258
      %s260 = smul.addr %s259, 4
      %s261 = scalar_lea.vmem %s1, %s260
      %s262 = smul.u32 32, %s20
      %s263 = smul.u32 32, %s20
      %p264 = scmp.lt.s32.totalorder %s19, 1
      %s265 = scalar_select %p264, %s19, 1
      %p266 = scmp.lt.s32.totalorder %s263, 31
      %s267 = scalar_select %p266, %s263, 31
      %s268 = smul.addr %s265, 32
      %s269 = sadd.s32 %s267, %s268
      %s270 = smul.addr %s269, 4
      %s271 = scalar_lea.vmem %s4, %s270
      %s272 = smul.u32 32, %s20
      %v273 = vld [vmem:[%s251] sm:$0xf]
      %v274 = vld [vmem:[%s251 + $0x4] sm:$0xf]
      %v275 = vld [vmem:[%s251 + $0x8] sm:$0xf]
      %v276 = vld [vmem:[%s251 + $0xc] sm:$0xf]
      %v277 = vld [vmem:[%s251 + $0x10] sm:$0xf]
      %v278 = vld [vmem:[%s251 + $0x14] sm:$0xf]
      %v279 = vld [vmem:[%s251 + $0x18] sm:$0xf]
      %v280 = vld [vmem:[%s251 + $0x1c] sm:$0xf]
      %v281 = vld [vmem:[%s251 + $0x20] sm:$0xf]
      %v282 = vld [vmem:[%s251 + $0x24] sm:$0xf]
      %v283 = vld [vmem:[%s251 + $0x28] sm:$0xf]
      %v284 = vld [vmem:[%s251 + $0x2c] sm:$0xf]
      %v285 = vld [vmem:[%s251 + $0x30] sm:$0xf]
      %v286 = vld [vmem:[%s251 + $0x34] sm:$0xf]
      %v287 = vld [vmem:[%s251 + $0x38] sm:$0xf]
      %v288 = vld [vmem:[%s251 + $0x3c] sm:$0xf]
      %v289 = vld [vmem:[%s251 + $0x40] sm:$0xf]
      %v290 = vld [vmem:[%s251 + $0x44] sm:$0xf]
      %v291 = vld [vmem:[%s251 + $0x48] sm:$0xf]
      %v292 = vld [vmem:[%s251 + $0x4c] sm:$0xf]
      %v293 = vld [vmem:[%s251 + $0x50] sm:$0xf]
      %v294 = vld [vmem:[%s251 + $0x54] sm:$0xf]
      %v295 = vld [vmem:[%s251 + $0x58] sm:$0xf]
      %v296 = vld [vmem:[%s251 + $0x5c] sm:$0xf]
      %v297 = vld [vmem:[%s251 + $0x60] sm:$0xf]
      %v298 = vld [vmem:[%s251 + $0x64] sm:$0xf]
      %v299 = vld [vmem:[%s251 + $0x68] sm:$0xf]
      %v300 = vld [vmem:[%s251 + $0x6c] sm:$0xf]
      %v301 = vld [vmem:[%s251 + $0x70] sm:$0xf]
      %v302 = vld [vmem:[%s251 + $0x74] sm:$0xf]
      %v303 = vld [vmem:[%s251 + $0x78] sm:$0xf]
      %v304 = vld [vmem:[%s251 + $0x7c] sm:$0xf]
      %v305 = vunpack.c.l.bf16 %v273
      %v306 = vunpack.c.l.bf16 %v274
      %v307 = vunpack.c.l.bf16 %v275
      %v308 = vunpack.c.l.bf16 %v276
      %v309 = vunpack.c.l.bf16 %v277
      %v310 = vunpack.c.l.bf16 %v278
      %v311 = vunpack.c.l.bf16 %v279
      %v312 = vunpack.c.l.bf16 %v280
      %v313 = vunpack.c.l.bf16 %v281
      %v314 = vunpack.c.l.bf16 %v282
      %v315 = vunpack.c.l.bf16 %v283
      %v316 = vunpack.c.l.bf16 %v284
      %v317 = vunpack.c.l.bf16 %v285
      %v318 = vunpack.c.l.bf16 %v286
      %v319 = vunpack.c.l.bf16 %v287
      %v320 = vunpack.c.l.bf16 %v288
      %v321 = vunpack.c.l.bf16 %v289
      %v322 = vunpack.c.l.bf16 %v290
      %v323 = vunpack.c.l.bf16 %v291
      %v324 = vunpack.c.l.bf16 %v292
      %v325 = vunpack.c.l.bf16 %v293
      %v326 = vunpack.c.l.bf16 %v294
      %v327 = vunpack.c.l.bf16 %v295
      %v328 = vunpack.c.l.bf16 %v296
      %v329 = vunpack.c.l.bf16 %v297
      %v330 = vunpack.c.l.bf16 %v298
      %v331 = vunpack.c.l.bf16 %v299
      %v332 = vunpack.c.l.bf16 %v300
      %v333 = vunpack.c.l.bf16 %v301
      %v334 = vunpack.c.l.bf16 %v302
      %v335 = vunpack.c.l.bf16 %v303
      %v336 = vunpack.c.l.bf16 %v304
      %v337 = vld [vmem:[%s2] sm:$0x1]
      %v339 = vperm.slane %v337, 0
      %v341 = vmul.f32 %v305, %v339
      %v342 = vmul.f32 %v306, %v339
      %v343 = vmul.f32 %v307, %v339
      %v344 = vmul.f32 %v308, %v339
      %v345 = vmul.f32 %v309, %v339
      %v346 = vmul.f32 %v310, %v339
      %v347 = vmul.f32 %v311, %v339
      %v348 = vmul.f32 %v312, %v339
      %v349 = vmul.f32 %v313, %v339
      %v350 = vmul.f32 %v314, %v339
      %v351 = vmul.f32 %v315, %v339
      %v352 = vmul.f32 %v316, %v339
      %v353 = vmul.f32 %v317, %v339
      %v354 = vmul.f32 %v318, %v339
      %v355 = vmul.f32 %v319, %v339
      %v356 = vmul.f32 %v320, %v339
      %v357 = vmul.f32 %v321, %v339
      %v358 = vmul.f32 %v322, %v339
      %v359 = vmul.f32 %v323, %v339
      %v360 = vmul.f32 %v324, %v339
      %v361 = vmul.f32 %v325, %v339
      %v362 = vmul.f32 %v326, %v339
      %v363 = vmul.f32 %v327, %v339
      %v364 = vmul.f32 %v328, %v339
      %v365 = vmul.f32 %v329, %v339
      %v366 = vmul.f32 %v330, %v339
      %v367 = vmul.f32 %v331, %v339
      %v368 = vmul.f32 %v332, %v339
      %v369 = vmul.f32 %v333, %v339
      %v370 = vmul.f32 %v334, %v339
      %v371 = vmul.f32 %v335, %v339
      %v372 = vmul.f32 %v336, %v339
      %v373 = vld [vmem:[%s3] sm:$0x1]
      %v375 = vperm.slane %v373, 0
      %v377 = vadd.f32 %v341, %v375
      %v378 = vadd.f32 %v342, %v375
      %v379 = vadd.f32 %v343, %v375
      %v380 = vadd.f32 %v344, %v375
      %v381 = vadd.f32 %v345, %v375
      %v382 = vadd.f32 %v346, %v375
      %v383 = vadd.f32 %v347, %v375
      %v384 = vadd.f32 %v348, %v375
      %v385 = vadd.f32 %v349, %v375
      %v386 = vadd.f32 %v350, %v375
      %v387 = vadd.f32 %v351, %v375
      %v388 = vadd.f32 %v352, %v375
      %v389 = vadd.f32 %v353, %v375
      %v390 = vadd.f32 %v354, %v375
      %v391 = vadd.f32 %v355, %v375
      %v392 = vadd.f32 %v356, %v375
      %v393 = vadd.f32 %v357, %v375
      %v394 = vadd.f32 %v358, %v375
      %v395 = vadd.f32 %v359, %v375
      %v396 = vadd.f32 %v360, %v375
      %v397 = vadd.f32 %v361, %v375
      %v398 = vadd.f32 %v362, %v375
      %v399 = vadd.f32 %v363, %v375
      %v400 = vadd.f32 %v364, %v375
      %v401 = vadd.f32 %v365, %v375
      %v402 = vadd.f32 %v366, %v375
      %v403 = vadd.f32 %v367, %v375
      %v404 = vadd.f32 %v368, %v375
      %v405 = vadd.f32 %v369, %v375
      %v406 = vadd.f32 %v370, %v375
      %v407 = vadd.f32 %v371, %v375
      %v408 = vadd.f32 %v372, %v375
      %v409 = vld [vmem:[%s261] sm:$0xf]
      %v410 = vld [vmem:[%s261 + $0x4] sm:$0xf]
      %v411 = vld [vmem:[%s261 + $0x8] sm:$0xf]
      %v412 = vld [vmem:[%s261 + $0xc] sm:$0xf]
      %v413 = vld [vmem:[%s261 + $0x10] sm:$0xf]
      %v414 = vld [vmem:[%s261 + $0x14] sm:$0xf]
      %v415 = vld [vmem:[%s261 + $0x18] sm:$0xf]
      %v416 = vld [vmem:[%s261 + $0x1c] sm:$0xf]
      %v417 = vld [vmem:[%s261 + $0x20] sm:$0xf]
      %v418 = vld [vmem:[%s261 + $0x24] sm:$0xf]
      %v419 = vld [vmem:[%s261 + $0x28] sm:$0xf]
      %v420 = vld [vmem:[%s261 + $0x2c] sm:$0xf]
      %v421 = vld [vmem:[%s261 + $0x30] sm:$0xf]
      %v422 = vld [vmem:[%s261 + $0x34] sm:$0xf]
      %v423 = vld [vmem:[%s261 + $0x38] sm:$0xf]
      %v424 = vld [vmem:[%s261 + $0x3c] sm:$0xf]
      %v425 = vld [vmem:[%s261 + $0x40] sm:$0xf]
      %v426 = vld [vmem:[%s261 + $0x44] sm:$0xf]
      %v427 = vld [vmem:[%s261 + $0x48] sm:$0xf]
      %v428 = vld [vmem:[%s261 + $0x4c] sm:$0xf]
      %v429 = vld [vmem:[%s261 + $0x50] sm:$0xf]
      %v430 = vld [vmem:[%s261 + $0x54] sm:$0xf]
      %v431 = vld [vmem:[%s261 + $0x58] sm:$0xf]
      %v432 = vld [vmem:[%s261 + $0x5c] sm:$0xf]
      %v433 = vld [vmem:[%s261 + $0x60] sm:$0xf]
      %v434 = vld [vmem:[%s261 + $0x64] sm:$0xf]
      %v435 = vld [vmem:[%s261 + $0x68] sm:$0xf]
      %v436 = vld [vmem:[%s261 + $0x6c] sm:$0xf]
      %v437 = vld [vmem:[%s261 + $0x70] sm:$0xf]
      %v438 = vld [vmem:[%s261 + $0x74] sm:$0xf]
      %v439 = vld [vmem:[%s261 + $0x78] sm:$0xf]
      %v440 = vld [vmem:[%s261 + $0x7c] sm:$0xf]
      %v441 = vunpack.c.l.bf16 %v409
      %v442 = vunpack.c.l.bf16 %v410
      %v443 = vunpack.c.l.bf16 %v411
      %v444 = vunpack.c.l.bf16 %v412
      %v445 = vunpack.c.l.bf16 %v413
      %v446 = vunpack.c.l.bf16 %v414
      %v447 = vunpack.c.l.bf16 %v415
      %v448 = vunpack.c.l.bf16 %v416
      %v449 = vunpack.c.l.bf16 %v417
      %v450 = vunpack.c.l.bf16 %v418
      %v451 = vunpack.c.l.bf16 %v419
      %v452 = vunpack.c.l.bf16 %v420
      %v453 = vunpack.c.l.bf16 %v421
      %v454 = vunpack.c.l.bf16 %v422
      %v455 = vunpack.c.l.bf16 %v423
      %v456 = vunpack.c.l.bf16 %v424
      %v457 = vunpack.c.l.bf16 %v425
      %v458 = vunpack.c.l.bf16 %v426
      %v459 = vunpack.c.l.bf16 %v427
      %v460 = vunpack.c.l.bf16 %v428
      %v461 = vunpack.c.l.bf16 %v429
      %v462 = vunpack.c.l.bf16 %v430
      %v463 = vunpack.c.l.bf16 %v431
      %v464 = vunpack.c.l.bf16 %v432
      %v465 = vunpack.c.l.bf16 %v433
      %v466 = vunpack.c.l.bf16 %v434
      %v467 = vunpack.c.l.bf16 %v435
      %v468 = vunpack.c.l.bf16 %v436
      %v469 = vunpack.c.l.bf16 %v437
      %v470 = vunpack.c.l.bf16 %v438
      %v471 = vunpack.c.l.bf16 %v439
      %v472 = vunpack.c.l.bf16 %v440
      %v473 = vadd.f32 %v377, %v441
      %v474 = vadd.f32 %v378, %v442
      %v475 = vadd.f32 %v379, %v443
      %v476 = vadd.f32 %v380, %v444
      %v477 = vadd.f32 %v381, %v445
      %v478 = vadd.f32 %v382, %v446
      %v479 = vadd.f32 %v383, %v447
      %v480 = vadd.f32 %v384, %v448
      %v481 = vadd.f32 %v385, %v449
      %v482 = vadd.f32 %v386, %v450
      %v483 = vadd.f32 %v387, %v451
      %v484 = vadd.f32 %v388, %v452
      %v485 = vadd.f32 %v389, %v453
      %v486 = vadd.f32 %v390, %v454
      %v487 = vadd.f32 %v391, %v455
      %v488 = vadd.f32 %v392, %v456
      %v489 = vadd.f32 %v393, %v457
      %v490 = vadd.f32 %v394, %v458
      %v491 = vadd.f32 %v395, %v459
      %v492 = vadd.f32 %v396, %v460
      %v493 = vadd.f32 %v397, %v461
      %v494 = vadd.f32 %v398, %v462
      %v495 = vadd.f32 %v399, %v463
      %v496 = vadd.f32 %v400, %v464
      %v497 = vadd.f32 %v401, %v465
      %v498 = vadd.f32 %v402, %v466
      %v499 = vadd.f32 %v403, %v467
      %v500 = vadd.f32 %v404, %v468
      %v501 = vadd.f32 %v405, %v469
      %v502 = vadd.f32 %v406, %v470
      %v503 = vadd.f32 %v407, %v471
      %v504 = vadd.f32 %v408, %v472
      %v505 = vmax.f32 %v473, 0.0
      %v506 = vmax.f32 %v474, 0.0
      %v507 = vmax.f32 %v475, 0.0
      %v508 = vmax.f32 %v476, 0.0
      %v509 = vmax.f32 %v477, 0.0
      %v510 = vmax.f32 %v478, 0.0
      %v511 = vmax.f32 %v479, 0.0
      %v512 = vmax.f32 %v480, 0.0
      %v513 = vmax.f32 %v481, 0.0
      %v514 = vmax.f32 %v482, 0.0
      %v515 = vmax.f32 %v483, 0.0
      %v516 = vmax.f32 %v484, 0.0
      %v517 = vmax.f32 %v485, 0.0
      %v518 = vmax.f32 %v486, 0.0
      %v519 = vmax.f32 %v487, 0.0
      %v520 = vmax.f32 %v488, 0.0
      %v521 = vmax.f32 %v489, 0.0
      %v522 = vmax.f32 %v490, 0.0
      %v523 = vmax.f32 %v491, 0.0
      %v524 = vmax.f32 %v492, 0.0
      %v525 = vmax.f32 %v493, 0.0
      %v526 = vmax.f32 %v494, 0.0
      %v527 = vmax.f32 %v495, 0.0
      %v528 = vmax.f32 %v496, 0.0
      %v529 = vmax.f32 %v497, 0.0
      %v530 = vmax.f32 %v498, 0.0
      %v531 = vmax.f32 %v499, 0.0
      %v532 = vmax.f32 %v500, 0.0
      %v533 = vmax.f32 %v501, 0.0
      %v534 = vmax.f32 %v502, 0.0
      %v535 = vmax.f32 %v503, 0.0
      %v536 = vmax.f32 %v504, 0.0
      %v537 = vpack.c.bf16 %v505, %v505
      %v538 = vpack.c.bf16 %v506, %v506
      %v539 = vpack.c.bf16 %v507, %v507
      %v540 = vpack.c.bf16 %v508, %v508
      %v541 = vpack.c.bf16 %v509, %v509
      %v542 = vpack.c.bf16 %v510, %v510
      %v543 = vpack.c.bf16 %v511, %v511
      %v544 = vpack.c.bf16 %v512, %v512
      %v545 = vpack.c.bf16 %v513, %v513
      %v546 = vpack.c.bf16 %v514, %v514
      %v547 = vpack.c.bf16 %v515, %v515
      %v548 = vpack.c.bf16 %v516, %v516
      %v549 = vpack.c.bf16 %v517, %v517
      %v550 = vpack.c.bf16 %v518, %v518
      %v551 = vpack.c.bf16 %v519, %v519
      %v552 = vpack.c.bf16 %v520, %v520
      %v553 = vpack.c.bf16 %v521, %v521
      %v554 = vpack.c.bf16 %v522, %v522
      %v555 = vpack.c.bf16 %v523, %v523
      %v556 = vpack.c.bf16 %v524, %v524
      %v557 = vpack.c.bf16 %v525, %v525
      %v558 = vpack.c.bf16 %v526, %v526
      %v559 = vpack.c.bf16 %v527, %v527
      %v560 = vpack.c.bf16 %v528, %v528
      %v561 = vpack.c.bf16 %v529, %v529
      %v562 = vpack.c.bf16 %v530, %v530
      %v563 = vpack.c.bf16 %v531, %v531
      %v564 = vpack.c.bf16 %v532, %v532
      %v565 = vpack.c.bf16 %v533, %v533
      %v566 = vpack.c.bf16 %v534, %v534
      %v567 = vpack.c.bf16 %v535, %v535
      %v568 = vpack.c.bf16 %v536, %v536
      %569 = vst [vmem:[%s271] sm:$0xf] %v537
      %570 = vst [vmem:[%s271 + $0x4] sm:$0xf] %v538
      %571 = vst [vmem:[%s271 + $0x8] sm:$0xf] %v539
      %572 = vst [vmem:[%s271 + $0xc] sm:$0xf] %v540
      %573 = vst [vmem:[%s271 + $0x10] sm:$0xf] %v541
      %574 = vst [vmem:[%s271 + $0x14] sm:$0xf] %v542
      %575 = vst [vmem:[%s271 + $0x18] sm:$0xf] %v543
      %576 = vst [vmem:[%s271 + $0x1c] sm:$0xf] %v544
      %577 = vst [vmem:[%s271 + $0x20] sm:$0xf] %v545
      %578 = vst [vmem:[%s271 + $0x24] sm:$0xf] %v546
      %579 = vst [vmem:[%s271 + $0x28] sm:$0xf] %v547
      %580 = vst [vmem:[%s271 + $0x2c] sm:$0xf] %v548
      %581 = vst [vmem:[%s271 + $0x30] sm:$0xf] %v549
      %582 = vst [vmem:[%s271 + $0x34] sm:$0xf] %v550
      %583 = vst [vmem:[%s271 + $0x38] sm:$0xf] %v551
      %584 = vst [vmem:[%s271 + $0x3c] sm:$0xf] %v552
      %585 = vst [vmem:[%s271 + $0x40] sm:$0xf] %v553
      %586 = vst [vmem:[%s271 + $0x44] sm:$0xf] %v554
      %587 = vst [vmem:[%s271 + $0x48] sm:$0xf] %v555
      %588 = vst [vmem:[%s271 + $0x4c] sm:$0xf] %v556
      %589 = vst [vmem:[%s271 + $0x50] sm:$0xf] %v557
      %590 = vst [vmem:[%s271 + $0x54] sm:$0xf] %v558
      %591 = vst [vmem:[%s271 + $0x58] sm:$0xf] %v559
      %592 = vst [vmem:[%s271 + $0x5c] sm:$0xf] %v560
      %593 = vst [vmem:[%s271 + $0x60] sm:$0xf] %v561
      %594 = vst [vmem:[%s271 + $0x64] sm:$0xf] %v562
      %595 = vst [vmem:[%s271 + $0x68] sm:$0xf] %v563
      %596 = vst [vmem:[%s271 + $0x6c] sm:$0xf] %v564
      %597 = vst [vmem:[%s271 + $0x70] sm:$0xf] %v565
      %598 = vst [vmem:[%s271 + $0x74] sm:$0xf] %v566
      %599 = vst [vmem:[%s271 + $0x78] sm:$0xf] %v567
      %600 = vst [vmem:[%s271 + $0x7c] sm:$0xf] %v568
      %s601 = smul.u32 32, %s20
      %p602 = scmp.lt.s32.totalorder %s19, 1
      %s603 = scalar_select %p602, %s19, 1
      %p604 = scmp.lt.s32.totalorder %s601, 31
      %s605 = scalar_select %p604, %s601, 31
      %s606 = smul.addr %s603, 32
      %s607 = sadd.s32 %s605, %s606
      %s608 = smul.addr %s607, 4
      %s609 = scalar_lea.vmem %s4, %s608
      // Predicated region
      $region37: #{bottleneck_ibn_forward.7} parent=35 // pred_check
        %p610 = pneg %p145
      $region38: #{bottleneck_ibn_forward.7} parent=35 // pred_check_branch
        %612 = sbr.rel (%p610) target = $region40
      $region39: #{bottleneck_ibn_forward.7} parent=35 // pred_region
        %s613 = smul.u32 32, %s20
      $region40: #{bottleneck_ibn_forward.7} parent=35 // pred_fallthru
        _
    $region36: #{bottleneck_ibn_forward.7} parent=5 // pred_fallthru
      _
    %p614 = scmp.le.s32.totalorder 2, %s10
    // Predicated region
    $region41: #{bottleneck_ibn_forward.7} parent=5 // pred_check
      %p615 = pneg %p614
    $region42: #{bottleneck_ibn_forward.7} parent=5 // pred_check_branch
      %617 = sbr.rel (%p615) target = $region44
    $region43: #{bottleneck_ibn_forward.7} parent=5 // pred_region
      %s618 = ssub.s32 %s10, 2
      // Predicated region
      $region45: #{bottleneck_ibn_forward.7} parent=43 // pred_check
        %p619 = pneg %p151
      $region46: #{bottleneck_ibn_forward.7} parent=43 // pred_check_branch
        %621 = sbr.rel (%p619) target = $region48
      $region47: #{bottleneck_ibn_forward.7} parent=43 // pred_region
        %s622 = smul.u32 32, %s22
        %p623 = scmp.lt.s32.totalorder %s21, 1
        %s624 = scalar_select %p623, %s21, 1
        %p625 = scmp.lt.s32.totalorder %s622, 31
        %s626 = scalar_select %p625, %s622, 31
        %s627 = smul.addr %s624, 32
        %s628 = sadd.s32 %s626, %s627
        %s629 = smul.addr %s628, 4
        %s630 = scalar_lea.vmem %s4, %s629
      $region48: #{bottleneck_ibn_forward.7} parent=43 // pred_fallthru
        _
    $region44: #{bottleneck_ibn_forward.7} parent=5 // pred_fallthru
      _
  $region6: #{bottleneck_ibn_forward.7} parent=0 // loop_footer
    %s14 = sadd.s32 1, %s10
  $region7: #{bottleneck_ibn_forward.7} parent=0 // loop_footer_branch
    %9 = sbr.rel target = $region3
  $region8: #{bottleneck_ibn_forward.7} parent=0 // loop_exit
    _

// kernel: bottleneck_ibn_forward.5
$region0: #{bottleneck_ibn_forward.5}
  #allocation0 [shape = 'u32[]', space=smem, size = 0x4, offset = 0x4, fixed_abs, tag = 'smem constant byte address 0x4 - core index']
  #allocation1 [shape = 'u32[72,128]{1,0:T(1,128)}', space=vmem, size = 0x9000, scoped, tag = 'internal scratch']
  #allocation2 [shape = 'bf16[18,24,128]{2,1,0:T(8,128)(2,1)}', space=vmem, size = 0x1b000, scoped, tag = 'scratch operand']
  %s0 = inlined_call_operand.vmem [shape: bf16[2,16,16,128], index: 0, kind: input, shape index: {}]
  %s1 = inlined_call_operand.vmem [shape: f32[2,1,128], index: 1, kind: input, shape index: {}]
  %s2 = inlined_call_operand.vmem [shape: f32[2,1,128], index: 2, kind: input, shape index: {}]
  %s3 = inlined_call_operand.vmem [shape: bf16[1152,128], index: 3, kind: input, shape index: {}]
  %s4 = inlined_call_operand.vmem [shape: bf16[2,256,128], index: 4, kind: output, shape index: {0}]
  %s5 = inlined_call_operand.vmem [shape: f32[2,2,128], index: 5, kind: output, shape index: {1}]
  %6 = xla_tuple %s4, %s5
  %s7 = sld [smem:[#allocation0]]
  $region57: #{bottleneck_ibn_forward.5} parent=0
    _
  %s9 = ssub.s32 1, %s7
  %s10 = scalar_select 0, %s9, %s7
  loop: start=0, step=1, limit=4
  $region2: #{bottleneck_ibn_forward.5} parent=0 // loop_pre_header
    _
  $region3: #{bottleneck_ibn_forward.5} parent=0 // loop_header
    %s12 = sphi 0, %s16
    %p13 = scmp.ge.s32.totalorder %s12, 4
    %s22 = sphi 0, %s24
    %s25 = sphi 0, %s22
    %s26 = sphi 0, %s25
    %s42 = sphi 0, %s26
    %s48 = sphi 0, %s50
    %s51 = sphi 0, %s48
    %s52 = sphi 0, %s51
    %s68 = sphi 0, %s52
    %s74 = sphi 0, %s76
    %s77 = sphi 0, %s74
    %s78 = sphi 0, %s77
    %s94 = sphi 0, %s78
    %s98 = sphi 0, %s98
    %s100 = sphi 0, %s98
    %s101 = sphi 0, %s100
    %s115 = sphi 0, %s101
    %s121 = sphi 0, %s123
    %s124 = sphi 0, %s121
    %s125 = sphi 0, %s124
    %s141 = sphi 0, %s125
    %s147 = sphi 0, %s149
    %s150 = sphi 0, %s147
    %s151 = sphi 0, %s150
    %s167 = sphi 0, %s151
  $region4: #{bottleneck_ibn_forward.5} parent=0 // loop_header_branch
    %15 = sbr.rel (%p13) target = $region8
  $region5: #{bottleneck_ibn_forward.5} parent=0 // loop_body
    %s17 = ssub.s32 %s12, 1
    %s18 = ssub.s32 %s12, 2
    %s19 = sadd.s32 %s12, 1
    %s20 = ssub.s32 %s12, %s19
    %p21 = scmp.eq.s32.totalorder %s20, 0
    %s23 = sadd.s32 %s22, 1
    %s24 = scalar_select %p21, %s22, %s23
    %p27 = pneg %p21
    %p28 = scmp.eq.s32.totalorder %s12, 1
    %p29 = por %p27, %p28
    %p30 = scmp.ne.s32.totalorder %s22, %s25
    %p31 = scmp.eq.s32.totalorder %s12, 0
    %p32 = por %p30, %p31
    %p33 = scmp.ne.s32.totalorder %s22, %s25
    %p34 = scmp.eq.s32.totalorder %s17, 1
    %p35 = por %p33, %p34
    %p36 = scmp.ne.s32.totalorder %s25, %s26
    %p37 = scmp.eq.s32.totalorder %s17, 0
    %p38 = por %p36, %p37
    %p39 = scmp.ne.s32.totalorder %s25, %s26
    %p40 = scmp.eq.s32.totalorder %s18, 1
    %p41 = por %p39, %p40
    %p43 = scmp.ne.s32.totalorder %s26, %s42
    %p44 = scmp.eq.s32.totalorder %s18, 0
    %p45 = por %p43, %p44
    %s46 = ssub.s32 %s12, %s19
    %p47 = scmp.eq.s32.totalorder %s46, 0
    %s49 = sadd.s32 %s48, 1
    %s50 = scalar_select %p47, %s48, %s49
    %p53 = pneg %p47
    %p54 = scmp.eq.s32.totalorder %s12, 1
    %p55 = por %p53, %p54
    %p56 = scmp.ne.s32.totalorder %s48, %s51
    %p57 = scmp.eq.s32.totalorder %s12, 0
    %p58 = por %p56, %p57
    %p59 = scmp.ne.s32.totalorder %s48, %s51
    %p60 = scmp.eq.s32.totalorder %s17, 1
    %p61 = por %p59, %p60
    %p62 = scmp.ne.s32.totalorder %s51, %s52
    %p63 = scmp.eq.s32.totalorder %s17, 0
    %p64 = por %p62, %p63
    %p65 = scmp.ne.s32.totalorder %s51, %s52
    %p66 = scmp.eq.s32.totalorder %s18, 1
    %p67 = por %p65, %p66
    %p69 = scmp.ne.s32.totalorder %s52, %s68
    %p70 = scmp.eq.s32.totalorder %s18, 0
    %p71 = por %p69, %p70
    %s72 = ssub.s32 %s12, %s19
    %p73 = scmp.eq.s32.totalorder %s72, 0
    %s75 = sadd.s32 %s74, 1
    %s76 = scalar_select %p73, %s74, %s75
    %p79 = pneg %p73
    %p80 = scmp.eq.s32.totalorder %s12, 1
    %p81 = por %p79, %p80
    %p82 = scmp.ne.s32.totalorder %s74, %s77
    %p83 = scmp.eq.s32.totalorder %s12, 0
    %p84 = por %p82, %p83
    %p85 = scmp.ne.s32.totalorder %s74, %s77
    %p86 = scmp.eq.s32.totalorder %s17, 1
    %p87 = por %p85, %p86
    %p88 = scmp.ne.s32.totalorder %s77, %s78
    %p89 = scmp.eq.s32.totalorder %s17, 0
    %p90 = por %p88, %p89
    %p91 = scmp.ne.s32.totalorder %s77, %s78
    %p92 = scmp.eq.s32.totalorder %s18, 1
    %p93 = por %p91, %p92
    %p95 = scmp.ne.s32.totalorder %s78, %s94
    %p96 = scmp.eq.s32.totalorder %s18, 0
    %p97 = por %p95, %p96
    %s99 = sadd.s32 %s98, 1
    %p102 = scmp.eq.s32.totalorder %s12, 1
    %p103 = scmp.ne.s32.totalorder %s98, %s100
    %p104 = scmp.eq.s32.totalorder %s12, 0
    %p105 = por %p103, %p104
    %p106 = scmp.ne.s32.totalorder %s98, %s100
    %p107 = scmp.eq.s32.totalorder %s17, 1
    %p108 = por %p106, %p107
    %p109 = scmp.ne.s32.totalorder %s100, %s101
    %p110 = scmp.eq.s32.totalorder %s17, 0
    %p111 = por %p109, %p110
    %p112 = scmp.ne.s32.totalorder %s100, %s101
    %p113 = scmp.eq.s32.totalorder %s18, 1
    %p114 = por %p112, %p113
    %p116 = scmp.ne.s32.totalorder %s101, %s115
    %p117 = scmp.eq.s32.totalorder %s18, 0
    %p118 = por %p116, %p117
    %s119 = ssub.s32 %s12, %s19
    %p120 = scmp.eq.s32.totalorder %s119, 0
    %s122 = sadd.s32 %s121, 1
    %s123 = scalar_select %p120, %s121, %s122
    %p126 = pneg %p120
    %p127 = scmp.eq.s32.totalorder %s12, 1
    %p128 = por %p126, %p127
    %p129 = scmp.ne.s32.totalorder %s121, %s124
    %p130 = scmp.eq.s32.totalorder %s12, 0
    %p131 = por %p129, %p130
    %p132 = scmp.ne.s32.totalorder %s121, %s124
    %p133 = scmp.eq.s32.totalorder %s17, 1
    %p134 = por %p132, %p133
    %p135 = scmp.ne.s32.totalorder %s124, %s125
    %p136 = scmp.eq.s32.totalorder %s17, 0
    %p137 = por %p135, %p136
    %p138 = scmp.ne.s32.totalorder %s124, %s125
    %p139 = scmp.eq.s32.totalorder %s18, 1
    %p140 = por %p138, %p139
    %p142 = scmp.ne.s32.totalorder %s125, %s141
    %p143 = scmp.eq.s32.totalorder %s18, 0
    %p144 = por %p142, %p143
    %s145 = ssub.s32 %s12, %s19
    %p146 = scmp.eq.s32.totalorder %s145, 0
    %s148 = sadd.s32 %s147, 1
    %s149 = scalar_select %p146, %s147, %s148
    %p152 = pneg %p146
    %p153 = scmp.eq.s32.totalorder %s12, 1
    %p154 = por %p152, %p153
    %p155 = scmp.ne.s32.totalorder %s147, %s150
    %p156 = scmp.eq.s32.totalorder %s12, 0
    %p157 = por %p155, %p156
    %p158 = scmp.ne.s32.totalorder %s147, %s150
    %p159 = scmp.eq.s32.totalorder %s17, 1
    %p160 = por %p158, %p159
    %p161 = scmp.ne.s32.totalorder %s150, %s151
    %p162 = scmp.eq.s32.totalorder %s17, 0
    %p163 = por %p161, %p162
    %p164 = scmp.ne.s32.totalorder %s150, %s151
    %p165 = scmp.eq.s32.totalorder %s18, 1
    %p166 = por %p164, %p165
    %p168 = scmp.ne.s32.totalorder %s151, %s167
    %p169 = scmp.eq.s32.totalorder %s18, 0
    %p170 = por %p168, %p169
    %p171 = scmp.le.s32.totalorder 1, %s12
    %p172 = scmp.lt.s32.totalorder %s12, 3
    %p173 = pnand %p171, %p172
    %p174 = pneg %p173
    // Predicated region
    $region9: #{bottleneck_ibn_forward.5} parent=5 // pred_check
      _
    $region10: #{bottleneck_ibn_forward.5} parent=5 // pred_check_branch
      %176 = sbr.rel (%p173) target = $region12
    $region11: #{bottleneck_ibn_forward.5} parent=5 // pred_region
      %s177 = ssub.s32 %s12, 1
      // Predicated region
      $region13: #{bottleneck_ibn_forward.5} parent=11 // pred_check
        %p178 = pneg %p111
      $region14: #{bottleneck_ibn_forward.5} parent=11 // pred_check_branch
        %180 = sbr.rel (%p178) target = $region16
      $region15: #{bottleneck_ibn_forward.5} parent=11 // pred_region
        _
      $region16: #{bottleneck_ibn_forward.5} parent=11 // pred_fallthru
        _
    $region12: #{bottleneck_ibn_forward.5} parent=5 // pred_fallthru
      _
    %p181 = scmp.lt.s32.totalorder %s12, 2
    // Predicated region
    $region17: #{bottleneck_ibn_forward.5} parent=5 // pred_check
      %p182 = pneg %p181
    $region18: #{bottleneck_ibn_forward.5} parent=5 // pred_check_branch
      %184 = sbr.rel (%p182) target = $region20
    $region19: #{bottleneck_ibn_forward.5} parent=5 // pred_region
      // Predicated region
      $region21: #{bottleneck_ibn_forward.5} parent=19 // pred_check
        %p185 = pneg %p32
      $region22: #{bottleneck_ibn_forward.5} parent=19 // pred_check_branch
        %187 = sbr.rel (%p185) target = $region24
      $region23: #{bottleneck_ibn_forward.5} parent=19 // pred_region
        %p188 = scmp.lt.s32.totalorder %s12, 1
        %s189 = scalar_select %p188, %s12, 1
        %s190 = smul.addr %s189, 32
        %s191 = smul.addr %s190, 4
        %s192 = scalar_lea.vmem %s0, %s191
      $region24: #{bottleneck_ibn_forward.5} parent=19 // pred_fallthru
        _
      // Predicated region
      $region25: #{bottleneck_ibn_forward.5} parent=19 // pred_check
        %p193 = pneg %p58
      $region26: #{bottleneck_ibn_forward.5} parent=19 // pred_check_branch
        %195 = sbr.rel (%p193) target = $region28
      $region27: #{bottleneck_ibn_forward.5} parent=19 // pred_region
        %p196 = scmp.lt.s32.totalorder %s12, 1
        %s197 = scalar_select %p196, %s12, 1
        %s198 = scalar_lea.vmem %s1, %s197
      $region28: #{bottleneck_ibn_forward.5} parent=19 // pred_fallthru
        _
      // Predicated region
      $region29: #{bottleneck_ibn_forward.5} parent=19 // pred_check
        %p199 = pneg %p84
      $region30: #{bottleneck_ibn_forward.5} parent=19 // pred_check_branch
        %201 = sbr.rel (%p199) target = $region32
      $region31: #{bottleneck_ibn_forward.5} parent=19 // pred_region
        %p202 = scmp.lt.s32.totalorder %s12, 1
        %s203 = scalar_select %p202, %s12, 1
        %s204 = scalar_lea.vmem %s2, %s203
      $region32: #{bottleneck_ibn_forward.5} parent=19 // pred_fallthru
        _
    $region20: #{bottleneck_ibn_forward.5} parent=5 // pred_fallthru
      _
    %p205 = scmp.le.s32.totalorder 1, %s12
    %p206 = scmp.lt.s32.totalorder %s12, 3
    %p207 = pnand %p205, %p206
    %p208 = pneg %p207
    // Predicated region
    $region33: #{bottleneck_ibn_forward.5} parent=5 // pred_check
      _
    $region34: #{bottleneck_ibn_forward.5} parent=5 // pred_check_branch
      %210 = sbr.rel (%p207) target = $region36
    $region35: #{bottleneck_ibn_forward.5} parent=5 // pred_region
      %s211 = ssub.s32 %s12, 1
      %p212 = scmp.lt.s32.totalorder %s17, 1
      %s213 = scalar_select %p212, %s17, 1
      %s214 = smul.addr %s213, 32
      %s215 = smul.addr %s214, 4
      %s216 = scalar_lea.vmem %s0, %s215
      %p217 = pneg %p38
      %p218 = pneg %p35
      %p219 = scmp.lt.s32.totalorder %s17, 1
      %s220 = scalar_select %p219, %s17, 1
      %s221 = scalar_lea.vmem %s1, %s220
      %p222 = pneg %p64
      %p223 = pneg %p61
      %p224 = scmp.lt.s32.totalorder %s17, 1
      %s225 = scalar_select %p224, %s17, 1
      %s226 = scalar_lea.vmem %s2, %s225
      %p227 = pneg %p90
      %p228 = pneg %p87
      %p229 = pneg %p111
      %p230 = pneg %p108
      %p231 = pneg %p137
      %p232 = pneg %p134
      %p233 = scmp.lt.s32.totalorder %s17, 1
      %s234 = scalar_select %p233, %s17, 1
      %s235 = smul.addr %s234, 32
      %s236 = smul.addr %s235, 4
      %s237 = scalar_lea.vmem %s4, %s236
      %p238 = pneg %p163
      %p239 = pneg %p160
      %p240 = scmp.lt.s32.totalorder %s17, 1
      %s241 = scalar_select %p240, %s17, 1
      %s242 = smul.addr %s241, 2
      %s243 = scalar_lea.vmem %s5, %s242
      %p244 = scmp.lt.s32.totalorder %s17, 1
      %s245 = scalar_select %p244, %s17, 1
      %s246 = smul.addr %s245, 32
      %s247 = smul.addr %s246, 4
      %s248 = scalar_lea.vmem %s0, %s247
      %p249 = scmp.lt.s32.totalorder %s17, 1
      %s250 = scalar_select %p249, %s17, 1
      %s251 = scalar_lea.vmem %s1, %s250
      %p252 = scmp.lt.s32.totalorder %s17, 1
      %s253 = scalar_select %p252, %s17, 1
      %s254 = scalar_lea.vmem %s2, %s253
      %p255 = scmp.lt.s32.totalorder %s17, 1
      %s256 = scalar_select %p255, %s17, 1
      %s257 = smul.addr %s256, 32
      %s258 = smul.addr %s257, 4
      %s259 = scalar_lea.vmem %s4, %s258
      %p260 = scmp.lt.s32.totalorder %s17, 1
      %s261 = scalar_select %p260, %s17, 1
      %s262 = smul.addr %s261, 2
      %s263 = scalar_lea.vmem %s5, %s262
      %265 = vst [vmem:[#allocation2] sm:$0xf] 0
      %266 = vst [vmem:[#allocation2 + $0x4] sm:$0xf] 0
      %267 = vst [vmem:[#allocation2 + $0x8] sm:$0xf] 0
      %s268 = scalar_lea.vmem [#allocation2], 204
      %269 = vst [vmem:[%s268] sm:$0xf] 0
      %270 = vst [vmem:[%s268 + $0x4] sm:$0xf] 0
      %271 = vst [vmem:[%s268 + $0x8] sm:$0xf] 0
      %s272 = scalar_lea.vmem [#allocation2], 12
      %vm273 = vcmask 1040384
      %vm274 = vsmask.f32 256
      %vm275 = vmand %vm273, %vm274
      %v276 = vld [vmem:[%s272] sm:$0x1]
      %v277 = vsel %vm275, 0, %v276
      %278 = vst [vmem:[%s272] sm:$0x1] %v277
      %v279 = vld [vmem:[%s272 + $0xc] sm:$0x1]
      %v280 = vsel %vm275, 0, %v279
      %281 = vst [vmem:[%s272 + $0xc] sm:$0x1] %v280
      %v282 = vld [vmem:[%s272 + $0x18] sm:$0x1]
      %v283 = vsel %vm275, 0, %v282
      %284 = vst [vmem:[%s272 + $0x18] sm:$0x1] %v283
      %v285 = vld [vmem:[%s272 + $0x24] sm:$0x1]
      %v286 = vsel %vm275, 0, %v285
      %287 = vst [vmem:[%s272 + $0x24] sm:$0x1] %v286
      %v288 = vld [vmem:[%s272 + $0x30] sm:$0x1]
      %v289 = vsel %vm275, 0, %v288
      %290 = vst [vmem:[%s272 + $0x30] sm:$0x1] %v289
      %v291 = vld [vmem:[%s272 + $0x3c] sm:$0x1]
      %v292 = vsel %vm275, 0, %v291
      %293 = vst [vmem:[%s272 + $0x3c] sm:$0x1] %v292
      %v294 = vld [vmem:[%s272 + $0x48] sm:$0x1]
      %v295 = vsel %vm275, 0, %v294
      %296 = vst [vmem:[%s272 + $0x48] sm:$0x1] %v295
      %v297 = vld [vmem:[%s272 + $0x54] sm:$0x1]
      %v298 = vsel %vm275, 0, %v297
      %299 = vst [vmem:[%s272 + $0x54] sm:$0x1] %v298
      %v300 = vld [vmem:[%s272 + $0x60] sm:$0x1]
      %v301 = vsel %vm275, 0, %v300
      %302 = vst [vmem:[%s272 + $0x60] sm:$0x1] %v301
      %v303 = vld [vmem:[%s272 + $0x6c] sm:$0x1]
      %v304 = vsel %vm275, 0, %v303
      %305 = vst [vmem:[%s272 + $0x6c] sm:$0x1] %v304
      %v306 = vld [vmem:[%s272 + $0x78] sm:$0x1]
      %v307 = vsel %vm275, 0, %v306
      %308 = vst [vmem:[%s272 + $0x78] sm:$0x1] %v307
      %v309 = vld [vmem:[%s272 + $0x84] sm:$0x1]
      %v310 = vsel %vm275, 0, %v309
      %311 = vst [vmem:[%s272 + $0x84] sm:$0x1] %v310
      %v312 = vld [vmem:[%s272 + $0x90] sm:$0x1]
      %v313 = vsel %vm275, 0, %v312
      %314 = vst [vmem:[%s272 + $0x90] sm:$0x1] %v313
      %v315 = vld [vmem:[%s272 + $0x9c] sm:$0x1]
      %v316 = vsel %vm275, 0, %v315
      %317 = vst [vmem:[%s272 + $0x9c] sm:$0x1] %v316
      %v318 = vld [vmem:[%s272 + $0xa8] sm:$0x1]
      %v319 = vsel %vm275, 0, %v318
      %320 = vst [vmem:[%s272 + $0xa8] sm:$0x1] %v319
      %v321 = vld [vmem:[%s272 + $0xb4] sm:$0x1]
      %v322 = vsel %vm275, 0, %v321
      %323 = vst [vmem:[%s272 + $0xb4] sm:$0x1] %v322
      %vm324 = vsmask.f32 7938
      %vm325 = vmand %vm273, %vm324
      %v326 = vld [vmem:[%s272 + $0x8] sm:$0x1]
      %v327 = vsel %vm325, 0, %v326
      %328 = vst [vmem:[%s272 + $0x8] sm:$0x1] %v327
      %v329 = vld [vmem:[%s272 + $0x14] sm:$0x1]
      %v330 = vsel %vm325, 0, %v329
      %331 = vst [vmem:[%s272 + $0x14] sm:$0x1] %v330
      %v332 = vld [vmem:[%s272 + $0x20] sm:$0x1]
      %v333 = vsel %vm325, 0, %v332
      %334 = vst [vmem:[%s272 + $0x20] sm:$0x1] %v333
      %v335 = vld [vmem:[%s272 + $0x2c] sm:$0x1]
      %v336 = vsel %vm325, 0, %v335
      %337 = vst [vmem:[%s272 + $0x2c] sm:$0x1] %v336
      %v338 = vld [vmem:[%s272 + $0x38] sm:$0x1]
      %v339 = vsel %vm325, 0, %v338
      %340 = vst [vmem:[%s272 + $0x38] sm:$0x1] %v339
      %v341 = vld [vmem:[%s272 + $0x44] sm:$0x1]
      %v342 = vsel %vm325, 0, %v341
      %343 = vst [vmem:[%s272 + $0x44] sm:$0x1] %v342
      %v344 = vld [vmem:[%s272 + $0x50] sm:$0x1]
      %v345 = vsel %vm325, 0, %v344
      %346 = vst [vmem:[%s272 + $0x50] sm:$0x1] %v345
      %v347 = vld [vmem:[%s272 + $0x5c] sm:$0x1]
      %v348 = vsel %vm325, 0, %v347
      %349 = vst [vmem:[%s272 + $0x5c] sm:$0x1] %v348
      %v350 = vld [vmem:[%s272 + $0x68] sm:$0x1]
      %v351 = vsel %vm325, 0, %v350
      %352 = vst [vmem:[%s272 + $0x68] sm:$0x1] %v351
      %v353 = vld [vmem:[%s272 + $0x74] sm:$0x1]
      %v354 = vsel %vm325, 0, %v353
      %355 = vst [vmem:[%s272 + $0x74] sm:$0x1] %v354
      %v356 = vld [vmem:[%s272 + $0x80] sm:$0x1]
      %v357 = vsel %vm325, 0, %v356
      %358 = vst [vmem:[%s272 + $0x80] sm:$0x1] %v357
      %v359 = vld [vmem:[%s272 + $0x8c] sm:$0x1]
      %v360 = vsel %vm325, 0, %v359
      %361 = vst [vmem:[%s272 + $0x8c] sm:$0x1] %v360
      %v362 = vld [vmem:[%s272 + $0x98] sm:$0x1]
      %v363 = vsel %vm325, 0, %v362
      %364 = vst [vmem:[%s272 + $0x98] sm:$0x1] %v363
      %v365 = vld [vmem:[%s272 + $0xa4] sm:$0x1]
      %v366 = vsel %vm325, 0, %v365
      %367 = vst [vmem:[%s272 + $0xa4] sm:$0x1] %v366
      %v368 = vld [vmem:[%s272 + $0xb0] sm:$0x1]
      %v369 = vsel %vm325, 0, %v368
      %370 = vst [vmem:[%s272 + $0xb0] sm:$0x1] %v369
      %v371 = vld [vmem:[%s272 + $0xbc] sm:$0x1]
      %v372 = vsel %vm325, 0, %v371
      %373 = vst [vmem:[%s272 + $0xbc] sm:$0x1] %v372
      %v374 = vld [vmem:[%s248] sm:$0xf]
      %v375 = vld [vmem:[%s248 + $0x4] sm:$0xf]
      %v376 = vld [vmem:[%s248 + $0x8] sm:$0xf]
      %v377 = vld [vmem:[%s248 + $0xc] sm:$0xf]
      %v378 = vld [vmem:[%s248 + $0x10] sm:$0xf]
      %v379 = vld [vmem:[%s248 + $0x14] sm:$0xf]
      %v380 = vld [vmem:[%s248 + $0x18] sm:$0xf]
      %v381 = vld [vmem:[%s248 + $0x1c] sm:$0xf]
      %v382 = vld [vmem:[%s248 + $0x20] sm:$0xf]
      %v383 = vld [vmem:[%s248 + $0x24] sm:$0xf]
      %v384 = vld [vmem:[%s248 + $0x28] sm:$0xf]
      %v385 = vld [vmem:[%s248 + $0x2c] sm:$0xf]
      %v386 = vld [vmem:[%s248 + $0x30] sm:$0xf]
      %v387 = vld [vmem:[%s248 + $0x34] sm:$0xf]
      %v388 = vld [vmem:[%s248 + $0x38] sm:$0xf]
      %v389 = vld [vmem:[%s248 + $0x3c] sm:$0xf]
      %v390 = vld [vmem:[%s248 + $0x40] sm:$0xf]
      %v391 = vld [vmem:[%s248 + $0x44] sm:$0xf]
      %v392 = vld [vmem:[%s248 + $0x48] sm:$0xf]
      %v393 = vld [vmem:[%s248 + $0x4c] sm:$0xf]
      %v394 = vld [vmem:[%s248 + $0x50] sm:$0xf]
      %v395 = vld [vmem:[%s248 + $0x54] sm:$0xf]
      %v396 = vld [vmem:[%s248 + $0x58] sm:$0xf]
      %v397 = vld [vmem:[%s248 + $0x5c] sm:$0xf]
      %v398 = vld [vmem:[%s248 + $0x60] sm:$0xf]
      %v399 = vld [vmem:[%s248 + $0x64] sm:$0xf]
      %v400 = vld [vmem:[%s248 + $0x68] sm:$0xf]
      %v401 = vld [vmem:[%s248 + $0x6c] sm:$0xf]
      %v402 = vld [vmem:[%s248 + $0x70] sm:$0xf]
      %v403 = vld [vmem:[%s248 + $0x74] sm:$0xf]
      %v404 = vld [vmem:[%s248 + $0x78] sm:$0xf]
      %v405 = vld [vmem:[%s248 + $0x7c] sm:$0xf]
      %v406 = vunpack.c.l.bf16 %v374
      %v407 = vunpack.c.l.bf16 %v375
      %v408 = vunpack.c.l.bf16 %v376
      %v409 = vunpack.c.l.bf16 %v377
      %v410 = vunpack.c.l.bf16 %v378
      %v411 = vunpack.c.l.bf16 %v379
      %v412 = vunpack.c.l.bf16 %v380
      %v413 = vunpack.c.l.bf16 %v381
      %v414 = vunpack.c.l.bf16 %v382
      %v415 = vunpack.c.l.bf16 %v383
      %v416 = vunpack.c.l.bf16 %v384
      %v417 = vunpack.c.l.bf16 %v385
      %v418 = vunpack.c.l.bf16 %v386
      %v419 = vunpack.c.l.bf16 %v387
      %v420 = vunpack.c.l.bf16 %v388
      %v421 = vunpack.c.l.bf16 %v389
      %v422 = vunpack.c.l.bf16 %v390
      %v423 = vunpack.c.l.bf16 %v391
      %v424 = vunpack.c.l.bf16 %v392
      %v425 = vunpack.c.l.bf16 %v393
      %v426 = vunpack.c.l.bf16 %v394
      %v427 = vunpack.c.l.bf16 %v395
      %v428 = vunpack.c.l.bf16 %v396
      %v429 = vunpack.c.l.bf16 %v397
      %v430 = vunpack.c.l.bf16 %v398
      %v431 = vunpack.c.l.bf16 %v399
      %v432 = vunpack.c.l.bf16 %v400
      %v433 = vunpack.c.l.bf16 %v401
      %v434 = vunpack.c.l.bf16 %v402
      %v435 = vunpack.c.l.bf16 %v403
      %v436 = vunpack.c.l.bf16 %v404
      %v437 = vunpack.c.l.bf16 %v405
      %v438 = vld [vmem:[%s251] sm:$0x1]
      %v440 = vperm.slane %v438, 0
      %v442 = vmul.f32 %v406, %v440
      %v443 = vmul.f32 %v407, %v440
      %v444 = vmul.f32 %v408, %v440
      %v445 = vmul.f32 %v409, %v440
      %v446 = vmul.f32 %v410, %v440
      %v447 = vmul.f32 %v411, %v440
      %v448 = vmul.f32 %v412, %v440
      %v449 = vmul.f32 %v413, %v440
      %v450 = vmul.f32 %v414, %v440
      %v451 = vmul.f32 %v415, %v440
      %v452 = vmul.f32 %v416, %v440
      %v453 = vmul.f32 %v417, %v440
      %v454 = vmul.f32 %v418, %v440
      %v455 = vmul.f32 %v419, %v440
      %v456 = vmul.f32 %v420, %v440
      %v457 = vmul.f32 %v421, %v440
      %v458 = vmul.f32 %v422, %v440
      %v459 = vmul.f32 %v423, %v440
      %v460 = vmul.f32 %v424, %v440
      %v461 = vmul.f32 %v425, %v440
      %v462 = vmul.f32 %v426, %v440
      %v463 = vmul.f32 %v427, %v440
      %v464 = vmul.f32 %v428, %v440
      %v465 = vmul.f32 %v429, %v440
      %v466 = vmul.f32 %v430, %v440
      %v467 = vmul.f32 %v431, %v440
      %v468 = vmul.f32 %v432, %v440
      %v469 = vmul.f32 %v433, %v440
      %v470 = vmul.f32 %v434, %v440
      %v471 = vmul.f32 %v435, %v440
      %v472 = vmul.f32 %v436, %v440
      %v473 = vmul.f32 %v437, %v440
      %v474 = vld [vmem:[%s254] sm:$0x1]
      %v476 = vperm.slane %v474, 0
      %v478 = vadd.f32 %v442, %v476
      %v479 = vadd.f32 %v443, %v476
      %v480 = vadd.f32 %v444, %v476
      %v481 = vadd.f32 %v445, %v476
      %v482 = vadd.f32 %v446, %v476
      %v483 = vadd.f32 %v447, %v476
      %v484 = vadd.f32 %v448, %v476
      %v485 = vadd.f32 %v449, %v476
      %v486 = vadd.f32 %v450, %v476
      %v487 = vadd.f32 %v451, %v476
      %v488 = vadd.f32 %v452, %v476
      %v489 = vadd.f32 %v453, %v476
      %v490 = vadd.f32 %v454, %v476
      %v491 = vadd.f32 %v455, %v476
      %v492 = vadd.f32 %v456, %v476
      %v493 = vadd.f32 %v457, %v476
      %v494 = vadd.f32 %v458, %v476
      %v495 = vadd.f32 %v459, %v476
      %v496 = vadd.f32 %v460, %v476
      %v497 = vadd.f32 %v461, %v476
      %v498 = vadd.f32 %v462, %v476
      %v499 = vadd.f32 %v463, %v476
      %v500 = vadd.f32 %v464, %v476
      %v501 = vadd.f32 %v465, %v476
      %v502 = vadd.f32 %v466, %v476
      %v503 = vadd.f32 %v467, %v476
      %v504 = vadd.f32 %v468, %v476
      %v505 = vadd.f32 %v469, %v476
      %v506 = vadd.f32 %v470, %v476
      %v507 = vadd.f32 %v471, %v476
      %v508 = vadd.f32 %v472, %v476
      %v509 = vadd.f32 %v473, %v476
      %v510 = vmax.f32 %v478, 0.0
      %v511 = vmax.f32 %v479, 0.0
      %v512 = vmax.f32 %v480, 0.0
      %v513 = vmax.f32 %v481, 0.0
      %v514 = vmax.f32 %v482, 0.0
      %v515 = vmax.f32 %v483, 0.0
      %v516 = vmax.f32 %v484, 0.0
      %v517 = vmax.f32 %v485, 0.0
      %v518 = vmax.f32 %v486, 0.0
      %v519 = vmax.f32 %v487, 0.0
      %v520 = vmax.f32 %v488, 0.0
      %v521 = vmax.f32 %v489, 0.0
      %v522 = vmax.f32 %v490, 0.0
      %v523 = vmax.f32 %v491, 0.0
      %v524 = vmax.f32 %v492, 0.0
      %v525 = vmax.f32 %v493, 0.0
      %v526 = vmax.f32 %v494, 0.0
      %v527 = vmax.f32 %v495, 0.0
      %v528 = vmax.f32 %v496, 0.0
      %v529 = vmax.f32 %v497, 0.0
      %v530 = vmax.f32 %v498, 0.0
      %v531 = vmax.f32 %v499, 0.0
      %v532 = vmax.f32 %v500, 0.0
      %v533 = vmax.f32 %v501, 0.0
      %v534 = vmax.f32 %v502, 0.0
      %v535 = vmax.f32 %v503, 0.0
      %v536 = vmax.f32 %v504, 0.0
      %v537 = vmax.f32 %v505, 0.0
      %v538 = vmax.f32 %v506, 0.0
      %v539 = vmax.f32 %v507, 0.0
      %v540 = vmax.f32 %v508, 0.0
      %v541 = vmax.f32 %v509, 0.0
      %v542 = vpack.c.bf16 %v510, %v510
      %v543 = vpack.c.bf16 %v511, %v511
      %v544 = vpack.c.bf16 %v512, %v512
      %v545 = vpack.c.bf16 %v513, %v513
      %v546 = vpack.c.bf16 %v514, %v514
      %v547 = vpack.c.bf16 %v515, %v515
      %v548 = vpack.c.bf16 %v516, %v516
      %v549 = vpack.c.bf16 %v517, %v517
      %v550 = vpack.c.bf16 %v518, %v518
      %v551 = vpack.c.bf16 %v519, %v519
      %v552 = vpack.c.bf16 %v520, %v520
      %v553 = vpack.c.bf16 %v521, %v521
      %v554 = vpack.c.bf16 %v522, %v522
      %v555 = vpack.c.bf16 %v523, %v523
      %v556 = vpack.c.bf16 %v524, %v524
      %v557 = vpack.c.bf16 %v525, %v525
      %v558 = vpack.c.bf16 %v526, %v526
      %v559 = vpack.c.bf16 %v527, %v527
      %v560 = vpack.c.bf16 %v528, %v528
      %v561 = vpack.c.bf16 %v529, %v529
      %v562 = vpack.c.bf16 %v530, %v530
      %v563 = vpack.c.bf16 %v531, %v531
      %v564 = vpack.c.bf16 %v532, %v532
      %v565 = vpack.c.bf16 %v533, %v533
      %v566 = vpack.c.bf16 %v534, %v534
      %v567 = vpack.c.bf16 %v535, %v535
      %v568 = vpack.c.bf16 %v536, %v536
      %v569 = vpack.c.bf16 %v537, %v537
      %v570 = vpack.c.bf16 %v538, %v538
      %v571 = vpack.c.bf16 %v539, %v539
      %v572 = vpack.c.bf16 %v540, %v540
      %v573 = vpack.c.bf16 %v541, %v541
      %vm574 = vsmask.f32 4368
      %vm575 = vmor %vm274, %vm574
      %v577 = vshrl.u32 %v542, 16
      %v579 = vrot.slane %v577, 7
      %v580 = vshll.u32 %v542, 16
      %v582 = vor.u32 %v579, %v580
      %v583 = vrot.slane %v579, 4
      %v585 = vshrl.u32 %v543, 16
      %v587 = vrot.slane %v585, 7
      %v588 = vshll.u32 %v543, 16
      %v590 = vor.u32 %v587, %v588
      %v591 = vsel %vm575, %v583, %v590
      %v592 = vrot.slane %v587, 4
      %v594 = vshrl.u32 %v544, 16
      %v596 = vrot.slane %v594, 7
      %v597 = vshll.u32 %v544, 16
      %v599 = vor.u32 %v596, %v597
      %v600 = vrot.slane %v596, 4
      %v602 = vshrl.u32 %v545, 16
      %v604 = vrot.slane %v602, 7
      %v605 = vshll.u32 %v545, 16
      %v607 = vor.u32 %v604, %v605
      %v608 = vsel %vm575, %v600, %v607
      %v609 = vrot.slane %v604, 4
      %v611 = vshrl.u32 %v546, 16
      %v613 = vrot.slane %v611, 7
      %v614 = vshll.u32 %v546, 16
      %v616 = vor.u32 %v613, %v614
      %v617 = vrot.slane %v613, 4
      %v619 = vshrl.u32 %v547, 16
      %v621 = vrot.slane %v619, 7
      %v622 = vshll.u32 %v547, 16
      %v624 = vor.u32 %v621, %v622
      %v625 = vsel %vm575, %v617, %v624
      %v626 = vrot.slane %v621, 4
      %v628 = vshrl.u32 %v548, 16
      %v630 = vrot.slane %v628, 7
      %v631 = vshll.u32 %v548, 16
      %v633 = vor.u32 %v630, %v631
      %v634 = vrot.slane %v630, 4
      %v636 = vshrl.u32 %v549, 16
      %v638 = vrot.slane %v636, 7
      %v639 = vshll.u32 %v549, 16
      %v641 = vor.u32 %v638, %v639
      %v642 = vsel %vm575, %v634, %v641
      %v643 = vrot.slane %v638, 4
      %v645 = vshrl.u32 %v550, 16
      %v647 = vrot.slane %v645, 7
      %v648 = vshll.u32 %v550, 16
      %v650 = vor.u32 %v647, %v648
      %v651 = vrot.slane %v647, 4
      %v653 = vshrl.u32 %v551, 16
      %v655 = vrot.slane %v653, 7
      %v656 = vshll.u32 %v551, 16
      %v658 = vor.u32 %v655, %v656
      %v659 = vsel %vm575, %v651, %v658
      %v660 = vrot.slane %v655, 4
      %v662 = vshrl.u32 %v552, 16
      %v664 = vrot.slane %v662, 7
      %v665 = vshll.u32 %v552, 16
      %v667 = vor.u32 %v664, %v665
      %v668 = vrot.slane %v664, 4
      %v670 = vshrl.u32 %v553, 16
      %v672 = vrot.slane %v670, 7
      %v673 = vshll.u32 %v553, 16
      %v675 = vor.u32 %v672, %v673
      %v676 = vsel %vm575, %v668, %v675
      %v677 = vrot.slane %v672, 4
      %v679 = vshrl.u32 %v554, 16
      %v681 = vrot.slane %v679, 7
      %v682 = vshll.u32 %v554, 16
      %v684 = vor.u32 %v681, %v682
      %v685 = vrot.slane %v681, 4
      %v687 = vshrl.u32 %v555, 16
      %v689 = vrot.slane %v687, 7
      %v690 = vshll.u32 %v555, 16
      %v692 = vor.u32 %v689, %v690
      %v693 = vsel %vm575, %v685, %v692
      %v694 = vrot.slane %v689, 4
      %v696 = vshrl.u32 %v556, 16
      %v698 = vrot.slane %v696, 7
      %v699 = vshll.u32 %v556, 16
      %v701 = vor.u32 %v698, %v699
      %v702 = vrot.slane %v698, 4
      %v704 = vshrl.u32 %v557, 16
      %v706 = vrot.slane %v704, 7
      %v707 = vshll.u32 %v557, 16
      %v709 = vor.u32 %v706, %v707
      %v710 = vsel %vm575, %v702, %v709
      %v711 = vrot.slane %v706, 4
      %v713 = vshrl.u32 %v558, 16
      %v715 = vrot.slane %v713, 7
      %v716 = vshll.u32 %v558, 16
      %v718 = vor.u32 %v715, %v716
      %v719 = vrot.slane %v715, 4
      %v721 = vshrl.u32 %v559, 16
      %v723 = vrot.slane %v721, 7
      %v724 = vshll.u32 %v559, 16
      %v726 = vor.u32 %v723, %v724
      %v727 = vsel %vm575, %v719, %v726
      %v728 = vrot.slane %v723, 4
      %v730 = vshrl.u32 %v560, 16
      %v732 = vrot.slane %v730, 7
      %v733 = vshll.u32 %v560, 16
      %v735 = vor.u32 %v732, %v733
      %v736 = vrot.slane %v732, 4
      %v738 = vshrl.u32 %v561, 16
      %v740 = vrot.slane %v738, 7
      %v741 = vshll.u32 %v561, 16
      %v743 = vor.u32 %v740, %v741
      %v744 = vsel %vm575, %v736, %v743
      %v745 = vrot.slane %v740, 4
      %v747 = vshrl.u32 %v562, 16
      %v749 = vrot.slane %v747, 7
      %v750 = vshll.u32 %v562, 16
      %v752 = vor.u32 %v749, %v750
      %v753 = vrot.slane %v749, 4
      %v755 = vshrl.u32 %v563, 16
      %v757 = vrot.slane %v755, 7
      %v758 = vshll.u32 %v563, 16
      %v760 = vor.u32 %v757, %v758
      %v761 = vsel %vm575, %v753, %v760
      %v762 = vrot.slane %v757, 4
      %v764 = vshrl.u32 %v564, 16
      %v766 = vrot.slane %v764, 7
      %v767 = vshll.u32 %v564, 16
      %v769 = vor.u32 %v766, %v767
      %v770 = vrot.slane %v766, 4
      %v772 = vshrl.u32 %v565, 16
      %v774 = vrot.slane %v772, 7
      %v775 = vshll.u32 %v565, 16
      %v777 = vor.u32 %v774, %v775
      %v778 = vsel %vm575, %v770, %v777
      %v779 = vrot.slane %v774, 4
      %v781 = vshrl.u32 %v566, 16
      %v783 = vrot.slane %v781, 7
      %v784 = vshll.u32 %v566, 16
      %v786 = vor.u32 %v783, %v784
      %v787 = vrot.slane %v783, 4
      %v789 = vshrl.u32 %v567, 16
      %v791 = vrot.slane %v789, 7
      %v792 = vshll.u32 %v567, 16
      %v794 = vor.u32 %v791, %v792
      %v795 = vsel %vm575, %v787, %v794
      %v796 = vrot.slane %v791, 4
      %v798 = vshrl.u32 %v568, 16
      %v800 = vrot.slane %v798, 7
      %v801 = vshll.u32 %v568, 16
      %v803 = vor.u32 %v800, %v801
      %v804 = vrot.slane %v800, 4
      %v806 = vshrl.u32 %v569, 16
      %v808 = vrot.slane %v806, 7
      %v809 = vshll.u32 %v569, 16
      %v811 = vor.u32 %v808, %v809
      %v812 = vsel %vm575, %v804, %v811
      %v813 = vrot.slane %v808, 4
      %v815 = vshrl.u32 %v570, 16
      %v817 = vrot.slane %v815, 7
      %v818 = vshll.u32 %v570, 16
      %v820 = vor.u32 %v817, %v818
      %v821 = vrot.slane %v817, 4
      %v823 = vshrl.u32 %v571, 16
      %v825 = vrot.slane %v823, 7
      %v826 = vshll.u32 %v571, 16
      %v828 = vor.u32 %v825, %v826
      %v829 = vsel %vm575, %v821, %v828
      %v830 = vrot.slane %v825, 4
      %v832 = vshrl.u32 %v572, 16
      %v834 = vrot.slane %v832, 7
      %v835 = vshll.u32 %v572, 16
      %v837 = vor.u32 %v834, %v835
      %v838 = vrot.slane %v834, 4
      %v840 = vshrl.u32 %v573, 16
      %v842 = vrot.slane %v840, 7
      %v843 = vshll.u32 %v573, 16
      %v845 = vor.u32 %v842, %v843
      %v846 = vsel %vm575, %v838, %v845
      %v847 = vrot.slane %v842, 4
      %vm896 = vcmask 1043456
      %vm897 = vmand %vm896, %vm324
      %v898 = vld [vmem:[%s272] sm:$0xf]
      %v899 = vsel %vm897, %v582, %v898
      %900 = vst [vmem:[%s272] sm:$0xf] %v899
      %901 = vst [vmem:[%s272 + $0x4] sm:$0xf] %v591
      %v902 = vld [vmem:[%s272 + $0x8] sm:$0x1]
      %v903 = vsel %vm275, %v592, %v902
      %904 = vst [vmem:[%s272 + $0x8] sm:$0x1] %v903
      %v905 = vld [vmem:[%s272 + $0xc] sm:$0xf]
      %v906 = vsel %vm897, %v599, %v905
      %907 = vst [vmem:[%s272 + $0xc] sm:$0xf] %v906
      %908 = vst [vmem:[%s272 + $0x10] sm:$0xf] %v608
      %v909 = vld [vmem:[%s272 + $0x14] sm:$0x1]
      %v910 = vsel %vm275, %v609, %v909
      %911 = vst [vmem:[%s272 + $0x14] sm:$0x1] %v910
      %v912 = vld [vmem:[%s272 + $0x18] sm:$0xf]
      %v913 = vsel %vm897, %v616, %v912
      %914 = vst [vmem:[%s272 + $0x18] sm:$0xf] %v913
      %915 = vst [vmem:[%s272 + $0x1c] sm:$0xf] %v625
      %v916 = vld [vmem:[%s272 + $0x20] sm:$0x1]
      %v917 = vsel %vm275, %v626, %v916
      %918 = vst [vmem:[%s272 + $0x20] sm:$0x1] %v917
      %v919 = vld [vmem:[%s272 + $0x24] sm:$0xf]
      %v920 = vsel %vm897, %v633, %v919
      %921 = vst [vmem:[%s272 + $0x24] sm:$0xf] %v920
      %922 = vst [vmem:[%s272 + $0x28] sm:$0xf] %v642
      %v923 = vld [vmem:[%s272 + $0x2c] sm:$0x1]
      %v924 = vsel %vm275, %v643, %v923
      %925 = vst [vmem:[%s272 + $0x2c] sm:$0x1] %v924
      %v926 = vld [vmem:[%s272 + $0x30] sm:$0xf]
      %v927 = vsel %vm897, %v650, %v926
      %928 = vst [vmem:[%s272 + $0x30] sm:$0xf] %v927
      %929 = vst [vmem:[%s272 + $0x34] sm:$0xf] %v659
      %v930 = vld [vmem:[%s272 + $0x38] sm:$0x1]
      %v931 = vsel %vm275, %v660, %v930
      %932 = vst [vmem:[%s272 + $0x38] sm:$0x1] %v931
      %v933 = vld [vmem:[%s272 + $0x3c] sm:$0xf]
      %v934 = vsel %vm897, %v667, %v933
      %935 = vst [vmem:[%s272 + $0x3c] sm:$0xf] %v934
      %936 = vst [vmem:[%s272 + $0x40] sm:$0xf] %v676
      %v937 = vld [vmem:[%s272 + $0x44] sm:$0x1]
      %v938 = vsel %vm275, %v677, %v937
      %939 = vst [vmem:[%s272 + $0x44] sm:$0x1] %v938
      %v940 = vld [vmem:[%s272 + $0x48] sm:$0xf]
      %v941 = vsel %vm897, %v684, %v940
      %942 = vst [vmem:[%s272 + $0x48] sm:$0xf] %v941
      %943 = vst [vmem:[%s272 + $0x4c] sm:$0xf] %v693
      %v944 = vld [vmem:[%s272 + $0x50] sm:$0x1]
      %v945 = vsel %vm275, %v694, %v944
      %946 = vst [vmem:[%s272 + $0x50] sm:$0x1] %v945
      %v947 = vld [vmem:[%s272 + $0x54] sm:$0xf]
      %v948 = vsel %vm897, %v701, %v947
      %949 = vst [vmem:[%s272 + $0x54] sm:$0xf] %v948
      %950 = vst [vmem:[%s272 + $0x58] sm:$0xf] %v710
      %v951 = vld [vmem:[%s272 + $0x5c] sm:$0x1]
      %v952 = vsel %vm275, %v711, %v951
      %953 = vst [vmem:[%s272 + $0x5c] sm:$0x1] %v952
      %v954 = vld [vmem:[%s272 + $0x60] sm:$0xf]
      %v955 = vsel %vm897, %v718, %v954
      %956 = vst [vmem:[%s272 + $0x60] sm:$0xf] %v955
      %957 = vst [vmem:[%s272 + $0x64] sm:$0xf] %v727
      %v958 = vld [vmem:[%s272 + $0x68] sm:$0x1]
      %v959 = vsel %vm275, %v728, %v958
      %960 = vst [vmem:[%s272 + $0x68] sm:$0x1] %v959
      %v961 = vld [vmem:[%s272 + $0x6c] sm:$0xf]
      %v962 = vsel %vm897, %v735, %v961
      %963 = vst [vmem:[%s272 + $0x6c] sm:$0xf] %v962
      %964 = vst [vmem:[%s272 + $0x70] sm:$0xf] %v744
      %v965 = vld [vmem:[%s272 + $0x74] sm:$0x1]
      %v966 = vsel %vm275, %v745, %v965
      %967 = vst [vmem:[%s272 + $0x74] sm:$0x1] %v966
      %v968 = vld [vmem:[%s272 + $0x78] sm:$0xf]
      %v969 = vsel %vm897, %v752, %v968
      %970 = vst [vmem:[%s272 + $0x78] sm:$0xf] %v969
      %971 = vst [vmem:[%s272 + $0x7c] sm:$0xf] %v761
      %v972 = vld [vmem:[%s272 + $0x80] sm:$0x1]
      %v973 = vsel %vm275, %v762, %v972
      %974 = vst [vmem:[%s272 + $0x80] sm:$0x1] %v973
      %v975 = vld [vmem:[%s272 + $0x84] sm:$0xf]
      %v976 = vsel %vm897, %v769, %v975
      %977 = vst [vmem:[%s272 + $0x84] sm:$0xf] %v976
      %978 = vst [vmem:[%s272 + $0x88] sm:$0xf] %v778
      %v979 = vld [vmem:[%s272 + $0x8c] sm:$0x1]
      %v980 = vsel %vm275, %v779, %v979
      %981 = vst [vmem:[%s272 + $0x8c] sm:$0x1] %v980
      %v982 = vld [vmem:[%s272 + $0x90] sm:$0xf]
      %v983 = vsel %vm897, %v786, %v982
      %984 = vst [vmem:[%s272 + $0x90] sm:$0xf] %v983
      %985 = vst [vmem:[%s272 + $0x94] sm:$0xf] %v795
      %v986 = vld [vmem:[%s272 + $0x98] sm:$0x1]
      %v987 = vsel %vm275, %v796, %v986
      %988 = vst [vmem:[%s272 + $0x98] sm:$0x1] %v987
      %v989 = vld [vmem:[%s272 + $0x9c] sm:$0xf]
      %v990 = vsel %vm897, %v803, %v989
      %991 = vst [vmem:[%s272 + $0x9c] sm:$0xf] %v990
      %992 = vst [vmem:[%s272 + $0xa0] sm:$0xf] %v812
      %v993 = vld [vmem:[%s272 + $0xa4] sm:$0x1]
      %v994 = vsel %vm275, %v813, %v993
      %995 = vst [vmem:[%s272 + $0xa4] sm:$0x1] %v994
      %v996 = vld [vmem:[%s272 + $0xa8] sm:$0xf]
      %v997 = vsel %vm897, %v820, %v996
      %998 = vst [vmem:[%s272 + $0xa8] sm:$0xf] %v997
      %999 = vst [vmem:[%s272 + $0xac] sm:$0xf] %v829
      %v1000 = vld [vmem:[%s272 + $0xb0] sm:$0x1]
      %v1001 = vsel %vm275, %v830, %v1000
      %1002 = vst [vmem:[%s272 + $0xb0] sm:$0x1] %v1001
      %v1003 = vld [vmem:[%s272 + $0xb4] sm:$0xf]
      %v1004 = vsel %vm897, %v837, %v1003
      %1005 = vst [vmem:[%s272 + $0xb4] sm:$0xf] %v1004
      %1006 = vst [vmem:[%s272 + $0xb8] sm:$0xf] %v846
      %v1007 = vld [vmem:[%s272 + $0xbc] sm:$0x1]
      %v1008 = vsel %vm275, %v847, %v1007
      %1009 = vst [vmem:[%s272 + $0xbc] sm:$0x1] %v1008
      %v1010 = vld [vmem:[#allocation2] sm:$0xf]
      %v1011 = vld [vmem:[#allocation2 + $0x4] sm:$0xf]
      %v1012 = vld [vmem:[#allocation2 + $0x8] sm:$0xf]
      %v1013 = vld [vmem:[#allocation2 + $0xc] sm:$0xf]
      %v1014 = vld [vmem:[#allocation2 + $0x10] sm:$0xf]
      %v1015 = vld [vmem:[#allocation2 + $0x14] sm:$0xf]
      %v1016 = vld [vmem:[#allocation2 + $0x18] sm:$0xf]
      %v1017 = vld [vmem:[#allocation2 + $0x1c] sm:$0xf]
      %v1018 = vld [vmem:[#allocation2 + $0x20] sm:$0xf]
      %v1019 = vld [vmem:[#allocation2 + $0x24] sm:$0xf]
      %v1020 = vld [vmem:[#allocation2 + $0x28] sm:$0xf]
      %v1021 = vld [vmem:[#allocation2 + $0x2c] sm:$0xf]
      %v1022 = vld [vmem:[#allocation2 + $0x30] sm:$0xf]
      %v1023 = vld [vmem:[#allocation2 + $0x34] sm:$0xf]
      %v1024 = vld [vmem:[#allocation2 + $0x38] sm:$0xf]
      %v1025 = vld [vmem:[#allocation2 + $0x3c] sm:$0xf]
      %v1026 = vld [vmem:[#allocation2 + $0x40] sm:$0xf]
      %v1027 = vld [vmem:[#allocation2 + $0x44] sm:$0xf]
      %v1028 = vld [vmem:[#allocation2 + $0x48] sm:$0xf]
      %v1029 = vld [vmem:[#allocation2 + $0x4c] sm:$0xf]
      %v1030 = vld [vmem:[#allocation2 + $0x50] sm:$0xf]
      %v1031 = vld [vmem:[#allocation2 + $0x54] sm:$0xf]
      %v1032 = vld [vmem:[#allocation2 + $0x58] sm:$0xf]
      %v1033 = vld [vmem:[#allocation2 + $0x5c] sm:$0xf]
      %v1034 = vld [vmem:[#allocation2 + $0x60] sm:$0xf]
      %v1035 = vld [vmem:[#allocation2 + $0x64] sm:$0xf]
      %v1036 = vld [vmem:[#allocation2 + $0x68] sm:$0xf]
      %v1037 = vld [vmem:[#allocation2 + $0x6c] sm:$0xf]
      %v1038 = vld [vmem:[#allocation2 + $0x70] sm:$0xf]
      %v1039 = vld [vmem:[#allocation2 + $0x74] sm:$0xf]
      %v1040 = vld [vmem:[#allocation2 + $0x78] sm:$0xf]
      %v1041 = vld [vmem:[#allocation2 + $0x7c] sm:$0xf]
      %v1042 = vld [vmem:[#allocation2 + $0x80] sm:$0xf]
      %v1043 = vld [vmem:[#allocation2 + $0x84] sm:$0xf]
      %v1044 = vld [vmem:[#allocation2 + $0x88] sm:$0xf]
      %v1045 = vld [vmem:[#allocation2 + $0x8c] sm:$0xf]
      %v1046 = vld [vmem:[#allocation2 + $0x90] sm:$0xf]
      %v1047 = vld [vmem:[#allocation2 + $0x94] sm:$0xf]
      %v1048 = vld [vmem:[#allocation2 + $0x98] sm:$0xf]
      %v1049 = vld [vmem:[#allocation2 + $0x9c] sm:$0xf]
      %v1050 = vld [vmem:[#allocation2 + $0xa0] sm:$0xf]
      %v1051 = vld [vmem:[#allocation2 + $0xa4] sm:$0xf]
      %v1052 = vld [vmem:[#allocation2 + $0xa8] sm:$0xf]
      %v1053 = vld [vmem:[#allocation2 + $0xac] sm:$0xf]
      %v1054 = vld [vmem:[#allocation2 + $0xb0] sm:$0xf]
      %v1055 = vld [vmem:[#allocation2 + $0xb4] sm:$0xf]
      %v1056 = vld [vmem:[#allocation2 + $0xb8] sm:$0xf]
      %v1057 = vld [vmem:[#allocation2 + $0xbc] sm:$0xf]
      %v1058 = vld [vmem:[#allocation2 + $0xc0] sm:$0xf]
      %v1059 = vld [vmem:[#allocation2 + $0xc4] sm:$0xf]
      %v1060 = vld [vmem:[#allocation2 + $0xc8] sm:$0xf]
      %v1061 = vld [vmem:[#allocation2 + $0xcc] sm:$0xf]
      %v1062 = vld [vmem:[#allocation2 + $0xd0] sm:$0xf]
      %v1063 = vld [vmem:[#allocation2 + $0xd4] sm:$0xf]
      %vm1064 = vsmask.f32 3328
      %vm1065 = vsmask.f32 7440
      %vm1066 = vmor %vm1064, %vm1065
      %v1068 = vshrl.u32 %v1010, 16
      %v1070 = vrot.slane %v1068, 4
      %v1071 = vshll.u32 %v1010, 16
      %v1073 = vrot.slane %v1071, 5
      %v1074 = vor.u32 %v1070, %v1073
      %v1075 = vrot.slane %v1074, 4
      %v1077 = vshll.u32 %v1011, 16
      %v1079 = vrot.slane %v1077, 5
      %v1080 = vsel %vm1066, %v1075, %v1079
      %v1081 = vshrl.u32 %v1011, 16
      %v1083 = vrot.slane %v1081, 4
      %v1084 = vor.u32 %v1083, %v1079
      %v1085 = vrot.slane %v1084, 4
      %v1087 = vshll.u32 %v1012, 16
      %v1089 = vrot.slane %v1087, 5
      %v1090 = vsel %vm1066, %v1085, %v1089
      %v1092 = vshrl.u32 %v1013, 16
      %v1094 = vrot.slane %v1092, 4
      %v1095 = vshll.u32 %v1013, 16
      %v1097 = vrot.slane %v1095, 5
      %v1098 = vor.u32 %v1094, %v1097
      %v1099 = vrot.slane %v1098, 4
      %v1101 = vshll.u32 %v1014, 16
      %v1103 = vrot.slane %v1101, 5
      %v1104 = vsel %vm1066, %v1099, %v1103
      %v1105 = vshrl.u32 %v1014, 16
      %v1107 = vrot.slane %v1105, 4
      %v1108 = vor.u32 %v1107, %v1103
      %v1109 = vrot.slane %v1108, 4
      %v1111 = vshll.u32 %v1015, 16
      %v1113 = vrot.slane %v1111, 5
      %v1114 = vsel %vm1066, %v1109, %v1113
      %v1116 = vshrl.u32 %v1016, 16
      %v1118 = vrot.slane %v1116, 4
      %v1119 = vshll.u32 %v1016, 16
      %v1121 = vrot.slane %v1119, 5
      %v1122 = vor.u32 %v1118, %v1121
      %v1123 = vrot.slane %v1122, 4
      %v1125 = vshll.u32 %v1017, 16
      %v1127 = vrot.slane %v1125, 5
      %v1128 = vsel %vm1066, %v1123, %v1127
      %v1129 = vshrl.u32 %v1017, 16
      %v1131 = vrot.slane %v1129, 4
      %v1132 = vor.u32 %v1131, %v1127
      %v1133 = vrot.slane %v1132, 4
      %v1135 = vshll.u32 %v1018, 16
      %v1137 = vrot.slane %v1135, 5
      %v1138 = vsel %vm1066, %v1133, %v1137
      %v1140 = vshrl.u32 %v1019, 16
      %v1142 = vrot.slane %v1140, 4
      %v1143 = vshll.u32 %v1019, 16
      %v1145 = vrot.slane %v1143, 5
      %v1146 = vor.u32 %v1142, %v1145
      %v1147 = vrot.slane %v1146, 4
      %v1149 = vshll.u32 %v1020, 16
      %v1151 = vrot.slane %v1149, 5
      %v1152 = vsel %vm1066, %v1147, %v1151
      %v1153 = vshrl.u32 %v1020, 16
      %v1155 = vrot.slane %v1153, 4
      %v1156 = vor.u32 %v1155, %v1151
      %v1157 = vrot.slane %v1156, 4
      %v1159 = vshll.u32 %v1021, 16
      %v1161 = vrot.slane %v1159, 5
      %v1162 = vsel %vm1066, %v1157, %v1161
      %v1164 = vshrl.u32 %v1022, 16
      %v1166 = vrot.slane %v1164, 4
      %v1167 = vshll.u32 %v1022, 16
      %v1169 = vrot.slane %v1167, 5
      %v1170 = vor.u32 %v1166, %v1169
      %v1171 = vrot.slane %v1170, 4
      %v1173 = vshll.u32 %v1023, 16
      %v1175 = vrot.slane %v1173, 5
      %v1176 = vsel %vm1066, %v1171, %v1175
      %v1177 = vshrl.u32 %v1023, 16
      %v1179 = vrot.slane %v1177, 4
      %v1180 = vor.u32 %v1179, %v1175
      %v1181 = vrot.slane %v1180, 4
      %v1183 = vshll.u32 %v1024, 16
      %v1185 = vrot.slane %v1183, 5
      %v1186 = vsel %vm1066, %v1181, %v1185
      %v1188 = vshrl.u32 %v1025, 16
      %v1190 = vrot.slane %v1188, 4
      %v1191 = vshll.u32 %v1025, 16
      %v1193 = vrot.slane %v1191, 5
      %v1194 = vor.u32 %v1190, %v1193
      %v1195 = vrot.slane %v1194, 4
      %v1197 = vshll.u32 %v1026, 16
      %v1199 = vrot.slane %v1197, 5
      %v1200 = vsel %vm1066, %v1195, %v1199
      %v1201 = vshrl.u32 %v1026, 16
      %v1203 = vrot.slane %v1201, 4
      %v1204 = vor.u32 %v1203, %v1199
      %v1205 = vrot.slane %v1204, 4
      %v1207 = vshll.u32 %v1027, 16
      %v1209 = vrot.slane %v1207, 5
      %v1210 = vsel %vm1066, %v1205, %v1209
      %v1212 = vshrl.u32 %v1028, 16
      %v1214 = vrot.slane %v1212, 4
      %v1215 = vshll.u32 %v1028, 16
      %v1217 = vrot.slane %v1215, 5
      %v1218 = vor.u32 %v1214, %v1217
      %v1219 = vrot.slane %v1218, 4
      %v1221 = vshll.u32 %v1029, 16
      %v1223 = vrot.slane %v1221, 5
      %v1224 = vsel %vm1066, %v1219, %v1223
      %v1225 = vshrl.u32 %v1029, 16
      %v1227 = vrot.slane %v1225, 4
      %v1228 = vor.u32 %v1227, %v1223
      %v1229 = vrot.slane %v1228, 4
      %v1231 = vshll.u32 %v1030, 16
      %v1233 = vrot.slane %v1231, 5
      %v1234 = vsel %vm1066, %v1229, %v1233
      %v1236 = vshrl.u32 %v1031, 16
      %v1238 = vrot.slane %v1236, 4
      %v1239 = vshll.u32 %v1031, 16
      %v1241 = vrot.slane %v1239, 5
      %v1242 = vor.u32 %v1238, %v1241
      %v1243 = vrot.slane %v1242, 4
      %v1245 = vshll.u32 %v1032, 16
      %v1247 = vrot.slane %v1245, 5
      %v1248 = vsel %vm1066, %v1243, %v1247
      %v1249 = vshrl.u32 %v1032, 16
      %v1251 = vrot.slane %v1249, 4
      %v1252 = vor.u32 %v1251, %v1247
      %v1253 = vrot.slane %v1252, 4
      %v1255 = vshll.u32 %v1033, 16
      %v1257 = vrot.slane %v1255, 5
      %v1258 = vsel %vm1066, %v1253, %v1257
      %v1260 = vshrl.u32 %v1034, 16
      %v1262 = vrot.slane %v1260, 4
      %v1263 = vshll.u32 %v1034, 16
      %v1265 = vrot.slane %v1263, 5
      %v1266 = vor.u32 %v1262, %v1265
      %v1267 = vrot.slane %v1266, 4
      %v1269 = vshll.u32 %v1035, 16
      %v1271 = vrot.slane %v1269, 5
      %v1272 = vsel %vm1066, %v1267, %v1271
      %v1273 = vshrl.u32 %v1035, 16
      %v1275 = vrot.slane %v1273, 4
      %v1276 = vor.u32 %v1275, %v1271
      %v1277 = vrot.slane %v1276, 4
      %v1279 = vshll.u32 %v1036, 16
      %v1281 = vrot.slane %v1279, 5
      %v1282 = vsel %vm1066, %v1277, %v1281
      %v1284 = vshrl.u32 %v1037, 16
      %v1286 = vrot.slane %v1284, 4
      %v1287 = vshll.u32 %v1037, 16
      %v1289 = vrot.slane %v1287, 5
      %v1290 = vor.u32 %v1286, %v1289
      %v1291 = vrot.slane %v1290, 4
      %v1293 = vshll.u32 %v1038, 16
      %v1295 = vrot.slane %v1293, 5
      %v1296 = vsel %vm1066, %v1291, %v1295
      %v1297 = vshrl.u32 %v1038, 16
      %v1299 = vrot.slane %v1297, 4
      %v1300 = vor.u32 %v1299, %v1295
      %v1301 = vrot.slane %v1300, 4
      %v1303 = vshll.u32 %v1039, 16
      %v1305 = vrot.slane %v1303, 5
      %v1306 = vsel %vm1066, %v1301, %v1305
      %v1308 = vshrl.u32 %v1040, 16
      %v1310 = vrot.slane %v1308, 4
      %v1311 = vshll.u32 %v1040, 16
      %v1313 = vrot.slane %v1311, 5
      %v1314 = vor.u32 %v1310, %v1313
      %v1315 = vrot.slane %v1314, 4
      %v1317 = vshll.u32 %v1041, 16
      %v1319 = vrot.slane %v1317, 5
      %v1320 = vsel %vm1066, %v1315, %v1319
      %v1321 = vshrl.u32 %v1041, 16
      %v1323 = vrot.slane %v1321, 4
      %v1324 = vor.u32 %v1323, %v1319
      %v1325 = vrot.slane %v1324, 4
      %v1327 = vshll.u32 %v1042, 16
      %v1329 = vrot.slane %v1327, 5
      %v1330 = vsel %vm1066, %v1325, %v1329
      %v1332 = vshrl.u32 %v1043, 16
      %v1334 = vrot.slane %v1332, 4
      %v1335 = vshll.u32 %v1043, 16
      %v1337 = vrot.slane %v1335, 5
      %v1338 = vor.u32 %v1334, %v1337
      %v1339 = vrot.slane %v1338, 4
      %v1341 = vshll.u32 %v1044, 16
      %v1343 = vrot.slane %v1341, 5
      %v1344 = vsel %vm1066, %v1339, %v1343
      %v1345 = vshrl.u32 %v1044, 16
      %v1347 = vrot.slane %v1345, 4
      %v1348 = vor.u32 %v1347, %v1343
      %v1349 = vrot.slane %v1348, 4
      %v1351 = vshll.u32 %v1045, 16
      %v1353 = vrot.slane %v1351, 5
      %v1354 = vsel %vm1066, %v1349, %v1353
      %v1356 = vshrl.u32 %v1046, 16
      %v1358 = vrot.slane %v1356, 4
      %v1359 = vshll.u32 %v1046, 16
      %v1361 = vrot.slane %v1359, 5
      %v1362 = vor.u32 %v1358, %v1361
      %v1363 = vrot.slane %v1362, 4
      %v1365 = vshll.u32 %v1047, 16
      %v1367 = vrot.slane %v1365, 5
      %v1368 = vsel %vm1066, %v1363, %v1367
      %v1369 = vshrl.u32 %v1047, 16
      %v1371 = vrot.slane %v1369, 4
      %v1372 = vor.u32 %v1371, %v1367
      %v1373 = vrot.slane %v1372, 4
      %v1375 = vshll.u32 %v1048, 16
      %v1377 = vrot.slane %v1375, 5
      %v1378 = vsel %vm1066, %v1373, %v1377
      %v1380 = vshrl.u32 %v1049, 16
      %v1382 = vrot.slane %v1380, 4
      %v1383 = vshll.u32 %v1049, 16
      %v1385 = vrot.slane %v1383, 5
      %v1386 = vor.u32 %v1382, %v1385
      %v1387 = vrot.slane %v1386, 4
      %v1389 = vshll.u32 %v1050, 16
      %v1391 = vrot.slane %v1389, 5
      %v1392 = vsel %vm1066, %v1387, %v1391
      %v1393 = vshrl.u32 %v1050, 16
      %v1395 = vrot.slane %v1393, 4
      %v1396 = vor.u32 %v1395, %v1391
      %v1397 = vrot.slane %v1396, 4
      %v1399 = vshll.u32 %v1051, 16
      %v1401 = vrot.slane %v1399, 5
      %v1402 = vsel %vm1066, %v1397, %v1401
      %v1404 = vshrl.u32 %v1052, 16
      %v1406 = vrot.slane %v1404, 4
      %v1407 = vshll.u32 %v1052, 16
      %v1409 = vrot.slane %v1407, 5
      %v1410 = vor.u32 %v1406, %v1409
      %v1411 = vrot.slane %v1410, 4
      %v1413 = vshll.u32 %v1053, 16
      %v1415 = vrot.slane %v1413, 5
      %v1416 = vsel %vm1066, %v1411, %v1415
      %v1417 = vshrl.u32 %v1053, 16
      %v1419 = vrot.slane %v1417, 4
      %v1420 = vor.u32 %v1419, %v1415
      %v1421 = vrot.slane %v1420, 4
      %v1423 = vshll.u32 %v1054, 16
      %v1425 = vrot.slane %v1423, 5
      %v1426 = vsel %vm1066, %v1421, %v1425
      %v1428 = vshrl.u32 %v1055, 16
      %v1430 = vrot.slane %v1428, 4
      %v1431 = vshll.u32 %v1055, 16
      %v1433 = vrot.slane %v1431, 5
      %v1434 = vor.u32 %v1430, %v1433
      %v1435 = vrot.slane %v1434, 4
      %v1437 = vshll.u32 %v1056, 16
      %v1439 = vrot.slane %v1437, 5
      %v1440 = vsel %vm1066, %v1435, %v1439
      %v1441 = vshrl.u32 %v1056, 16
      %v1443 = vrot.slane %v1441, 4
      %v1444 = vor.u32 %v1443, %v1439
      %v1445 = vrot.slane %v1444, 4
      %v1447 = vshll.u32 %v1057, 16
      %v1449 = vrot.slane %v1447, 5
      %v1450 = vsel %vm1066, %v1445, %v1449
      %vm1499 = vcmask 1042432
      %vm1500 = vcmask 1046532
      %vm1501 = vmor %vm1499, %vm1500
      %v1502 = vrot.slane %v1010, 5
      %v1503 = vrot.slane %v1502, 4
      %v1504 = vrot.slane %v1011, 5
      %v1505 = vsel %vm1501, %v1503, %v1504
      %v1506 = vrot.slane %v1504, 4
      %v1507 = vrot.slane %v1012, 5
      %v1508 = vsel %vm1501, %v1506, %v1507
      %v1509 = vrot.slane %v1013, 5
      %v1510 = vrot.slane %v1509, 4
      %v1511 = vrot.slane %v1014, 5
      %v1512 = vsel %vm1501, %v1510, %v1511
      %v1513 = vrot.slane %v1511, 4
      %v1514 = vrot.slane %v1015, 5
      %v1515 = vsel %vm1501, %v1513, %v1514
      %v1516 = vrot.slane %v1016, 5
      %v1517 = vrot.slane %v1516, 4
      %v1518 = vrot.slane %v1017, 5
      %v1519 = vsel %vm1501, %v1517, %v1518
      %v1520 = vrot.slane %v1518, 4
      %v1521 = vrot.slane %v1018, 5
      %v1522 = vsel %vm1501, %v1520, %v1521
      %v1523 = vrot.slane %v1019, 5
      %v1524 = vrot.slane %v1523, 4
      %v1525 = vrot.slane %v1020, 5
      %v1526 = vsel %vm1501, %v1524, %v1525
      %v1527 = vrot.slane %v1525, 4
      %v1528 = vrot.slane %v1021, 5
      %v1529 = vsel %vm1501, %v1527, %v1528
      %v1530 = vrot.slane %v1022, 5
      %v1531 = vrot.slane %v1530, 4
      %v1532 = vrot.slane %v1023, 5
      %v1533 = vsel %vm1501, %v1531, %v1532
      %v1534 = vrot.slane %v1532, 4
      %v1535 = vrot.slane %v1024, 5
      %v1536 = vsel %vm1501, %v1534, %v1535
      %v1537 = vrot.slane %v1025, 5
      %v1538 = vrot.slane %v1537, 4
      %v1539 = vrot.slane %v1026, 5
      %v1540 = vsel %vm1501, %v1538, %v1539
      %v1541 = vrot.slane %v1539, 4
      %v1542 = vrot.slane %v1027, 5
      %v1543 = vsel %vm1501, %v1541, %v1542
      %v1544 = vrot.slane %v1028, 5
      %v1545 = vrot.slane %v1544, 4
      %v1546 = vrot.slane %v1029, 5
      %v1547 = vsel %vm1501, %v1545, %v1546
      %v1548 = vrot.slane %v1546, 4
      %v1549 = vrot.slane %v1030, 5
      %v1550 = vsel %vm1501, %v1548, %v1549
      %v1551 = vrot.slane %v1031, 5
      %v1552 = vrot.slane %v1551, 4
      %v1553 = vrot.slane %v1032, 5
      %v1554 = vsel %vm1501, %v1552, %v1553
      %v1555 = vrot.slane %v1553, 4
      %v1556 = vrot.slane %v1033, 5
      %v1557 = vsel %vm1501, %v1555, %v1556
      %v1558 = vrot.slane %v1034, 5
      %v1559 = vrot.slane %v1558, 4
      %v1560 = vrot.slane %v1035, 5
      %v1561 = vsel %vm1501, %v1559, %v1560
      %v1562 = vrot.slane %v1560, 4
      %v1563 = vrot.slane %v1036, 5
      %v1564 = vsel %vm1501, %v1562, %v1563
      %v1565 = vrot.slane %v1037, 5
      %v1566 = vrot.slane %v1565, 4
      %v1567 = vrot.slane %v1038, 5
      %v1568 = vsel %vm1501, %v1566, %v1567
      %v1569 = vrot.slane %v1567, 4
      %v1570 = vrot.slane %v1039, 5
      %v1571 = vsel %vm1501, %v1569, %v1570
      %v1572 = vrot.slane %v1040, 5
      %v1573 = vrot.slane %v1572, 4
      %v1574 = vrot.slane %v1041, 5
      %v1575 = vsel %vm1501, %v1573, %v1574
      %v1576 = vrot.slane %v1574, 4
      %v1577 = vrot.slane %v1042, 5
      %v1578 = vsel %vm1501, %v1576, %v1577
      %v1579 = vrot.slane %v1043, 5
      %v1580 = vrot.slane %v1579, 4
      %v1581 = vrot.slane %v1044, 5
      %v1582 = vsel %vm1501, %v1580, %v1581
      %v1583 = vrot.slane %v1581, 4
      %v1584 = vrot.slane %v1045, 5
      %v1585 = vsel %vm1501, %v1583, %v1584
      %v1586 = vrot.slane %v1046, 5
      %v1587 = vrot.slane %v1586, 4
      %v1588 = vrot.slane %v1047, 5
      %v1589 = vsel %vm1501, %v1587, %v1588
      %v1590 = vrot.slane %v1588, 4
      %v1591 = vrot.slane %v1048, 5
      %v1592 = vsel %vm1501, %v1590, %v1591
      %v1593 = vrot.slane %v1049, 5
      %v1594 = vrot.slane %v1593, 4
      %v1595 = vrot.slane %v1050, 5
      %v1596 = vsel %vm1501, %v1594, %v1595
      %v1597 = vrot.slane %v1595, 4
      %v1598 = vrot.slane %v1051, 5
      %v1599 = vsel %vm1501, %v1597, %v1598
      %v1600 = vrot.slane %v1052, 5
      %v1601 = vrot.slane %v1600, 4
      %v1602 = vrot.slane %v1053, 5
      %v1603 = vsel %vm1501, %v1601, %v1602
      %v1604 = vrot.slane %v1602, 4
      %v1605 = vrot.slane %v1054, 5
      %v1606 = vsel %vm1501, %v1604, %v1605
      %v1607 = vrot.slane %v1055, 5
      %v1608 = vrot.slane %v1607, 4
      %v1609 = vrot.slane %v1056, 5
      %v1610 = vsel %vm1501, %v1608, %v1609
      %v1611 = vrot.slane %v1609, 4
      %v1612 = vrot.slane %v1057, 5
      %v1613 = vsel %vm1501, %v1611, %v1612
      %v1615 = vshrl.u32 %v1058, 16
      %v1617 = vrot.slane %v1615, 4
      %v1618 = vshll.u32 %v1058, 16
      %v1620 = vrot.slane %v1618, 5
      %v1621 = vor.u32 %v1617, %v1620
      %v1622 = vrot.slane %v1621, 4
      %v1624 = vshll.u32 %v1059, 16
      %v1626 = vrot.slane %v1624, 5
      %v1627 = vsel %vm1066, %v1622, %v1626
      %v1628 = vshrl.u32 %v1059, 16
      %v1630 = vrot.slane %v1628, 4
      %v1631 = vor.u32 %v1630, %v1626
      %v1632 = vrot.slane %v1631, 4
      %v1634 = vshll.u32 %v1060, 16
      %v1636 = vrot.slane %v1634, 5
      %v1637 = vsel %vm1066, %v1632, %v1636
      %v1641 = vrot.slane %v1058, 5
      %v1642 = vrot.slane %v1641, 4
      %v1643 = vrot.slane %v1059, 5
      %v1644 = vsel %vm1501, %v1642, %v1643
      %v1645 = vrot.slane %v1643, 4
      %v1646 = vrot.slane %v1060, 5
      %v1647 = vsel %vm1501, %v1645, %v1646
      %v1649 = vshrl.u32 %v1061, 16
      %v1651 = vrot.slane %v1649, 4
      %v1652 = vshll.u32 %v1061, 16
      %v1654 = vrot.slane %v1652, 5
      %v1655 = vor.u32 %v1651, %v1654
      %v1656 = vrot.slane %v1655, 4
      %v1658 = vshll.u32 %v1062, 16
      %v1660 = vrot.slane %v1658, 5
      %v1661 = vsel %vm1066, %v1656, %v1660
      %v1662 = vshrl.u32 %v1062, 16
      %v1664 = vrot.slane %v1662, 4
      %v1665 = vor.u32 %v1664, %v1660
      %v1666 = vrot.slane %v1665, 4
      %v1668 = vshll.u32 %v1063, 16
      %v1670 = vrot.slane %v1668, 5
      %v1671 = vsel %vm1066, %v1666, %v1670
      %v1675 = vrot.slane %v1061, 5
      %v1676 = vrot.slane %v1675, 4
      %v1677 = vrot.slane %v1062, 5
      %v1678 = vsel %vm1501, %v1676, %v1677
      %v1679 = vrot.slane %v1677, 4
      %v1680 = vrot.slane %v1063, 5
      %v1681 = vsel %vm1501, %v1679, %v1680
      %v1682 = vunpack.c.l.b16 %v1010
      %v1683 = vunpack.c.l.b16 %v1011
      %v1684 = vunpack.c.l.b16 %v1013
      %v1685 = vunpack.c.l.b16 %v1014
      %v1686 = vunpack.c.l.b16 %v1016
      %v1687 = vunpack.c.l.b16 %v1017
      %v1688 = vunpack.c.l.b16 %v1019
      %v1689 = vunpack.c.l.b16 %v1020
      %v1690 = vunpack.c.l.b16 %v1022
      %v1691 = vunpack.c.l.b16 %v1023
      %v1692 = vunpack.c.l.b16 %v1025
      %v1693 = vunpack.c.l.b16 %v1026
      %v1694 = vunpack.c.l.b16 %v1028
      %v1695 = vunpack.c.l.b16 %v1029
      %v1696 = vunpack.c.l.b16 %v1031
      %v1697 = vunpack.c.l.b16 %v1032
      %v1698 = vunpack.c.l.b16 %v1034
      %v1699 = vunpack.c.l.b16 %v1035
      %v1700 = vunpack.c.l.b16 %v1037
      %v1701 = vunpack.c.l.b16 %v1038
      %v1702 = vunpack.c.l.b16 %v1040
      %v1703 = vunpack.c.l.b16 %v1041
      %v1704 = vunpack.c.l.b16 %v1043
      %v1705 = vunpack.c.l.b16 %v1044
      %v1706 = vunpack.c.l.b16 %v1046
      %v1707 = vunpack.c.l.b16 %v1047
      %v1708 = vunpack.c.l.b16 %v1049
      %v1709 = vunpack.c.l.b16 %v1050
      %v1710 = vunpack.c.l.b16 %v1052
      %v1711 = vunpack.c.l.b16 %v1053
      %v1712 = vunpack.c.l.b16 %v1055
      %v1713 = vunpack.c.l.b16 %v1056
      %v1714 = vpack.c.b16 %v1683, %v1682
      %v1715 = vpack.c.b16 %v1685, %v1684
      %v1716 = vpack.c.b16 %v1687, %v1686
      %v1717 = vpack.c.b16 %v1689, %v1688
      %v1718 = vpack.c.b16 %v1691, %v1690
      %v1719 = vpack.c.b16 %v1693, %v1692
      %v1720 = vpack.c.b16 %v1695, %v1694
      %v1721 = vpack.c.b16 %v1697, %v1696
      %v1722 = vpack.c.b16 %v1699, %v1698
      %v1723 = vpack.c.b16 %v1701, %v1700
      %v1724 = vpack.c.b16 %v1703, %v1702
      %v1725 = vpack.c.b16 %v1705, %v1704
      %v1726 = vpack.c.b16 %v1707, %v1706
      %v1727 = vpack.c.b16 %v1709, %v1708
      %v1728 = vpack.c.b16 %v1711, %v1710
      %v1729 = vpack.c.b16 %v1713, %v1712
      %v1746 = vunpack.c.l.b16 %v1080
      %v1747 = vunpack.c.l.b16 %v1090
      %v1748 = vunpack.c.l.b16 %v1104
      %v1749 = vunpack.c.l.b16 %v1114
      %v1750 = vunpack.c.l.b16 %v1128
      %v1751 = vunpack.c.l.b16 %v1138
      %v1752 = vunpack.c.l.b16 %v1152
      %v1753 = vunpack.c.l.b16 %v1162
      %v1754 = vunpack.c.l.b16 %v1176
      %v1755 = vunpack.c.l.b16 %v1186
      %v1756 = vunpack.c.l.b16 %v1200
      %v1757 = vunpack.c.l.b16 %v1210
      %v1758 = vunpack.c.l.b16 %v1224
      %v1759 = vunpack.c.l.b16 %v1234
      %v1760 = vunpack.c.l.b16 %v1248
      %v1761 = vunpack.c.l.b16 %v1258
      %v1762 = vunpack.c.l.b16 %v1272
      %v1763 = vunpack.c.l.b16 %v1282
      %v1764 = vunpack.c.l.b16 %v1296
      %v1765 = vunpack.c.l.b16 %v1306
      %v1766 = vunpack.c.l.b16 %v1320
      %v1767 = vunpack.c.l.b16 %v1330
      %v1768 = vunpack.c.l.b16 %v1344
      %v1769 = vunpack.c.l.b16 %v1354
      %v1770 = vunpack.c.l.b16 %v1368
      %v1771 = vunpack.c.l.b16 %v1378
      %v1772 = vunpack.c.l.b16 %v1392
      %v1773 = vunpack.c.l.b16 %v1402
      %v1774 = vunpack.c.l.b16 %v1416
      %v1775 = vunpack.c.l.b16 %v1426
      %v1776 = vunpack.c.l.b16 %v1440
      %v1777 = vunpack.c.l.b16 %v1450
      %v1778 = vpack.c.b16 %v1747, %v1746
      %v1779 = vpack.c.b16 %v1749, %v1748
      %v1780 = vpack.c.b16 %v1751, %v1750
      %v1781 = vpack.c.b16 %v1753, %v1752
      %v1782 = vpack.c.b16 %v1755, %v1754
      %v1783 = vpack.c.b16 %v1757, %v1756
      %v1784 = vpack.c.b16 %v1759, %v1758
      %v1785 = vpack.c.b16 %v1761, %v1760
      %v1786 = vpack.c.b16 %v1763, %v1762
      %v1787 = vpack.c.b16 %v1765, %v1764
      %v1788 = vpack.c.b16 %v1767, %v1766
      %v1789 = vpack.c.b16 %v1769, %v1768
      %v1790 = vpack.c.b16 %v1771, %v1770
      %v1791 = vpack.c.b16 %v1773, %v1772
      %v1792 = vpack.c.b16 %v1775, %v1774
      %v1793 = vpack.c.b16 %v1777, %v1776
      %v1810 = vunpack.c.l.b16 %v1505
      %v1811 = vunpack.c.l.b16 %v1508
      %v1812 = vunpack.c.l.b16 %v1512
      %v1813 = vunpack.c.l.b16 %v1515
      %v1814 = vunpack.c.l.b16 %v1519
      %v1815 = vunpack.c.l.b16 %v1522
      %v1816 = vunpack.c.l.b16 %v1526
      %v1817 = vunpack.c.l.b16 %v1529
      %v1818 = vunpack.c.l.b16 %v1533
      %v1819 = vunpack.c.l.b16 %v1536
      %v1820 = vunpack.c.l.b16 %v1540
      %v1821 = vunpack.c.l.b16 %v1543
      %v1822 = vunpack.c.l.b16 %v1547
      %v1823 = vunpack.c.l.b16 %v1550
      %v1824 = vunpack.c.l.b16 %v1554
      %v1825 = vunpack.c.l.b16 %v1557
      %v1826 = vunpack.c.l.b16 %v1561
      %v1827 = vunpack.c.l.b16 %v1564
      %v1828 = vunpack.c.l.b16 %v1568
      %v1829 = vunpack.c.l.b16 %v1571
      %v1830 = vunpack.c.l.b16 %v1575
      %v1831 = vunpack.c.l.b16 %v1578
      %v1832 = vunpack.c.l.b16 %v1582
      %v1833 = vunpack.c.l.b16 %v1585
      %v1834 = vunpack.c.l.b16 %v1589
      %v1835 = vunpack.c.l.b16 %v1592
      %v1836 = vunpack.c.l.b16 %v1596
      %v1837 = vunpack.c.l.b16 %v1599
      %v1838 = vunpack.c.l.b16 %v1603
      %v1839 = vunpack.c.l.b16 %v1606
      %v1840 = vunpack.c.l.b16 %v1610
      %v1841 = vunpack.c.l.b16 %v1613
      %v1842 = vpack.c.b16 %v1811, %v1810
      %v1843 = vpack.c.b16 %v1813, %v1812
      %v1844 = vpack.c.b16 %v1815, %v1814
      %v1845 = vpack.c.b16 %v1817, %v1816
      %v1846 = vpack.c.b16 %v1819, %v1818
      %v1847 = vpack.c.b16 %v1821, %v1820
      %v1848 = vpack.c.b16 %v1823, %v1822
      %v1849 = vpack.c.b16 %v1825, %v1824
      %v1850 = vpack.c.b16 %v1827, %v1826
      %v1851 = vpack.c.b16 %v1829, %v1828
      %v1852 = vpack.c.b16 %v1831, %v1830
      %v1853 = vpack.c.b16 %v1833, %v1832
      %v1854 = vpack.c.b16 %v1835, %v1834
      %v1855 = vpack.c.b16 %v1837, %v1836
      %v1856 = vpack.c.b16 %v1839, %v1838
      %v1857 = vpack.c.b16 %v1841, %v1840
      %v1874 = vunpack.c.l.b16 %v1058
      %v1875 = vunpack.c.l.b16 %v1059
      %v1876 = vpack.c.b16 %v1875, %v1874
      %v1878 = vunpack.c.l.b16 %v1627
      %v1879 = vunpack.c.l.b16 %v1637
      %v1880 = vpack.c.b16 %v1879, %v1878
      %v1882 = vunpack.c.l.b16 %v1644
      %v1883 = vunpack.c.l.b16 %v1647
      %v1884 = vpack.c.b16 %v1883, %v1882
      %v1886 = vunpack.c.l.b16 %v1061
      %v1887 = vunpack.c.l.b16 %v1062
      %v1888 = vpack.c.b16 %v1887, %v1886
      %v1890 = vunpack.c.l.b16 %v1661
      %v1891 = vunpack.c.l.b16 %v1671
      %v1892 = vpack.c.b16 %v1891, %v1890
      %v1894 = vunpack.c.l.b16 %v1678
      %v1895 = vunpack.c.l.b16 %v1681
      %v1896 = vpack.c.b16 %v1895, %v1894
      %v1898 = vld [vmem:[%s3] sm:$0xf]
      %v1899 = vld [vmem:[%s3 + $0x4] sm:$0xf]
      %v1900 = vld [vmem:[%s3 + $0x8] sm:$0xf]
      %v1901 = vld [vmem:[%s3 + $0xc] sm:$0xf]
      %v1902 = vld [vmem:[%s3 + $0x10] sm:$0xf]
      %v1903 = vld [vmem:[%s3 + $0x14] sm:$0xf]
      %v1904 = vld [vmem:[%s3 + $0x18] sm:$0xf]
      %v1905 = vld [vmem:[%s3 + $0x1c] sm:$0xf]
      %v1906 = vld [vmem:[%s3 + $0x20] sm:$0xf]
      %v1907 = vld [vmem:[%s3 + $0x24] sm:$0xf]
      %v1908 = vld [vmem:[%s3 + $0x28] sm:$0xf]
      %v1909 = vld [vmem:[%s3 + $0x2c] sm:$0xf]
      %v1910 = vld [vmem:[%s3 + $0x30] sm:$0xf]
      %v1911 = vld [vmem:[%s3 + $0x34] sm:$0xf]
      %v1912 = vld [vmem:[%s3 + $0x38] sm:$0xf]
      %v1913 = vld [vmem:[%s3 + $0x3c] sm:$0xf]
      %v1914 = vld [vmem:[%s3 + $0x40] sm:$0xf]
      %v1915 = vld [vmem:[%s3 + $0x44] sm:$0xf]
      %v1916 = vld [vmem:[%s3 + $0x48] sm:$0xf]
      %v1917 = vld [vmem:[%s3 + $0x4c] sm:$0xf]
      %v1918 = vld [vmem:[%s3 + $0x50] sm:$0xf]
      %v1919 = vld [vmem:[%s3 + $0x54] sm:$0xf]
      %v1920 = vld [vmem:[%s3 + $0x58] sm:$0xf]
      %v1921 = vld [vmem:[%s3 + $0x5c] sm:$0xf]
      %v1922 = vld [vmem:[%s3 + $0x60] sm:$0xf]
      %v1923 = vld [vmem:[%s3 + $0x64] sm:$0xf]
      %v1924 = vld [vmem:[%s3 + $0x68] sm:$0xf]
      %v1925 = vld [vmem:[%s3 + $0x6c] sm:$0xf]
      %v1926 = vld [vmem:[%s3 + $0x70] sm:$0xf]
      %v1927 = vld [vmem:[%s3 + $0x74] sm:$0xf]
      %v1928 = vld [vmem:[%s3 + $0x78] sm:$0xf]
      %v1929 = vld [vmem:[%s3 + $0x7c] sm:$0xf]
      %v1930 = vld [vmem:[%s3 + $0x80] sm:$0xf]
      %v1931 = vld [vmem:[%s3 + $0x84] sm:$0xf]
      %v1932 = vld [vmem:[%s3 + $0x88] sm:$0xf]
      %v1933 = vld [vmem:[%s3 + $0x8c] sm:$0xf]
      %v1934 = vld [vmem:[%s3 + $0x90] sm:$0xf]
      %v1935 = vld [vmem:[%s3 + $0x94] sm:$0xf]
      %v1936 = vld [vmem:[%s3 + $0x98] sm:$0xf]
      %v1937 = vld [vmem:[%s3 + $0x9c] sm:$0xf]
      %v1938 = vld [vmem:[%s3 + $0xa0] sm:$0xf]
      %v1939 = vld [vmem:[%s3 + $0xa4] sm:$0xf]
      %v1940 = vld [vmem:[%s3 + $0xa8] sm:$0xf]
      %v1941 = vld [vmem:[%s3 + $0xac] sm:$0xf]
      %v1942 = vld [vmem:[%s3 + $0xb0] sm:$0xf]
      %v1943 = vld [vmem:[%s3 + $0xb4] sm:$0xf]
      %v1944 = vld [vmem:[%s3 + $0xb8] sm:$0xf]
      %v1945 = vld [vmem:[%s3 + $0xbc] sm:$0xf]
      %v1946 = vld [vmem:[%s3 + $0xc0] sm:$0xf]
      %v1947 = vld [vmem:[%s3 + $0xc4] sm:$0xf]
      %v1948 = vld [vmem:[%s3 + $0xc8] sm:$0xf]
      %v1949 = vld [vmem:[%s3 + $0xcc] sm:$0xf]
      %v1950 = vld [vmem:[%s3 + $0xd0] sm:$0xf]
      %v1951 = vld [vmem:[%s3 + $0xd4] sm:$0xf]
      %v1952 = vld [vmem:[%s3 + $0xd8] sm:$0xf]
      %v1953 = vld [vmem:[%s3 + $0xdc] sm:$0xf]
      %v1954 = vld [vmem:[%s3 + $0xe0] sm:$0xf]
      %v1955 = vld [vmem:[%s3 + $0xe4] sm:$0xf]
      %v1956 = vld [vmem:[%s3 + $0xe8] sm:$0xf]
      %v1957 = vld [vmem:[%s3 + $0xec] sm:$0xf]
      %v1958 = vld [vmem:[%s3 + $0xf0] sm:$0xf]
      %v1959 = vld [vmem:[%s3 + $0xf4] sm:$0xf]
      %v1960 = vld [vmem:[%s3 + $0xf8] sm:$0xf]
      %v1961 = vld [vmem:[%s3 + $0xfc] sm:$0xf]
      %v1962 = vld [vmem:[%s3 + $0x100] sm:$0xf]
      %v1963 = vld [vmem:[%s3 + $0x104] sm:$0xf]
      %v1964 = vld [vmem:[%s3 + $0x108] sm:$0xf]
      %v1965 = vld [vmem:[%s3 + $0x10c] sm:$0xf]
      %v1966 = vld [vmem:[%s3 + $0x110] sm:$0xf]
      %v1967 = vld [vmem:[%s3 + $0x114] sm:$0xf]
      %v1968 = vld [vmem:[%s3 + $0x118] sm:$0xf]
      %v1969 = vld [vmem:[%s3 + $0x11c] sm:$0xf]
      %v1970 = vld [vmem:[%s3 + $0x120] sm:$0xf]
      %v1971 = vld [vmem:[%s3 + $0x124] sm:$0xf]
      %v1972 = vld [vmem:[%s3 + $0x128] sm:$0xf]
      %v1973 = vld [vmem:[%s3 + $0x12c] sm:$0xf]
      %v1974 = vld [vmem:[%s3 + $0x130] sm:$0xf]
      %v1975 = vld [vmem:[%s3 + $0x134] sm:$0xf]
      %v1976 = vld [vmem:[%s3 + $0x138] sm:$0xf]
      %v1977 = vld [vmem:[%s3 + $0x13c] sm:$0xf]
      %v1978 = vld [vmem:[%s3 + $0x140] sm:$0xf]
      %v1979 = vld [vmem:[%s3 + $0x144] sm:$0xf]
      %v1980 = vld [vmem:[%s3 + $0x148] sm:$0xf]
      %v1981 = vld [vmem:[%s3 + $0x14c] sm:$0xf]
      %v1982 = vld [vmem:[%s3 + $0x150] sm:$0xf]
      %v1983 = vld [vmem:[%s3 + $0x154] sm:$0xf]
      %v1984 = vld [vmem:[%s3 + $0x158] sm:$0xf]
      %v1985 = vld [vmem:[%s3 + $0x15c] sm:$0xf]
      %v1986 = vld [vmem:[%s3 + $0x160] sm:$0xf]
      %v1987 = vld [vmem:[%s3 + $0x164] sm:$0xf]
      %v1988 = vld [vmem:[%s3 + $0x168] sm:$0xf]
      %v1989 = vld [vmem:[%s3 + $0x16c] sm:$0xf]
      %v1990 = vld [vmem:[%s3 + $0x170] sm:$0xf]
      %v1991 = vld [vmem:[%s3 + $0x174] sm:$0xf]
      %v1992 = vld [vmem:[%s3 + $0x178] sm:$0xf]
      %v1993 = vld [vmem:[%s3 + $0x17c] sm:$0xf]
      %v1994 = vld [vmem:[%s3 + $0x180] sm:$0xf]
      %v1995 = vld [vmem:[%s3 + $0x184] sm:$0xf]
      %v1996 = vld [vmem:[%s3 + $0x188] sm:$0xf]
      %v1997 = vld [vmem:[%s3 + $0x18c] sm:$0xf]
      %v1998 = vld [vmem:[%s3 + $0x190] sm:$0xf]
      %v1999 = vld [vmem:[%s3 + $0x194] sm:$0xf]
      %v2000 = vld [vmem:[%s3 + $0x198] sm:$0xf]
      %v2001 = vld [vmem:[%s3 + $0x19c] sm:$0xf]
      %v2002 = vld [vmem:[%s3 + $0x1a0] sm:$0xf]
      %v2003 = vld [vmem:[%s3 + $0x1a4] sm:$0xf]
      %v2004 = vld [vmem:[%s3 + $0x1a8] sm:$0xf]
      %v2005 = vld [vmem:[%s3 + $0x1ac] sm:$0xf]
      %v2006 = vld [vmem:[%s3 + $0x1b0] sm:$0xf]
      %v2007 = vld [vmem:[%s3 + $0x1b4] sm:$0xf]
      %v2008 = vld [vmem:[%s3 + $0x1b8] sm:$0xf]
      %v2009 = vld [vmem:[%s3 + $0x1bc] sm:$0xf]
      %v2010 = vld [vmem:[%s3 + $0x1c0] sm:$0xf]
      %v2011 = vld [vmem:[%s3 + $0x1c4] sm:$0xf]
      %v2012 = vld [vmem:[%s3 + $0x1c8] sm:$0xf]
      %v2013 = vld [vmem:[%s3 + $0x1cc] sm:$0xf]
      %v2014 = vld [vmem:[%s3 + $0x1d0] sm:$0xf]
      %v2015 = vld [vmem:[%s3 + $0x1d4] sm:$0xf]
      %v2016 = vld [vmem:[%s3 + $0x1d8] sm:$0xf]
      %v2017 = vld [vmem:[%s3 + $0x1dc] sm:$0xf]
      %v2018 = vld [vmem:[%s3 + $0x1e0] sm:$0xf]
      %v2019 = vld [vmem:[%s3 + $0x1e4] sm:$0xf]
      %v2020 = vld [vmem:[%s3 + $0x1e8] sm:$0xf]
      %v2021 = vld [vmem:[%s3 + $0x1ec] sm:$0xf]
      %v2022 = vld [vmem:[%s3 + $0x1f0] sm:$0xf]
      %v2023 = vld [vmem:[%s3 + $0x1f4] sm:$0xf]
      %v2024 = vld [vmem:[%s3 + $0x1f8] sm:$0xf]
      %v2025 = vld [vmem:[%s3 + $0x1fc] sm:$0xf]
      %v2026 = vld [vmem:[%s3 + $0x200] sm:$0xf]
      %v2027 = vld [vmem:[%s3 + $0x204] sm:$0xf]
      %v2028 = vld [vmem:[%s3 + $0x208] sm:$0xf]
      %v2029 = vld [vmem:[%s3 + $0x20c] sm:$0xf]
      %v2030 = vld [vmem:[%s3 + $0x210] sm:$0xf]
      %v2031 = vld [vmem:[%s3 + $0x214] sm:$0xf]
      %v2032 = vld [vmem:[%s3 + $0x218] sm:$0xf]
      %v2033 = vld [vmem:[%s3 + $0x21c] sm:$0xf]
      %v2034 = vld [vmem:[%s3 + $0x220] sm:$0xf]
      %v2035 = vld [vmem:[%s3 + $0x224] sm:$0xf]
      %v2036 = vld [vmem:[%s3 + $0x228] sm:$0xf]
      %v2037 = vld [vmem:[%s3 + $0x22c] sm:$0xf]
      %v2038 = vld [vmem:[%s3 + $0x230] sm:$0xf]
      %v2039 = vld [vmem:[%s3 + $0x234] sm:$0xf]
      %v2040 = vld [vmem:[%s3 + $0x238] sm:$0xf]
      %v2041 = vld [vmem:[%s3 + $0x23c] sm:$0xf]
      %v2186 = vunpack.c.l.b16 %v1898
      %v2187 = vunpack.c.l.b16 %v1899
      %v2188 = vunpack.c.l.b16 %v1900
      %v2189 = vunpack.c.l.b16 %v1901
      %v2190 = vunpack.c.l.b16 %v1902
      %v2191 = vunpack.c.l.b16 %v1903
      %v2192 = vunpack.c.l.b16 %v1904
      %v2193 = vunpack.c.l.b16 %v1905
      %v2194 = vunpack.c.l.b16 %v1906
      %v2195 = vunpack.c.l.b16 %v1907
      %v2196 = vunpack.c.l.b16 %v1908
      %v2197 = vunpack.c.l.b16 %v1909
      %v2198 = vunpack.c.l.b16 %v1910
      %v2199 = vunpack.c.l.b16 %v1911
      %v2200 = vunpack.c.l.b16 %v1912
      %v2201 = vunpack.c.l.b16 %v1913
      %v2202 = vunpack.c.l.b16 %v1914
      %v2203 = vunpack.c.l.b16 %v1915
      %v2204 = vunpack.c.l.b16 %v1916
      %v2205 = vunpack.c.l.b16 %v1917
      %v2206 = vunpack.c.l.b16 %v1918
      %v2207 = vunpack.c.l.b16 %v1919
      %v2208 = vunpack.c.l.b16 %v1920
      %v2209 = vunpack.c.l.b16 %v1921
      %v2210 = vunpack.c.l.b16 %v1922
      %v2211 = vunpack.c.l.b16 %v1923
      %v2212 = vunpack.c.l.b16 %v1924
      %v2213 = vunpack.c.l.b16 %v1925
      %v2214 = vunpack.c.l.b16 %v1926
      %v2215 = vunpack.c.l.b16 %v1927
      %v2216 = vunpack.c.l.b16 %v1928
      %v2217 = vunpack.c.l.b16 %v1929
      %v2218 = vunpack.c.l.b16 %v1930
      %v2219 = vunpack.c.l.b16 %v1931
      %v2220 = vunpack.c.l.b16 %v1932
      %v2221 = vunpack.c.l.b16 %v1933
      %v2222 = vunpack.c.l.b16 %v1934
      %v2223 = vunpack.c.l.b16 %v1935
      %v2224 = vunpack.c.l.b16 %v1936
      %v2225 = vunpack.c.l.b16 %v1937
      %v2226 = vunpack.c.l.b16 %v1938
      %v2227 = vunpack.c.l.b16 %v1939
      %v2228 = vunpack.c.l.b16 %v1940
      %v2229 = vunpack.c.l.b16 %v1941
      %v2230 = vunpack.c.l.b16 %v1942
      %v2231 = vunpack.c.l.b16 %v1943
      %v2232 = vunpack.c.l.b16 %v1944
      %v2233 = vunpack.c.l.b16 %v1945
      %v2234 = vunpack.c.l.b16 %v1946
      %v2235 = vunpack.c.l.b16 %v1947
      %v2236 = vunpack.c.l.b16 %v1948
      %v2237 = vunpack.c.l.b16 %v1949
      %v2238 = vunpack.c.l.b16 %v1950
      %v2239 = vunpack.c.l.b16 %v1951
      %v2240 = vunpack.c.l.b16 %v1952
      %v2241 = vunpack.c.l.b16 %v1953
      %v2242 = vunpack.c.l.b16 %v1954
      %v2243 = vunpack.c.l.b16 %v1955
      %v2244 = vunpack.c.l.b16 %v1956
      %v2245 = vunpack.c.l.b16 %v1957
      %v2246 = vunpack.c.l.b16 %v1958
      %v2247 = vunpack.c.l.b16 %v1959
      %v2248 = vunpack.c.l.b16 %v1960
      %v2249 = vunpack.c.l.b16 %v1961
      %v2250 = vunpack.c.l.b16 %v1962
      %v2251 = vunpack.c.l.b16 %v1963
      %v2252 = vunpack.c.l.b16 %v1964
      %v2253 = vunpack.c.l.b16 %v1965
      %v2254 = vunpack.c.l.b16 %v1966
      %v2255 = vunpack.c.l.b16 %v1967
      %v2256 = vunpack.c.l.b16 %v1968
      %v2257 = vunpack.c.l.b16 %v1969
      %v2258 = vunpack.c.l.b16 %v1970
      %v2259 = vunpack.c.l.b16 %v1971
      %v2260 = vunpack.c.l.b16 %v1972
      %v2261 = vunpack.c.l.b16 %v1973
      %v2262 = vunpack.c.l.b16 %v1974
      %v2263 = vunpack.c.l.b16 %v1975
      %v2264 = vunpack.c.l.b16 %v1976
      %v2265 = vunpack.c.l.b16 %v1977
      %v2266 = vunpack.c.l.b16 %v1978
      %v2267 = vunpack.c.l.b16 %v1979
      %v2268 = vunpack.c.l.b16 %v1980
      %v2269 = vunpack.c.l.b16 %v1981
      %v2270 = vunpack.c.l.b16 %v1982
      %v2271 = vunpack.c.l.b16 %v1983
      %v2272 = vunpack.c.l.b16 %v1984
      %v2273 = vunpack.c.l.b16 %v1985
      %v2274 = vunpack.c.l.b16 %v1986
      %v2275 = vunpack.c.l.b16 %v1987
      %v2276 = vunpack.c.l.b16 %v1988
      %v2277 = vunpack.c.l.b16 %v1989
      %v2278 = vunpack.c.l.b16 %v1990
      %v2279 = vunpack.c.l.b16 %v1991
      %v2280 = vunpack.c.l.b16 %v1992
      %v2281 = vunpack.c.l.b16 %v1993
      %v2282 = vunpack.c.l.b16 %v1994
      %v2283 = vunpack.c.l.b16 %v1995
      %v2284 = vunpack.c.l.b16 %v1996
      %v2285 = vunpack.c.l.b16 %v1997
      %v2286 = vunpack.c.l.b16 %v1998
      %v2287 = vunpack.c.l.b16 %v1999
      %v2288 = vunpack.c.l.b16 %v2000
      %v2289 = vunpack.c.l.b16 %v2001
      %v2290 = vunpack.c.l.b16 %v2002
      %v2291 = vunpack.c.l.b16 %v2003
      %v2292 = vunpack.c.l.b16 %v2004
      %v2293 = vunpack.c.l.b16 %v2005
      %v2294 = vunpack.c.l.b16 %v2006
      %v2295 = vunpack.c.l.b16 %v2007
      %v2296 = vunpack.c.l.b16 %v2008
      %v2297 = vunpack.c.l.b16 %v2009
      %v2298 = vunpack.c.l.b16 %v2010
      %v2299 = vunpack.c.l.b16 %v2011
      %v2300 = vunpack.c.l.b16 %v2012
      %v2301 = vunpack.c.l.b16 %v2013
      %v2302 = vunpack.c.l.b16 %v2014
      %v2303 = vunpack.c.l.b16 %v2015
      %v2304 = vunpack.c.l.b16 %v2016
      %v2305 = vunpack.c.l.b16 %v2017
      %v2306 = vunpack.c.l.b16 %v2018
      %v2307 = vunpack.c.l.b16 %v2019
      %v2308 = vunpack.c.l.b16 %v2020
      %v2309 = vunpack.c.l.b16 %v2021
      %v2310 = vunpack.c.l.b16 %v2022
      %v2311 = vunpack.c.l.b16 %v2023
      %v2312 = vunpack.c.l.b16 %v2024
      %v2313 = vunpack.c.l.b16 %v2025
      %v2314 = vunpack.c.l.b16 %v2026
      %v2315 = vunpack.c.l.b16 %v2027
      %v2316 = vunpack.c.l.b16 %v2028
      %v2317 = vunpack.c.l.b16 %v2029
      %v2318 = vunpack.c.l.b16 %v2030
      %v2319 = vunpack.c.l.b16 %v2031
      %v2320 = vunpack.c.l.b16 %v2032
      %v2321 = vunpack.c.l.b16 %v2033
      %v2322 = vunpack.c.l.b16 %v2034
      %v2323 = vunpack.c.l.b16 %v2035
      %v2324 = vunpack.c.l.b16 %v2036
      %v2325 = vunpack.c.l.b16 %v2037
      %v2326 = vunpack.c.l.b16 %v2038
      %v2327 = vunpack.c.l.b16 %v2039
      %v2328 = vunpack.c.l.b16 %v2040
      %v2329 = vunpack.c.l.b16 %v2041
      %v2330 = vpack.c.b16 %v2187, %v2186
      %v2331 = vpack.c.b16 %v2189, %v2188
      %v2332 = vpack.c.b16 %v2191, %v2190
      %v2333 = vpack.c.b16 %v2193, %v2192
      %v2334 = vpack.c.b16 %v2195, %v2194
      %v2335 = vpack.c.b16 %v2197, %v2196
      %v2336 = vpack.c.b16 %v2199, %v2198
      %v2337 = vpack.c.b16 %v2201, %v2200
      %v2338 = vpack.c.b16 %v2203, %v2202
      %v2339 = vpack.c.b16 %v2205, %v2204
      %v2340 = vpack.c.b16 %v2207, %v2206
      %v2341 = vpack.c.b16 %v2209, %v2208
      %v2342 = vpack.c.b16 %v2211, %v2210
      %v2343 = vpack.c.b16 %v2213, %v2212
      %v2344 = vpack.c.b16 %v2215, %v2214
      %v2345 = vpack.c.b16 %v2217, %v2216
      %v2346 = vpack.c.b16 %v2219, %v2218
      %v2347 = vpack.c.b16 %v2221, %v2220
      %v2348 = vpack.c.b16 %v2223, %v2222
      %v2349 = vpack.c.b16 %v2225, %v2224
      %v2350 = vpack.c.b16 %v2227, %v2226
      %v2351 = vpack.c.b16 %v2229, %v2228
      %v2352 = vpack.c.b16 %v2231, %v2230
      %v2353 = vpack.c.b16 %v2233, %v2232
      %v2354 = vpack.c.b16 %v2235, %v2234
      %v2355 = vpack.c.b16 %v2237, %v2236
      %v2356 = vpack.c.b16 %v2239, %v2238
      %v2357 = vpack.c.b16 %v2241, %v2240
      %v2358 = vpack.c.b16 %v2243, %v2242
      %v2359 = vpack.c.b16 %v2245, %v2244
      %v2360 = vpack.c.b16 %v2247, %v2246
      %v2361 = vpack.c.b16 %v2249, %v2248
      %v2362 = vpack.c.b16 %v2251, %v2250
      %v2363 = vpack.c.b16 %v2253, %v2252
      %v2364 = vpack.c.b16 %v2255, %v2254
      %v2365 = vpack.c.b16 %v2257, %v2256
      %v2366 = vpack.c.b16 %v2259, %v2258
      %v2367 = vpack.c.b16 %v2261, %v2260
      %v2368 = vpack.c.b16 %v2263, %v2262
      %v2369 = vpack.c.b16 %v2265, %v2264
      %v2370 = vpack.c.b16 %v2267, %v2266
      %v2371 = vpack.c.b16 %v2269, %v2268
      %v2372 = vpack.c.b16 %v2271, %v2270
      %v2373 = vpack.c.b16 %v2273, %v2272
      %v2374 = vpack.c.b16 %v2275, %v2274
      %v2375 = vpack.c.b16 %v2277, %v2276
      %v2376 = vpack.c.b16 %v2279, %v2278
      %v2377 = vpack.c.b16 %v2281, %v2280
      %v2378 = vpack.c.b16 %v2283, %v2282
      %v2379 = vpack.c.b16 %v2285, %v2284
      %v2380 = vpack.c.b16 %v2287, %v2286
      %v2381 = vpack.c.b16 %v2289, %v2288
      %v2382 = vpack.c.b16 %v2291, %v2290
      %v2383 = vpack.c.b16 %v2293, %v2292
      %v2384 = vpack.c.b16 %v2295, %v2294
      %v2385 = vpack.c.b16 %v2297, %v2296
      %v2386 = vpack.c.b16 %v2299, %v2298
      %v2387 = vpack.c.b16 %v2301, %v2300
      %v2388 = vpack.c.b16 %v2303, %v2302
      %v2389 = vpack.c.b16 %v2305, %v2304
      %v2390 = vpack.c.b16 %v2307, %v2306
      %v2391 = vpack.c.b16 %v2309, %v2308
      %v2392 = vpack.c.b16 %v2311, %v2310
      %v2393 = vpack.c.b16 %v2313, %v2312
      %v2394 = vpack.c.b16 %v2315, %v2314
      %v2395 = vpack.c.b16 %v2317, %v2316
      %v2396 = vpack.c.b16 %v2319, %v2318
      %v2397 = vpack.c.b16 %v2321, %v2320
      %v2398 = vpack.c.b16 %v2323, %v2322
      %v2399 = vpack.c.b16 %v2325, %v2324
      %v2400 = vpack.c.b16 %v2327, %v2326
      %v2401 = vpack.c.b16 %v2329, %v2328
      %2474 = vmatpush.bf16.msra.mxu0 %v2337
      %2475 = vmatpush.bf16.msra.mxu0 %v2336
      %2476 = vmatpush.bf16.msra.mxu0 %v2335
      %2477 = vmatpush.bf16.msra.mxu0 %v2334
      %2478 = vmatpush.bf16.msra.mxu0 %v2333
      %2479 = vmatpush.bf16.msra.mxu0 %v2332
      %2480 = vmatpush.bf16.msra.mxu0 %v2331
      %2481 = vmatpush.bf16.msra.mxu0 %v2330
      %2482 = vmatmul.bf16.gmra.mxu0 %v1714
      %v2483 = vpop.f32.mrf.mxu0
      %v2484 = vadd.f32 0.0, %v2483
      %v2485 = vpop.f32.mrf.mxu0
      %v2486 = vadd.f32 0.0, %v2485
      %2487 = vmatmul.bf16.gmra.mxu0 %v1715
      %v2488 = vpop.f32.mrf.mxu0
      %v2489 = vadd.f32 0.0, %v2488
      %v2490 = vpop.f32.mrf.mxu0
      %v2491 = vadd.f32 0.0, %v2490
      %2492 = vmatmul.bf16.gmra.mxu0 %v1716
      %v2493 = vpop.f32.mrf.mxu0
      %v2494 = vadd.f32 0.0, %v2493
      %v2495 = vpop.f32.mrf.mxu0
      %v2496 = vadd.f32 0.0, %v2495
      %2497 = vmatmul.bf16.gmra.mxu0 %v1717
      %v2498 = vpop.f32.mrf.mxu0
      %v2499 = vadd.f32 0.0, %v2498
      %v2500 = vpop.f32.mrf.mxu0
      %v2501 = vadd.f32 0.0, %v2500
      %2502 = vmatmul.bf16.gmra.mxu0 %v1718
      %v2503 = vpop.f32.mrf.mxu0
      %v2504 = vadd.f32 0.0, %v2503
      %v2505 = vpop.f32.mrf.mxu0
      %v2506 = vadd.f32 0.0, %v2505
      %2507 = vmatmul.bf16.gmra.mxu0 %v1719
      %v2508 = vpop.f32.mrf.mxu0
      %v2509 = vadd.f32 0.0, %v2508
      %v2510 = vpop.f32.mrf.mxu0
      %v2511 = vadd.f32 0.0, %v2510
      %2512 = vmatmul.bf16.gmra.mxu0 %v1720
      %v2513 = vpop.f32.mrf.mxu0
      %v2514 = vadd.f32 0.0, %v2513
      %v2515 = vpop.f32.mrf.mxu0
      %v2516 = vadd.f32 0.0, %v2515
      %2517 = vmatmul.bf16.gmra.mxu0 %v1721
      %v2518 = vpop.f32.mrf.mxu0
      %v2519 = vadd.f32 0.0, %v2518
      %v2520 = vpop.f32.mrf.mxu0
      %v2521 = vadd.f32 0.0, %v2520
      %2522 = vmatmul.bf16.gmra.mxu0 %v1722
      %v2523 = vpop.f32.mrf.mxu0
      %v2524 = vadd.f32 0.0, %v2523
      %v2525 = vpop.f32.mrf.mxu0
      %v2526 = vadd.f32 0.0, %v2525
      %2527 = vmatmul.bf16.gmra.mxu0 %v1723
      %v2528 = vpop.f32.mrf.mxu0
      %v2529 = vadd.f32 0.0, %v2528
      %v2530 = vpop.f32.mrf.mxu0
      %v2531 = vadd.f32 0.0, %v2530
      %2532 = vmatmul.bf16.gmra.mxu0 %v1724
      %v2533 = vpop.f32.mrf.mxu0
      %v2534 = vadd.f32 0.0, %v2533
      %v2535 = vpop.f32.mrf.mxu0
      %v2536 = vadd.f32 0.0, %v2535
      %2537 = vmatmul.bf16.gmra.mxu0 %v1725
      %v2538 = vpop.f32.mrf.mxu0
      %v2539 = vadd.f32 0.0, %v2538
      %v2540 = vpop.f32.mrf.mxu0
      %v2541 = vadd.f32 0.0, %v2540
      %2542 = vmatmul.bf16.gmra.mxu0 %v1726
      %v2543 = vpop.f32.mrf.mxu0
      %v2544 = vadd.f32 0.0, %v2543
      %v2545 = vpop.f32.mrf.mxu0
      %v2546 = vadd.f32 0.0, %v2545
      %2547 = vmatmul.bf16.gmra.mxu0 %v1727
      %v2548 = vpop.f32.mrf.mxu0
      %v2549 = vadd.f32 0.0, %v2548
      %v2550 = vpop.f32.mrf.mxu0
      %v2551 = vadd.f32 0.0, %v2550
      %2552 = vmatmul.bf16.gmra.mxu0 %v1728
      %v2553 = vpop.f32.mrf.mxu0
      %v2554 = vadd.f32 0.0, %v2553
      %v2555 = vpop.f32.mrf.mxu0
      %v2556 = vadd.f32 0.0, %v2555
      %2557 = vmatmul.bf16.gmra.mxu0 %v1729
      %v2558 = vpop.f32.mrf.mxu0
      %v2559 = vadd.f32 0.0, %v2558
      %v2560 = vpop.f32.mrf.mxu0
      %v2561 = vadd.f32 0.0, %v2560
      %2562 = vdwg.mxu0
      %2563 = vmatpush.bf16.msra.mxu0 %v2345
      %2564 = vmatpush.bf16.msra.mxu0 %v2344
      %2565 = vmatpush.bf16.msra.mxu0 %v2343
      %2566 = vmatpush.bf16.msra.mxu0 %v2342
      %2567 = vmatpush.bf16.msra.mxu0 %v2341
      %2568 = vmatpush.bf16.msra.mxu0 %v2340
      %2569 = vmatpush.bf16.msra.mxu0 %v2339
      %2570 = vmatpush.bf16.msra.mxu0 %v2338
      %2571 = vmatmul.bf16.gmra.mxu0 %v1778
      %v2572 = vpop.f32.mrf.mxu0
      %v2573 = vadd.f32 %v2484, %v2572
      %v2574 = vpop.f32.mrf.mxu0
      %v2575 = vadd.f32 %v2486, %v2574
      %2576 = vmatmul.bf16.gmra.mxu0 %v1779
      %v2577 = vpop.f32.mrf.mxu0
      %v2578 = vadd.f32 %v2489, %v2577
      %v2579 = vpop.f32.mrf.mxu0
      %v2580 = vadd.f32 %v2491, %v2579
      %2581 = vmatmul.bf16.gmra.mxu0 %v1780
      %v2582 = vpop.f32.mrf.mxu0
      %v2583 = vadd.f32 %v2494, %v2582
      %v2584 = vpop.f32.mrf.mxu0
      %v2585 = vadd.f32 %v2496, %v2584
      %2586 = vmatmul.bf16.gmra.mxu0 %v1781
      %v2587 = vpop.f32.mrf.mxu0
      %v2588 = vadd.f32 %v2499, %v2587
      %v2589 = vpop.f32.mrf.mxu0
      %v2590 = vadd.f32 %v2501, %v2589
      %2591 = vmatmul.bf16.gmra.mxu0 %v1782
      %v2592 = vpop.f32.mrf.mxu0
      %v2593 = vadd.f32 %v2504, %v2592
      %v2594 = vpop.f32.mrf.mxu0
      %v2595 = vadd.f32 %v2506, %v2594
      %2596 = vmatmul.bf16.gmra.mxu0 %v1783
      %v2597 = vpop.f32.mrf.mxu0
      %v2598 = vadd.f32 %v2509, %v2597
      %v2599 = vpop.f32.mrf.mxu0
      %v2600 = vadd.f32 %v2511, %v2599
      %2601 = vmatmul.bf16.gmra.mxu0 %v1784
      %v2602 = vpop.f32.mrf.mxu0
      %v2603 = vadd.f32 %v2514, %v2602
      %v2604 = vpop.f32.mrf.mxu0
      %v2605 = vadd.f32 %v2516, %v2604
      %2606 = vmatmul.bf16.gmra.mxu0 %v1785
      %v2607 = vpop.f32.mrf.mxu0
      %v2608 = vadd.f32 %v2519, %v2607
      %v2609 = vpop.f32.mrf.mxu0
      %v2610 = vadd.f32 %v2521, %v2609
      %2611 = vmatmul.bf16.gmra.mxu0 %v1786
      %v2612 = vpop.f32.mrf.mxu0
      %v2613 = vadd.f32 %v2524, %v2612
      %v2614 = vpop.f32.mrf.mxu0
      %v2615 = vadd.f32 %v2526, %v2614
      %2616 = vmatmul.bf16.gmra.mxu0 %v1787
      %v2617 = vpop.f32.mrf.mxu0
      %v2618 = vadd.f32 %v2529, %v2617
      %v2619 = vpop.f32.mrf.mxu0
      %v2620 = vadd.f32 %v2531, %v2619
      %2621 = vmatmul.bf16.gmra.mxu0 %v1788
      %v2622 = vpop.f32.mrf.mxu0
      %v2623 = vadd.f32 %v2534, %v2622
      %v2624 = vpop.f32.mrf.mxu0
      %v2625 = vadd.f32 %v2536, %v2624
      %2626 = vmatmul.bf16.gmra.mxu0 %v1789
      %v2627 = vpop.f32.mrf.mxu0
      %v2628 = vadd.f32 %v2539, %v2627
      %v2629 = vpop.f32.mrf.mxu0
      %v2630 = vadd.f32 %v2541, %v2629
      %2631 = vmatmul.bf16.gmra.mxu0 %v1790
      %v2632 = vpop.f32.mrf.mxu0
      %v2633 = vadd.f32 %v2544, %v2632
      %v2634 = vpop.f32.mrf.mxu0
      %v2635 = vadd.f32 %v2546, %v2634
      %2636 = vmatmul.bf16.gmra.mxu0 %v1791
      %v2637 = vpop.f32.mrf.mxu0
      %v2638 = vadd.f32 %v2549, %v2637
      %v2639 = vpop.f32.mrf.mxu0
      %v2640 = vadd.f32 %v2551, %v2639
      %2641 = vmatmul.bf16.gmra.mxu0 %v1792
      %v2642 = vpop.f32.mrf.mxu0
      %v2643 = vadd.f32 %v2554, %v2642
      %v2644 = vpop.f32.mrf.mxu0
      %v2645 = vadd.f32 %v2556, %v2644
      %2646 = vmatmul.bf16.gmra.mxu0 %v1793
      %v2647 = vpop.f32.mrf.mxu0
      %v2648 = vadd.f32 %v2559, %v2647
      %v2649 = vpop.f32.mrf.mxu0
      %v2650 = vadd.f32 %v2561, %v2649
      %2651 = vdwg.mxu0
      %2652 = vmatpush.bf16.msra.mxu0 %v2353
      %2653 = vmatpush.bf16.msra.mxu0 %v2352
      %2654 = vmatpush.bf16.msra.mxu0 %v2351
      %2655 = vmatpush.bf16.msra.mxu0 %v2350
      %2656 = vmatpush.bf16.msra.mxu0 %v2349
      %2657 = vmatpush.bf16.msra.mxu0 %v2348
      %2658 = vmatpush.bf16.msra.mxu0 %v2347
      %2659 = vmatpush.bf16.msra.mxu0 %v2346
      %2660 = vmatmul.bf16.gmra.mxu0 %v1842
      %v2661 = vpop.f32.mrf.mxu0
      %v2662 = vadd.f32 %v2573, %v2661
      %v2663 = vpop.f32.mrf.mxu0
      %v2664 = vadd.f32 %v2575, %v2663
      %2665 = vmatmul.bf16.gmra.mxu0 %v1843
      %v2666 = vpop.f32.mrf.mxu0
      %v2667 = vadd.f32 %v2578, %v2666
      %v2668 = vpop.f32.mrf.mxu0
      %v2669 = vadd.f32 %v2580, %v2668
      %2670 = vmatmul.bf16.gmra.mxu0 %v1844
      %v2671 = vpop.f32.mrf.mxu0
      %v2672 = vadd.f32 %v2583, %v2671
      %v2673 = vpop.f32.mrf.mxu0
      %v2674 = vadd.f32 %v2585, %v2673
      %2675 = vmatmul.bf16.gmra.mxu0 %v1845
      %v2676 = vpop.f32.mrf.mxu0
      %v2677 = vadd.f32 %v2588, %v2676
      %v2678 = vpop.f32.mrf.mxu0
      %v2679 = vadd.f32 %v2590, %v2678
      %2680 = vmatmul.bf16.gmra.mxu0 %v1846
      %v2681 = vpop.f32.mrf.mxu0
      %v2682 = vadd.f32 %v2593, %v2681
      %v2683 = vpop.f32.mrf.mxu0
      %v2684 = vadd.f32 %v2595, %v2683
      %2685 = vmatmul.bf16.gmra.mxu0 %v1847
      %v2686 = vpop.f32.mrf.mxu0
      %v2687 = vadd.f32 %v2598, %v2686
      %v2688 = vpop.f32.mrf.mxu0
      %v2689 = vadd.f32 %v2600, %v2688
      %2690 = vmatmul.bf16.gmra.mxu0 %v1848
      %v2691 = vpop.f32.mrf.mxu0
      %v2692 = vadd.f32 %v2603, %v2691
      %v2693 = vpop.f32.mrf.mxu0
      %v2694 = vadd.f32 %v2605, %v2693
      %2695 = vmatmul.bf16.gmra.mxu0 %v1849
      %v2696 = vpop.f32.mrf.mxu0
      %v2697 = vadd.f32 %v2608, %v2696
      %v2698 = vpop.f32.mrf.mxu0
      %v2699 = vadd.f32 %v2610, %v2698
      %2700 = vmatmul.bf16.gmra.mxu0 %v1850
      %v2701 = vpop.f32.mrf.mxu0
      %v2702 = vadd.f32 %v2613, %v2701
      %v2703 = vpop.f32.mrf.mxu0
      %v2704 = vadd.f32 %v2615, %v2703
      %2705 = vmatmul.bf16.gmra.mxu0 %v1851
      %v2706 = vpop.f32.mrf.mxu0
      %v2707 = vadd.f32 %v2618, %v2706
      %v2708 = vpop.f32.mrf.mxu0
      %v2709 = vadd.f32 %v2620, %v2708
      %2710 = vmatmul.bf16.gmra.mxu0 %v1852
      %v2711 = vpop.f32.mrf.mxu0
      %v2712 = vadd.f32 %v2623, %v2711
      %v2713 = vpop.f32.mrf.mxu0
      %v2714 = vadd.f32 %v2625, %v2713
      %2715 = vmatmul.bf16.gmra.mxu0 %v1853
      %v2716 = vpop.f32.mrf.mxu0
      %v2717 = vadd.f32 %v2628, %v2716
      %v2718 = vpop.f32.mrf.mxu0
      %v2719 = vadd.f32 %v2630, %v2718
      %2720 = vmatmul.bf16.gmra.mxu0 %v1854
      %v2721 = vpop.f32.mrf.mxu0
      %v2722 = vadd.f32 %v2633, %v2721
      %v2723 = vpop.f32.mrf.mxu0
      %v2724 = vadd.f32 %v2635, %v2723
      %2725 = vmatmul.bf16.gmra.mxu0 %v1855
      %v2726 = vpop.f32.mrf.mxu0
      %v2727 = vadd.f32 %v2638, %v2726
      %v2728 = vpop.f32.mrf.mxu0
      %v2729 = vadd.f32 %v2640, %v2728
      %2730 = vmatmul.bf16.gmra.mxu0 %v1856
      %v2731 = vpop.f32.mrf.mxu0
      %v2732 = vadd.f32 %v2643, %v2731
      %v2733 = vpop.f32.mrf.mxu0
      %v2734 = vadd.f32 %v2645, %v2733
      %2735 = vmatmul.bf16.gmra.mxu0 %v1857
      %v2736 = vpop.f32.mrf.mxu0
      %v2737 = vadd.f32 %v2648, %v2736
      %v2738 = vpop.f32.mrf.mxu0
      %v2739 = vadd.f32 %v2650, %v2738
      %2740 = vdwg.mxu0
      %2741 = vmatpush.bf16.msra.mxu0 %v2361
      %2742 = vmatpush.bf16.msra.mxu0 %v2360
      %2743 = vmatpush.bf16.msra.mxu0 %v2359
      %2744 = vmatpush.bf16.msra.mxu0 %v2358
      %2745 = vmatpush.bf16.msra.mxu0 %v2357
      %2746 = vmatpush.bf16.msra.mxu0 %v2356
      %2747 = vmatpush.bf16.msra.mxu0 %v2355
      %2748 = vmatpush.bf16.msra.mxu0 %v2354
      %2749 = vmatmul.bf16.gmra.mxu0 %v1715
      %v2750 = vpop.f32.mrf.mxu0
      %v2751 = vadd.f32 %v2662, %v2750
      %v2752 = vpop.f32.mrf.mxu0
      %v2753 = vadd.f32 %v2664, %v2752
      %2754 = vmatmul.bf16.gmra.mxu0 %v1716
      %v2755 = vpop.f32.mrf.mxu0
      %v2756 = vadd.f32 %v2667, %v2755
      %v2757 = vpop.f32.mrf.mxu0
      %v2758 = vadd.f32 %v2669, %v2757
      %2759 = vmatmul.bf16.gmra.mxu0 %v1717
      %v2760 = vpop.f32.mrf.mxu0
      %v2761 = vadd.f32 %v2672, %v2760
      %v2762 = vpop.f32.mrf.mxu0
      %v2763 = vadd.f32 %v2674, %v2762
      %2764 = vmatmul.bf16.gmra.mxu0 %v1718
      %v2765 = vpop.f32.mrf.mxu0
      %v2766 = vadd.f32 %v2677, %v2765
      %v2767 = vpop.f32.mrf.mxu0
      %v2768 = vadd.f32 %v2679, %v2767
      %2769 = vmatmul.bf16.gmra.mxu0 %v1719
      %v2770 = vpop.f32.mrf.mxu0
      %v2771 = vadd.f32 %v2682, %v2770
      %v2772 = vpop.f32.mrf.mxu0
      %v2773 = vadd.f32 %v2684, %v2772
      %2774 = vmatmul.bf16.gmra.mxu0 %v1720
      %v2775 = vpop.f32.mrf.mxu0
      %v2776 = vadd.f32 %v2687, %v2775
      %v2777 = vpop.f32.mrf.mxu0
      %v2778 = vadd.f32 %v2689, %v2777
      %2779 = vmatmul.bf16.gmra.mxu0 %v1721
      %v2780 = vpop.f32.mrf.mxu0
      %v2781 = vadd.f32 %v2692, %v2780
      %v2782 = vpop.f32.mrf.mxu0
      %v2783 = vadd.f32 %v2694, %v2782
      %2784 = vmatmul.bf16.gmra.mxu0 %v1722
      %v2785 = vpop.f32.mrf.mxu0
      %v2786 = vadd.f32 %v2697, %v2785
      %v2787 = vpop.f32.mrf.mxu0
      %v2788 = vadd.f32 %v2699, %v2787
      %2789 = vmatmul.bf16.gmra.mxu0 %v1723
      %v2790 = vpop.f32.mrf.mxu0
      %v2791 = vadd.f32 %v2702, %v2790
      %v2792 = vpop.f32.mrf.mxu0
      %v2793 = vadd.f32 %v2704, %v2792
      %2794 = vmatmul.bf16.gmra.mxu0 %v1724
      %v2795 = vpop.f32.mrf.mxu0
      %v2796 = vadd.f32 %v2707, %v2795
      %v2797 = vpop.f32.mrf.mxu0
      %v2798 = vadd.f32 %v2709, %v2797
      %2799 = vmatmul.bf16.gmra.mxu0 %v1725
      %v2800 = vpop.f32.mrf.mxu0
      %v2801 = vadd.f32 %v2712, %v2800
      %v2802 = vpop.f32.mrf.mxu0
      %v2803 = vadd.f32 %v2714, %v2802
      %2804 = vmatmul.bf16.gmra.mxu0 %v1726
      %v2805 = vpop.f32.mrf.mxu0
      %v2806 = vadd.f32 %v2717, %v2805
      %v2807 = vpop.f32.mrf.mxu0
      %v2808 = vadd.f32 %v2719, %v2807
      %2809 = vmatmul.bf16.gmra.mxu0 %v1727
      %v2810 = vpop.f32.mrf.mxu0
      %v2811 = vadd.f32 %v2722, %v2810
      %v2812 = vpop.f32.mrf.mxu0
      %v2813 = vadd.f32 %v2724, %v2812
      %2814 = vmatmul.bf16.gmra.mxu0 %v1728
      %v2815 = vpop.f32.mrf.mxu0
      %v2816 = vadd.f32 %v2727, %v2815
      %v2817 = vpop.f32.mrf.mxu0
      %v2818 = vadd.f32 %v2729, %v2817
      %2819 = vmatmul.bf16.gmra.mxu0 %v1729
      %v2820 = vpop.f32.mrf.mxu0
      %v2821 = vadd.f32 %v2732, %v2820
      %v2822 = vpop.f32.mrf.mxu0
      %v2823 = vadd.f32 %v2734, %v2822
      %2824 = vmatmul.bf16.gmra.mxu0 %v1876
      %v2825 = vpop.f32.mrf.mxu0
      %v2826 = vadd.f32 %v2737, %v2825
      %v2827 = vpop.f32.mrf.mxu0
      %v2828 = vadd.f32 %v2739, %v2827
      %2829 = vdwg.mxu0
      %2830 = vmatpush.bf16.msra.mxu0 %v2369
      %2831 = vmatpush.bf16.msra.mxu0 %v2368
      %2832 = vmatpush.bf16.msra.mxu0 %v2367
      %2833 = vmatpush.bf16.msra.mxu0 %v2366
      %2834 = vmatpush.bf16.msra.mxu0 %v2365
      %2835 = vmatpush.bf16.msra.mxu0 %v2364
      %2836 = vmatpush.bf16.msra.mxu0 %v2363
      %2837 = vmatpush.bf16.msra.mxu0 %v2362
      %2838 = vmatmul.bf16.gmra.mxu0 %v1779
      %v2839 = vpop.f32.mrf.mxu0
      %v2840 = vadd.f32 %v2751, %v2839
      %v2841 = vpop.f32.mrf.mxu0
      %v2842 = vadd.f32 %v2753, %v2841
      %2843 = vmatmul.bf16.gmra.mxu0 %v1780
      %v2844 = vpop.f32.mrf.mxu0
      %v2845 = vadd.f32 %v2756, %v2844
      %v2846 = vpop.f32.mrf.mxu0
      %v2847 = vadd.f32 %v2758, %v2846
      %2848 = vmatmul.bf16.gmra.mxu0 %v1781
      %v2849 = vpop.f32.mrf.mxu0
      %v2850 = vadd.f32 %v2761, %v2849
      %v2851 = vpop.f32.mrf.mxu0
      %v2852 = vadd.f32 %v2763, %v2851
      %2853 = vmatmul.bf16.gmra.mxu0 %v1782
      %v2854 = vpop.f32.mrf.mxu0
      %v2855 = vadd.f32 %v2766, %v2854
      %v2856 = vpop.f32.mrf.mxu0
      %v2857 = vadd.f32 %v2768, %v2856
      %2858 = vmatmul.bf16.gmra.mxu0 %v1783
      %v2859 = vpop.f32.mrf.mxu0
      %v2860 = vadd.f32 %v2771, %v2859
      %v2861 = vpop.f32.mrf.mxu0
      %v2862 = vadd.f32 %v2773, %v2861
      %2863 = vmatmul.bf16.gmra.mxu0 %v1784
      %v2864 = vpop.f32.mrf.mxu0
      %v2865 = vadd.f32 %v2776, %v2864
      %v2866 = vpop.f32.mrf.mxu0
      %v2867 = vadd.f32 %v2778, %v2866
      %2868 = vmatmul.bf16.gmra.mxu0 %v1785
      %v2869 = vpop.f32.mrf.mxu0
      %v2870 = vadd.f32 %v2781, %v2869
      %v2871 = vpop.f32.mrf.mxu0
      %v2872 = vadd.f32 %v2783, %v2871
      %2873 = vmatmul.bf16.gmra.mxu0 %v1786
      %v2874 = vpop.f32.mrf.mxu0
      %v2875 = vadd.f32 %v2786, %v2874
      %v2876 = vpop.f32.mrf.mxu0
      %v2877 = vadd.f32 %v2788, %v2876
      %2878 = vmatmul.bf16.gmra.mxu0 %v1787
      %v2879 = vpop.f32.mrf.mxu0
      %v2880 = vadd.f32 %v2791, %v2879
      %v2881 = vpop.f32.mrf.mxu0
      %v2882 = vadd.f32 %v2793, %v2881
      %2883 = vmatmul.bf16.gmra.mxu0 %v1788
      %v2884 = vpop.f32.mrf.mxu0
      %v2885 = vadd.f32 %v2796, %v2884
      %v2886 = vpop.f32.mrf.mxu0
      %v2887 = vadd.f32 %v2798, %v2886
      %2888 = vmatmul.bf16.gmra.mxu0 %v1789
      %v2889 = vpop.f32.mrf.mxu0
      %v2890 = vadd.f32 %v2801, %v2889
      %v2891 = vpop.f32.mrf.mxu0
      %v2892 = vadd.f32 %v2803, %v2891
      %2893 = vmatmul.bf16.gmra.mxu0 %v1790
      %v2894 = vpop.f32.mrf.mxu0
      %v2895 = vadd.f32 %v2806, %v2894
      %v2896 = vpop.f32.mrf.mxu0
      %v2897 = vadd.f32 %v2808, %v2896
      %2898 = vmatmul.bf16.gmra.mxu0 %v1791
      %v2899 = vpop.f32.mrf.mxu0
      %v2900 = vadd.f32 %v2811, %v2899
      %v2901 = vpop.f32.mrf.mxu0
      %v2902 = vadd.f32 %v2813, %v2901
      %2903 = vmatmul.bf16.gmra.mxu0 %v1792
      %v2904 = vpop.f32.mrf.mxu0
      %v2905 = vadd.f32 %v2816, %v2904
      %v2906 = vpop.f32.mrf.mxu0
      %v2907 = vadd.f32 %v2818, %v2906
      %2908 = vmatmul.bf16.gmra.mxu0 %v1793
      %v2909 = vpop.f32.mrf.mxu0
      %v2910 = vadd.f32 %v2821, %v2909
      %v2911 = vpop.f32.mrf.mxu0
      %v2912 = vadd.f32 %v2823, %v2911
      %2913 = vmatmul.bf16.gmra.mxu0 %v1880
      %v2914 = vpop.f32.mrf.mxu0
      %v2915 = vadd.f32 %v2826, %v2914
      %v2916 = vpop.f32.mrf.mxu0
      %v2917 = vadd.f32 %v2828, %v2916
      %2918 = vdwg.mxu0
      %2919 = vmatpush.bf16.msra.mxu0 %v2377
      %2920 = vmatpush.bf16.msra.mxu0 %v2376
      %2921 = vmatpush.bf16.msra.mxu0 %v2375
      %2922 = vmatpush.bf16.msra.mxu0 %v2374
      %2923 = vmatpush.bf16.msra.mxu0 %v2373
      %2924 = vmatpush.bf16.msra.mxu0 %v2372
      %2925 = vmatpush.bf16.msra.mxu0 %v2371
      %2926 = vmatpush.bf16.msra.mxu0 %v2370
      %2927 = vmatmul.bf16.gmra.mxu0 %v1843
      %v2928 = vpop.f32.mrf.mxu0
      %v2929 = vadd.f32 %v2840, %v2928
      %v2930 = vpop.f32.mrf.mxu0
      %v2931 = vadd.f32 %v2842, %v2930
      %2932 = vmatmul.bf16.gmra.mxu0 %v1844
      %v2933 = vpop.f32.mrf.mxu0
      %v2934 = vadd.f32 %v2845, %v2933
      %v2935 = vpop.f32.mrf.mxu0
      %v2936 = vadd.f32 %v2847, %v2935
      %2937 = vmatmul.bf16.gmra.mxu0 %v1845
      %v2938 = vpop.f32.mrf.mxu0
      %v2939 = vadd.f32 %v2850, %v2938
      %v2940 = vpop.f32.mrf.mxu0
      %v2941 = vadd.f32 %v2852, %v2940
      %2942 = vmatmul.bf16.gmra.mxu0 %v1846
      %v2943 = vpop.f32.mrf.mxu0
      %v2944 = vadd.f32 %v2855, %v2943
      %v2945 = vpop.f32.mrf.mxu0
      %v2946 = vadd.f32 %v2857, %v2945
      %2947 = vmatmul.bf16.gmra.mxu0 %v1847
      %v2948 = vpop.f32.mrf.mxu0
      %v2949 = vadd.f32 %v2860, %v2948
      %v2950 = vpop.f32.mrf.mxu0
      %v2951 = vadd.f32 %v2862, %v2950
      %2952 = vmatmul.bf16.gmra.mxu0 %v1848
      %v2953 = vpop.f32.mrf.mxu0
      %v2954 = vadd.f32 %v2865, %v2953
      %v2955 = vpop.f32.mrf.mxu0
      %v2956 = vadd.f32 %v2867, %v2955
      %2957 = vmatmul.bf16.gmra.mxu0 %v1849
      %v2958 = vpop.f32.mrf.mxu0
      %v2959 = vadd.f32 %v2870, %v2958
      %v2960 = vpop.f32.mrf.mxu0
      %v2961 = vadd.f32 %v2872, %v2960
      %2962 = vmatmul.bf16.gmra.mxu0 %v1850
      %v2963 = vpop.f32.mrf.mxu0
      %v2964 = vadd.f32 %v2875, %v2963
      %v2965 = vpop.f32.mrf.mxu0
      %v2966 = vadd.f32 %v2877, %v2965
      %2967 = vmatmul.bf16.gmra.mxu0 %v1851
      %v2968 = vpop.f32.mrf.mxu0
      %v2969 = vadd.f32 %v2880, %v2968
      %v2970 = vpop.f32.mrf.mxu0
      %v2971 = vadd.f32 %v2882, %v2970
      %2972 = vmatmul.bf16.gmra.mxu0 %v1852
      %v2973 = vpop.f32.mrf.mxu0
      %v2974 = vadd.f32 %v2885, %v2973
      %v2975 = vpop.f32.mrf.mxu0
      %v2976 = vadd.f32 %v2887, %v2975
      %2977 = vmatmul.bf16.gmra.mxu0 %v1853
      %v2978 = vpop.f32.mrf.mxu0
      %v2979 = vadd.f32 %v2890, %v2978
      %v2980 = vpop.f32.mrf.mxu0
      %v2981 = vadd.f32 %v2892, %v2980
      %2982 = vmatmul.bf16.gmra.mxu0 %v1854
      %v2983 = vpop.f32.mrf.mxu0
      %v2984 = vadd.f32 %v2895, %v2983
      %v2985 = vpop.f32.mrf.mxu0
      %v2986 = vadd.f32 %v2897, %v2985
      %2987 = vmatmul.bf16.gmra.mxu0 %v1855
      %v2988 = vpop.f32.mrf.mxu0
      %v2989 = vadd.f32 %v2900, %v2988
      %v2990 = vpop.f32.mrf.mxu0
      %v2991 = vadd.f32 %v2902, %v2990
      %2992 = vmatmul.bf16.gmra.mxu0 %v1856
      %v2993 = vpop.f32.mrf.mxu0
      %v2994 = vadd.f32 %v2905, %v2993
      %v2995 = vpop.f32.mrf.mxu0
      %v2996 = vadd.f32 %v2907, %v2995
      %2997 = vmatmul.bf16.gmra.mxu0 %v1857
      %v2998 = vpop.f32.mrf.mxu0
      %v2999 = vadd.f32 %v2910, %v2998
      %v3000 = vpop.f32.mrf.mxu0
      %v3001 = vadd.f32 %v2912, %v3000
      %3002 = vmatmul.bf16.gmra.mxu0 %v1884
      %v3003 = vpop.f32.mrf.mxu0
      %v3004 = vadd.f32 %v2915, %v3003
      %v3005 = vpop.f32.mrf.mxu0
      %v3006 = vadd.f32 %v2917, %v3005
      %3007 = vdwg.mxu0
      %3008 = vmatpush.bf16.msra.mxu0 %v2385
      %3009 = vmatpush.bf16.msra.mxu0 %v2384
      %3010 = vmatpush.bf16.msra.mxu0 %v2383
      %3011 = vmatpush.bf16.msra.mxu0 %v2382
      %3012 = vmatpush.bf16.msra.mxu0 %v2381
      %3013 = vmatpush.bf16.msra.mxu0 %v2380
      %3014 = vmatpush.bf16.msra.mxu0 %v2379
      %3015 = vmatpush.bf16.msra.mxu0 %v2378
      %3016 = vmatmul.bf16.gmra.mxu0 %v1716
      %v3017 = vpop.f32.mrf.mxu0
      %v3018 = vadd.f32 %v2929, %v3017
      %v3019 = vpop.f32.mrf.mxu0
      %v3020 = vadd.f32 %v2931, %v3019
      %3021 = vmatmul.bf16.gmra.mxu0 %v1717
      %v3022 = vpop.f32.mrf.mxu0
      %v3023 = vadd.f32 %v2934, %v3022
      %v3024 = vpop.f32.mrf.mxu0
      %v3025 = vadd.f32 %v2936, %v3024
      %3026 = vmatmul.bf16.gmra.mxu0 %v1718
      %v3027 = vpop.f32.mrf.mxu0
      %v3028 = vadd.f32 %v2939, %v3027
      %v3029 = vpop.f32.mrf.mxu0
      %v3030 = vadd.f32 %v2941, %v3029
      %3031 = vmatmul.bf16.gmra.mxu0 %v1719
      %v3032 = vpop.f32.mrf.mxu0
      %v3033 = vadd.f32 %v2944, %v3032
      %v3034 = vpop.f32.mrf.mxu0
      %v3035 = vadd.f32 %v2946, %v3034
      %3036 = vmatmul.bf16.gmra.mxu0 %v1720
      %v3037 = vpop.f32.mrf.mxu0
      %v3038 = vadd.f32 %v2949, %v3037
      %v3039 = vpop.f32.mrf.mxu0
      %v3040 = vadd.f32 %v2951, %v3039
      %3041 = vmatmul.bf16.gmra.mxu0 %v1721
      %v3042 = vpop.f32.mrf.mxu0
      %v3043 = vadd.f32 %v2954, %v3042
      %v3044 = vpop.f32.mrf.mxu0
      %v3045 = vadd.f32 %v2956, %v3044
      %3046 = vmatmul.bf16.gmra.mxu0 %v1722
      %v3047 = vpop.f32.mrf.mxu0
      %v3048 = vadd.f32 %v2959, %v3047
      %v3049 = vpop.f32.mrf.mxu0
      %v3050 = vadd.f32 %v2961, %v3049
      %3051 = vmatmul.bf16.gmra.mxu0 %v1723
      %v3052 = vpop.f32.mrf.mxu0
      %v3053 = vadd.f32 %v2964, %v3052
      %v3054 = vpop.f32.mrf.mxu0
      %v3055 = vadd.f32 %v2966, %v3054
      %3056 = vmatmul.bf16.gmra.mxu0 %v1724
      %v3057 = vpop.f32.mrf.mxu0
      %v3058 = vadd.f32 %v2969, %v3057
      %v3059 = vpop.f32.mrf.mxu0
      %v3060 = vadd.f32 %v2971, %v3059
      %3061 = vmatmul.bf16.gmra.mxu0 %v1725
      %v3062 = vpop.f32.mrf.mxu0
      %v3063 = vadd.f32 %v2974, %v3062
      %v3064 = vpop.f32.mrf.mxu0
      %v3065 = vadd.f32 %v2976, %v3064
      %3066 = vmatmul.bf16.gmra.mxu0 %v1726
      %v3067 = vpop.f32.mrf.mxu0
      %v3068 = vadd.f32 %v2979, %v3067
      %v3069 = vpop.f32.mrf.mxu0
      %v3070 = vadd.f32 %v2981, %v3069
      %3071 = vmatmul.bf16.gmra.mxu0 %v1727
      %v3072 = vpop.f32.mrf.mxu0
      %v3073 = vadd.f32 %v2984, %v3072
      %v3074 = vpop.f32.mrf.mxu0
      %v3075 = vadd.f32 %v2986, %v3074
      %3076 = vmatmul.bf16.gmra.mxu0 %v1728
      %v3077 = vpop.f32.mrf.mxu0
      %v3078 = vadd.f32 %v2989, %v3077
      %v3079 = vpop.f32.mrf.mxu0
      %v3080 = vadd.f32 %v2991, %v3079
      %3081 = vmatmul.bf16.gmra.mxu0 %v1729
      %v3082 = vpop.f32.mrf.mxu0
      %v3083 = vadd.f32 %v2994, %v3082
      %v3084 = vpop.f32.mrf.mxu0
      %v3085 = vadd.f32 %v2996, %v3084
      %3086 = vmatmul.bf16.gmra.mxu0 %v1876
      %v3087 = vpop.f32.mrf.mxu0
      %v3088 = vadd.f32 %v2999, %v3087
      %v3089 = vpop.f32.mrf.mxu0
      %v3090 = vadd.f32 %v3001, %v3089
      %3091 = vmatmul.bf16.gmra.mxu0 %v1888
      %v3092 = vpop.f32.mrf.mxu0
      %v3093 = vadd.f32 %v3004, %v3092
      %v3094 = vpop.f32.mrf.mxu0
      %v3095 = vadd.f32 %v3006, %v3094
      %3096 = vdwg.mxu0
      %3097 = vmatpush.bf16.msra.mxu0 %v2393
      %3098 = vmatpush.bf16.msra.mxu0 %v2392
      %3099 = vmatpush.bf16.msra.mxu0 %v2391
      %3100 = vmatpush.bf16.msra.mxu0 %v2390
      %3101 = vmatpush.bf16.msra.mxu0 %v2389
      %3102 = vmatpush.bf16.msra.mxu0 %v2388
      %3103 = vmatpush.bf16.msra.mxu0 %v2387
      %3104 = vmatpush.bf16.msra.mxu0 %v2386
      %3105 = vmatmul.bf16.gmra.mxu0 %v1780
      %v3106 = vpop.f32.mrf.mxu0
      %v3107 = vadd.f32 %v3018, %v3106
      %v3108 = vpop.f32.mrf.mxu0
      %v3109 = vadd.f32 %v3020, %v3108
      %3110 = vmatmul.bf16.gmra.mxu0 %v1781
      %v3111 = vpop.f32.mrf.mxu0
      %v3112 = vadd.f32 %v3023, %v3111
      %v3113 = vpop.f32.mrf.mxu0
      %v3114 = vadd.f32 %v3025, %v3113
      %3115 = vmatmul.bf16.gmra.mxu0 %v1782
      %v3116 = vpop.f32.mrf.mxu0
      %v3117 = vadd.f32 %v3028, %v3116
      %v3118 = vpop.f32.mrf.mxu0
      %v3119 = vadd.f32 %v3030, %v3118
      %3120 = vmatmul.bf16.gmra.mxu0 %v1783
      %v3121 = vpop.f32.mrf.mxu0
      %v3122 = vadd.f32 %v3033, %v3121
      %v3123 = vpop.f32.mrf.mxu0
      %v3124 = vadd.f32 %v3035, %v3123
      %3125 = vmatmul.bf16.gmra.mxu0 %v1784
      %v3126 = vpop.f32.mrf.mxu0
      %v3127 = vadd.f32 %v3038, %v3126
      %v3128 = vpop.f32.mrf.mxu0
      %v3129 = vadd.f32 %v3040, %v3128
      %3130 = vmatmul.bf16.gmra.mxu0 %v1785
      %v3131 = vpop.f32.mrf.mxu0
      %v3132 = vadd.f32 %v3043, %v3131
      %v3133 = vpop.f32.mrf.mxu0
      %v3134 = vadd.f32 %v3045, %v3133
      %3135 = vmatmul.bf16.gmra.mxu0 %v1786
      %v3136 = vpop.f32.mrf.mxu0
      %v3137 = vadd.f32 %v3048, %v3136
      %v3138 = vpop.f32.mrf.mxu0
      %v3139 = vadd.f32 %v3050, %v3138
      %3140 = vmatmul.bf16.gmra.mxu0 %v1787
      %v3141 = vpop.f32.mrf.mxu0
      %v3142 = vadd.f32 %v3053, %v3141
      %v3143 = vpop.f32.mrf.mxu0
      %v3144 = vadd.f32 %v3055, %v3143
      %3145 = vmatmul.bf16.gmra.mxu0 %v1788
      %v3146 = vpop.f32.mrf.mxu0
      %v3147 = vadd.f32 %v3058, %v3146
      %v3148 = vpop.f32.mrf.mxu0
      %v3149 = vadd.f32 %v3060, %v3148
      %3150 = vmatmul.bf16.gmra.mxu0 %v1789
      %v3151 = vpop.f32.mrf.mxu0
      %v3152 = vadd.f32 %v3063, %v3151
      %v3153 = vpop.f32.mrf.mxu0
      %v3154 = vadd.f32 %v3065, %v3153
      %3155 = vmatmul.bf16.gmra.mxu0 %v1790
      %v3156 = vpop.f32.mrf.mxu0
      %v3157 = vadd.f32 %v3068, %v3156
      %v3158 = vpop.f32.mrf.mxu0
      %v3159 = vadd.f32 %v3070, %v3158
      %3160 = vmatmul.bf16.gmra.mxu0 %v1791
      %v3161 = vpop.f32.mrf.mxu0
      %v3162 = vadd.f32 %v3073, %v3161
      %v3163 = vpop.f32.mrf.mxu0
      %v3164 = vadd.f32 %v3075, %v3163
      %3165 = vmatmul.bf16.gmra.mxu0 %v1792
      %v3166 = vpop.f32.mrf.mxu0
      %v3167 = vadd.f32 %v3078, %v3166
      %v3168 = vpop.f32.mrf.mxu0
      %v3169 = vadd.f32 %v3080, %v3168
      %3170 = vmatmul.bf16.gmra.mxu0 %v1793
      %v3171 = vpop.f32.mrf.mxu0
      %v3172 = vadd.f32 %v3083, %v3171
      %v3173 = vpop.f32.mrf.mxu0
      %v3174 = vadd.f32 %v3085, %v3173
      %3175 = vmatmul.bf16.gmra.mxu0 %v1880
      %v3176 = vpop.f32.mrf.mxu0
      %v3177 = vadd.f32 %v3088, %v3176
      %v3178 = vpop.f32.mrf.mxu0
      %v3179 = vadd.f32 %v3090, %v3178
      %3180 = vmatmul.bf16.gmra.mxu0 %v1892
      %v3181 = vpop.f32.mrf.mxu0
      %v3182 = vadd.f32 %v3093, %v3181
      %v3183 = vpop.f32.mrf.mxu0
      %v3184 = vadd.f32 %v3095, %v3183
      %3185 = vdwg.mxu0
      %3186 = vmatpush.bf16.msra.mxu0 %v2401
      %3187 = vmatpush.bf16.msra.mxu0 %v2400
      %3188 = vmatpush.bf16.msra.mxu0 %v2399
      %3189 = vmatpush.bf16.msra.mxu0 %v2398
      %3190 = vmatpush.bf16.msra.mxu0 %v2397
      %3191 = vmatpush.bf16.msra.mxu0 %v2396
      %3192 = vmatpush.bf16.msra.mxu0 %v2395
      %3193 = vmatpush.bf16.msra.mxu0 %v2394
      %3194 = vmatmul.bf16.gmra.mxu0 %v1844
      %v3195 = vpop.f32.mrf.mxu0
      %v3196 = vadd.f32 %v3107, %v3195
      %v3197 = vpop.f32.mrf.mxu0
      %v3198 = vadd.f32 %v3109, %v3197
      %3199 = vmatmul.bf16.gmra.mxu0 %v1845
      %v3200 = vpop.f32.mrf.mxu0
      %v3201 = vadd.f32 %v3112, %v3200
      %v3202 = vpop.f32.mrf.mxu0
      %v3203 = vadd.f32 %v3114, %v3202
      %3204 = vmatmul.bf16.gmra.mxu0 %v1846
      %v3205 = vpop.f32.mrf.mxu0
      %v3206 = vadd.f32 %v3117, %v3205
      %v3207 = vpop.f32.mrf.mxu0
      %v3208 = vadd.f32 %v3119, %v3207
      %3209 = vmatmul.bf16.gmra.mxu0 %v1847
      %v3210 = vpop.f32.mrf.mxu0
      %v3211 = vadd.f32 %v3122, %v3210
      %v3212 = vpop.f32.mrf.mxu0
      %v3213 = vadd.f32 %v3124, %v3212
      %3214 = vmatmul.bf16.gmra.mxu0 %v1848
      %v3215 = vpop.f32.mrf.mxu0
      %v3216 = vadd.f32 %v3127, %v3215
      %v3217 = vpop.f32.mrf.mxu0
      %v3218 = vadd.f32 %v3129, %v3217
      %3219 = vmatmul.bf16.gmra.mxu0 %v1849
      %v3220 = vpop.f32.mrf.mxu0
      %v3221 = vadd.f32 %v3132, %v3220
      %v3222 = vpop.f32.mrf.mxu0
      %v3223 = vadd.f32 %v3134, %v3222
      %3224 = vmatmul.bf16.gmra.mxu0 %v1850
      %v3225 = vpop.f32.mrf.mxu0
      %v3226 = vadd.f32 %v3137, %v3225
      %v3227 = vpop.f32.mrf.mxu0
      %v3228 = vadd.f32 %v3139, %v3227
      %3229 = vmatmul.bf16.gmra.mxu0 %v1851
      %v3230 = vpop.f32.mrf.mxu0
      %v3231 = vadd.f32 %v3142, %v3230
      %v3232 = vpop.f32.mrf.mxu0
      %v3233 = vadd.f32 %v3144, %v3232
      %3234 = vmatmul.bf16.gmra.mxu0 %v1852
      %v3235 = vpop.f32.mrf.mxu0
      %v3236 = vadd.f32 %v3147, %v3235
      %v3237 = vpop.f32.mrf.mxu0
      %v3238 = vadd.f32 %v3149, %v3237
      %3239 = vmatmul.bf16.gmra.mxu0 %v1853
      %v3240 = vpop.f32.mrf.mxu0
      %v3241 = vadd.f32 %v3152, %v3240
      %v3242 = vpop.f32.mrf.mxu0
      %v3243 = vadd.f32 %v3154, %v3242
      %3244 = vmatmul.bf16.gmra.mxu0 %v1854
      %v3245 = vpop.f32.mrf.mxu0
      %v3246 = vadd.f32 %v3157, %v3245
      %v3247 = vpop.f32.mrf.mxu0
      %v3248 = vadd.f32 %v3159, %v3247
      %3249 = vmatmul.bf16.gmra.mxu0 %v1855
      %v3250 = vpop.f32.mrf.mxu0
      %v3251 = vadd.f32 %v3162, %v3250
      %v3252 = vpop.f32.mrf.mxu0
      %v3253 = vadd.f32 %v3164, %v3252
      %3254 = vmatmul.bf16.gmra.mxu0 %v1856
      %v3255 = vpop.f32.mrf.mxu0
      %v3256 = vadd.f32 %v3167, %v3255
      %v3257 = vpop.f32.mrf.mxu0
      %v3258 = vadd.f32 %v3169, %v3257
      %3259 = vmatmul.bf16.gmra.mxu0 %v1857
      %v3260 = vpop.f32.mrf.mxu0
      %v3261 = vadd.f32 %v3172, %v3260
      %v3262 = vpop.f32.mrf.mxu0
      %v3263 = vadd.f32 %v3174, %v3262
      %3264 = vmatmul.bf16.gmra.mxu0 %v1884
      %v3265 = vpop.f32.mrf.mxu0
      %v3266 = vadd.f32 %v3177, %v3265
      %v3267 = vpop.f32.mrf.mxu0
      %v3268 = vadd.f32 %v3179, %v3267
      %3269 = vmatmul.bf16.gmra.mxu0 %v1896
      %v3270 = vpop.f32.mrf.mxu0
      %v3271 = vadd.f32 %v3182, %v3270
      %v3272 = vpop.f32.mrf.mxu0
      %v3273 = vadd.f32 %v3184, %v3272
      %3274 = vdwg.mxu0
      %v3275 = vpack.c.bf16 %v3196, %v3196
      %v3276 = vpack.c.bf16 %v3198, %v3198
      %v3277 = vpack.c.bf16 %v3201, %v3201
      %v3278 = vpack.c.bf16 %v3203, %v3203
      %v3279 = vpack.c.bf16 %v3206, %v3206
      %v3280 = vpack.c.bf16 %v3208, %v3208
      %v3281 = vpack.c.bf16 %v3211, %v3211
      %v3282 = vpack.c.bf16 %v3213, %v3213
      %v3283 = vpack.c.bf16 %v3216, %v3216
      %v3284 = vpack.c.bf16 %v3218, %v3218
      %v3285 = vpack.c.bf16 %v3221, %v3221
      %v3286 = vpack.c.bf16 %v3223, %v3223
      %v3287 = vpack.c.bf16 %v3226, %v3226
      %v3288 = vpack.c.bf16 %v3228, %v3228
      %v3289 = vpack.c.bf16 %v3231, %v3231
      %v3290 = vpack.c.bf16 %v3233, %v3233
      %v3291 = vpack.c.bf16 %v3236, %v3236
      %v3292 = vpack.c.bf16 %v3238, %v3238
      %v3293 = vpack.c.bf16 %v3241, %v3241
      %v3294 = vpack.c.bf16 %v3243, %v3243
      %v3295 = vpack.c.bf16 %v3246, %v3246
      %v3296 = vpack.c.bf16 %v3248, %v3248
      %v3297 = vpack.c.bf16 %v3251, %v3251
      %v3298 = vpack.c.bf16 %v3253, %v3253
      %v3299 = vpack.c.bf16 %v3256, %v3256
      %v3300 = vpack.c.bf16 %v3258, %v3258
      %v3301 = vpack.c.bf16 %v3261, %v3261
      %v3302 = vpack.c.bf16 %v3263, %v3263
      %v3303 = vpack.c.bf16 %v3266, %v3266
      %v3304 = vpack.c.bf16 %v3268, %v3268
      %v3305 = vpack.c.bf16 %v3271, %v3271
      %v3306 = vpack.c.bf16 %v3273, %v3273
      %3307 = vst [vmem:[%s259] sm:$0xf] %v3275
      %3308 = vst [vmem:[%s259 + $0x4] sm:$0xf] %v3276
      %3309 = vst [vmem:[%s259 + $0x8] sm:$0xf] %v3277
      %3310 = vst [vmem:[%s259 + $0xc] sm:$0xf] %v3278
      %3311 = vst [vmem:[%s259 + $0x10] sm:$0xf] %v3279
      %3312 = vst [vmem:[%s259 + $0x14] sm:$0xf] %v3280
      %3313 = vst [vmem:[%s259 + $0x18] sm:$0xf] %v3281
      %3314 = vst [vmem:[%s259 + $0x1c] sm:$0xf] %v3282
      %3315 = vst [vmem:[%s259 + $0x20] sm:$0xf] %v3283
      %3316 = vst [vmem:[%s259 + $0x24] sm:$0xf] %v3284
      %3317 = vst [vmem:[%s259 + $0x28] sm:$0xf] %v3285
      %3318 = vst [vmem:[%s259 + $0x2c] sm:$0xf] %v3286
      %3319 = vst [vmem:[%s259 + $0x30] sm:$0xf] %v3287
      %3320 = vst [vmem:[%s259 + $0x34] sm:$0xf] %v3288
      %3321 = vst [vmem:[%s259 + $0x38] sm:$0xf] %v3289
      %3322 = vst [vmem:[%s259 + $0x3c] sm:$0xf] %v3290
      %3323 = vst [vmem:[%s259 + $0x40] sm:$0xf] %v3291
      %3324 = vst [vmem:[%s259 + $0x44] sm:$0xf] %v3292
      %3325 = vst [vmem:[%s259 + $0x48] sm:$0xf] %v3293
      %3326 = vst [vmem:[%s259 + $0x4c] sm:$0xf] %v3294
      %3327 = vst [vmem:[%s259 + $0x50] sm:$0xf] %v3295
      %3328 = vst [vmem:[%s259 + $0x54] sm:$0xf] %v3296
      %3329 = vst [vmem:[%s259 + $0x58] sm:$0xf] %v3297
      %3330 = vst [vmem:[%s259 + $0x5c] sm:$0xf] %v3298
      %3331 = vst [vmem:[%s259 + $0x60] sm:$0xf] %v3299
      %3332 = vst [vmem:[%s259 + $0x64] sm:$0xf] %v3300
      %3333 = vst [vmem:[%s259 + $0x68] sm:$0xf] %v3301
      %3334 = vst [vmem:[%s259 + $0x6c] sm:$0xf] %v3302
      %3335 = vst [vmem:[%s259 + $0x70] sm:$0xf] %v3303
      %3336 = vst [vmem:[%s259 + $0x74] sm:$0xf] %v3304
      %3337 = vst [vmem:[%s259 + $0x78] sm:$0xf] %v3305
      %3338 = vst [vmem:[%s259 + $0x7c] sm:$0xf] %v3306
      %v3339 = vadd.f32 %v3196, %v3198
      %v3340 = vadd.f32 %v3339, %v3201
      %v3341 = vadd.f32 %v3340, %v3203
      %v3342 = vadd.f32 %v3341, %v3206
      %v3343 = vadd.f32 %v3342, %v3208
      %v3344 = vadd.f32 %v3343, %v3211
      %v3345 = vadd.f32 %v3344, %v3213
      %v3346 = vadd.f32 %v3345, %v3216
      %v3347 = vadd.f32 %v3346, %v3218
      %v3348 = vadd.f32 %v3347, %v3221
      %v3349 = vadd.f32 %v3348, %v3223
      %v3350 = vadd.f32 %v3349, %v3226
      %v3351 = vadd.f32 %v3350, %v3228
      %v3352 = vadd.f32 %v3351, %v3231
      %v3353 = vadd.f32 %v3352, %v3233
      %v3354 = vadd.f32 %v3353, %v3236
      %v3355 = vadd.f32 %v3354, %v3238
      %v3356 = vadd.f32 %v3355, %v3241
      %v3357 = vadd.f32 %v3356, %v3243
      %v3358 = vadd.f32 %v3357, %v3246
      %v3359 = vadd.f32 %v3358, %v3248
      %v3360 = vadd.f32 %v3359, %v3251
      %v3361 = vadd.f32 %v3360, %v3253
      %v3362 = vadd.f32 %v3361, %v3256
      %v3363 = vadd.f32 %v3362, %v3258
      %v3364 = vadd.f32 %v3363, %v3261
      %v3365 = vadd.f32 %v3364, %v3263
      %v3366 = vadd.f32 %v3365, %v3266
      %v3367 = vadd.f32 %v3366, %v3268
      %v3368 = vadd.f32 %v3367, %v3271
      %v3369 = vadd.f32 %v3368, %v3273
      %v3370 = vrot.slane %v3369, 4
      %v3371 = vadd.f32 %v3369, %v3370
      %v3372 = vrot.slane %v3371, 2
      %v3373 = vadd.f32 %v3371, %v3372
      %v3374 = vrot.slane %v3373, 1
      %v3375 = vadd.f32 %v3373, %v3374
      %3376 = vst [vmem:[%s263] sm:$0x1] %v3375
      %v3377 = vmul.f32 %v3196, %v3196
      %v3378 = vmul.f32 %v3198, %v3198
      %v3379 = vmul.f32 %v3201, %v3201
      %v3380 = vmul.f32 %v3203, %v3203
      %v3381 = vmul.f32 %v3206, %v3206
      %v3382 = vmul.f32 %v3208, %v3208
      %v3383 = vmul.f32 %v3211, %v3211
      %v3384 = vmul.f32 %v3213, %v3213
      %v3385 = vmul.f32 %v3216, %v3216
      %v3386 = vmul.f32 %v3218, %v3218
      %v3387 = vmul.f32 %v3221, %v3221
      %v3388 = vmul.f32 %v3223, %v3223
      %v3389 = vmul.f32 %v3226, %v3226
      %v3390 = vmul.f32 %v3228, %v3228
      %v3391 = vmul.f32 %v3231, %v3231
      %v3392 = vmul.f32 %v3233, %v3233
      %v3393 = vmul.f32 %v3236, %v3236
      %v3394 = vmul.f32 %v3238, %v3238
      %v3395 = vmul.f32 %v3241, %v3241
      %v3396 = vmul.f32 %v3243, %v3243
      %v3397 = vmul.f32 %v3246, %v3246
      %v3398 = vmul.f32 %v3248, %v3248
      %v3399 = vmul.f32 %v3251, %v3251
      %v3400 = vmul.f32 %v3253, %v3253
      %v3401 = vmul.f32 %v3256, %v3256
      %v3402 = vmul.f32 %v3258, %v3258
      %v3403 = vmul.f32 %v3261, %v3261
      %v3404 = vmul.f32 %v3263, %v3263
      %v3405 = vmul.f32 %v3266, %v3266
      %v3406 = vmul.f32 %v3268, %v3268
      %v3407 = vmul.f32 %v3271, %v3271
      %v3408 = vmul.f32 %v3273, %v3273
      %v3409 = vadd.f32 %v3377, %v3378
      %v3410 = vadd.f32 %v3409, %v3379
      %v3411 = vadd.f32 %v3410, %v3380
      %v3412 = vadd.f32 %v3411, %v3381
      %v3413 = vadd.f32 %v3412, %v3382
      %v3414 = vadd.f32 %v3413, %v3383
      %v3415 = vadd.f32 %v3414, %v3384
      %v3416 = vadd.f32 %v3415, %v3385
      %v3417 = vadd.f32 %v3416, %v3386
      %v3418 = vadd.f32 %v3417, %v3387
      %v3419 = vadd.f32 %v3418, %v3388
      %v3420 = vadd.f32 %v3419, %v3389
      %v3421 = vadd.f32 %v3420, %v3390
      %v3422 = vadd.f32 %v3421, %v3391
      %v3423 = vadd.f32 %v3422, %v3392
      %v3424 = vadd.f32 %v3423, %v3393
      %v3425 = vadd.f32 %v3424, %v3394
      %v3426 = vadd.f32 %v3425, %v3395
      %v3427 = vadd.f32 %v3426, %v3396
      %v3428 = vadd.f32 %v3427, %v3397
      %v3429 = vadd.f32 %v3428, %v3398
      %v3430 = vadd.f32 %v3429, %v3399
      %v3431 = vadd.f32 %v3430, %v3400
      %v3432 = vadd.f32 %v3431, %v3401
      %v3433 = vadd.f32 %v3432, %v3402
      %v3434 = vadd.f32 %v3433, %v3403
      %v3435 = vadd.f32 %v3434, %v3404
      %v3436 = vadd.f32 %v3435, %v3405
      %v3437 = vadd.f32 %v3436, %v3406
      %v3438 = vadd.f32 %v3437, %v3407
      %v3439 = vadd.f32 %v3438, %v3408
      %v3440 = vrot.slane %v3439, 4
      %v3441 = vadd.f32 %v3439, %v3440
      %v3442 = vrot.slane %v3441, 2
      %v3443 = vadd.f32 %v3441, %v3442
      %v3444 = vrot.slane %v3443, 1
      %v3445 = vadd.f32 %v3443, %v3444
      %3446 = vst [vmem:[%s263 + $0x1] sm:$0x1] %v3445
      %p3447 = scmp.lt.s32.totalorder %s17, 1
      %s3448 = scalar_select %p3447, %s17, 1
      %s3449 = smul.addr %s3448, 32
      %s3450 = smul.addr %s3449, 4
      %s3451 = scalar_lea.vmem %s4, %s3450
      %p3452 = scmp.lt.s32.totalorder %s17, 1
      %s3453 = scalar_select %p3452, %s17, 1
      %s3454 = smul.addr %s3453, 2
      %s3455 = scalar_lea.vmem %s5, %s3454
      // Predicated region
      $region37: #{bottleneck_ibn_forward.5} parent=35 // pred_check
        %p3456 = pneg %p134
      $region38: #{bottleneck_ibn_forward.5} parent=35 // pred_check_branch
        %3458 = sbr.rel (%p3456) target = $region40
      $region39: #{bottleneck_ibn_forward.5} parent=35 // pred_region
        _
      $region40: #{bottleneck_ibn_forward.5} parent=35 // pred_fallthru
        _
      // Predicated region
      $region41: #{bottleneck_ibn_forward.5} parent=35 // pred_check
        %p3459 = pneg %p160
      $region42: #{bottleneck_ibn_forward.5} parent=35 // pred_check_branch
        %3461 = sbr.rel (%p3459) target = $region44
      $region43: #{bottleneck_ibn_forward.5} parent=35 // pred_region
        _
      $region44: #{bottleneck_ibn_forward.5} parent=35 // pred_fallthru
        _
    $region36: #{bottleneck_ibn_forward.5} parent=5 // pred_fallthru
      _
    %p3462 = scmp.le.s32.totalorder 2, %s12
    // Predicated region
    $region45: #{bottleneck_ibn_forward.5} parent=5 // pred_check
      %p3463 = pneg %p3462
    $region46: #{bottleneck_ibn_forward.5} parent=5 // pred_check_branch
      %3465 = sbr.rel (%p3463) target = $region48
    $region47: #{bottleneck_ibn_forward.5} parent=5 // pred_region
      %s3466 = ssub.s32 %s12, 2
      // Predicated region
      $region49: #{bottleneck_ibn_forward.5} parent=47 // pred_check
        %p3467 = pneg %p140
      $region50: #{bottleneck_ibn_forward.5} parent=47 // pred_check_branch
        %3469 = sbr.rel (%p3467) target = $region52
      $region51: #{bottleneck_ibn_forward.5} parent=47 // pred_region
        %p3470 = scmp.lt.s32.totalorder %s18, 1
        %s3471 = scalar_select %p3470, %s18, 1
        %s3472 = smul.addr %s3471, 32
        %s3473 = smul.addr %s3472, 4
        %s3474 = scalar_lea.vmem %s4, %s3473
      $region52: #{bottleneck_ibn_forward.5} parent=47 // pred_fallthru
        _
      // Predicated region
      $region53: #{bottleneck_ibn_forward.5} parent=47 // pred_check
        %p3475 = pneg %p166
      $region54: #{bottleneck_ibn_forward.5} parent=47 // pred_check_branch
        %3477 = sbr.rel (%p3475) target = $region56
      $region55: #{bottleneck_ibn_forward.5} parent=47 // pred_region
        %p3478 = scmp.lt.s32.totalorder %s18, 1
        %s3479 = scalar_select %p3478, %s18, 1
        %s3480 = smul.addr %s3479, 2
        %s3481 = scalar_lea.vmem %s5, %s3480
      $region56: #{bottleneck_ibn_forward.5} parent=47 // pred_fallthru
        _
    $region48: #{bottleneck_ibn_forward.5} parent=5 // pred_fallthru
      _
  $region6: #{bottleneck_ibn_forward.5} parent=0 // loop_footer
    %s16 = sadd.s32 1, %s12
  $region7: #{bottleneck_ibn_forward.5} parent=0 // loop_footer_branch
    %11 = sbr.rel target = $region3
  $region8: #{bottleneck_ibn_forward.5} parent=0 // loop_exit
    _

</llo_original>
